<compile_context>
chip_gen: v6e
topology: v6e:2x2x1
jax: 0.10.0
libtpu: 0.0.40
codegen_flags: <defaults>
</compile_context>

<pallas_src>
import functools

import jax
import jax.numpy as jnp
from jax.experimental import pallas as pl
from jax.experimental.pallas import tpu as pltpu


def _patchify_strip_kernel(x_ref, o_ref, *, C, p, wp):
    # x_ref block: (1, C, p, W)   o_ref block: (1, 1, wp, C*p*p)
    F = C * p * p
    for j in range(wp):  # wp is a small compile-time constant
        blk = x_ref[0, :, :, j * p:(j + 1) * p]          # (C, p, p)
        # Vectorized lane-collapse: one wide (1, C*p*p) store per patch.
        o_ref[0, 0, pl.ds(j, 1), :] = blk.reshape(1, F)


def _patchify_strip_kernel_fallback(x_ref, o_ref, *, C, p, wp):
    # Same output layout, but built from static slice copies only (always
    # lowers).  HBM writeback DMA is still dense; only the in-VMEM stores are
    # narrow.  Used only if the vectorized kernel fails to compile.
    pp = p * p
    for j in range(wp):
        for c in range(C):
            for a in range(p):
                base = c * pp + a * p
                o_ref[0, 0, j, base:base + p] = x_ref[0, c, a, j * p:(j + 1) * p]


def simple_patchifier(x, patch_size=16):
    """Pallas implementation of SimplePatchifier.forward."""
    B, C, H, W = x.shape
    p = patch_size
    assert H % p == 0 and W % p == 0, "H and W must be divisible by patch_size"
    assert p % 8 == 0 or H == p, "patch_size should be a multiple of 8 for TPU tiling"
    hp, wp = H // p, W // p
    n_patches = hp * wp
    F = C * p * p  # flat patch length (multiple of 128 for p=16)

    grid = (B, hp)
    in_specs = [pl.BlockSpec((1, C, p, W), lambda b, i: (b, 0, i, 0))]
    out_specs = pl.BlockSpec((1, 1, wp, F), lambda b, i: (b, i, 0, 0))
    out_shape = jax.ShapeDtypeStruct((B, hp, wp, F), x.dtype)
    compiler_params = pltpu.CompilerParams(
        dimension_semantics=("parallel", "parallel"),
    )

    def build(body):
        return pl.pallas_call(
            functools.partial(body, C=C, p=p, wp=wp),
            out_shape=out_shape,
            grid=grid,
            in_specs=in_specs,
            out_specs=out_specs,
            compiler_params=compiler_params,
        )

    try:
        out_flat = jax.block_until_ready(build(_patchify_strip_kernel)(x))
    except Exception:
        # Mosaic rejected the lane-collapsing reshape on this toolchain;
        # use the statically-unrolled (always-lowerable) variant instead.
        out_flat = build(_patchify_strip_kernel_fallback)(x)

    # Free reshape: collapse (hp, wp) -> N and split C*p*p -> (C, p, p); both
    # are contiguous-dim reshapes (no data movement).
    return out_flat.reshape(B, n_patches, C, p, p)


def _reference_patchifier(x, patch_size=16):
    # Pure-JAX reference mirroring torch permute/unfold/view semantics.
    B, C, H, W = x.shape
    p = patch_size
    hp, wp = H // p, W // p
    y = x.reshape(B, C, hp, p, wp, p)
    y = jnp.transpose(y, (0, 2, 4, 1, 3, 5))  # (B, hp, wp, C, p, p)
    return y.reshape(B, hp * wp, C, p, p)


if __name__ == "__main__":
    key = jax.random.PRNGKey(0)
    B, C, H, W = 2, 4, 32, 32
    patch_size = 16
    x = jax.random.normal(key, (B, C, H, W), dtype=jnp.float32)

    out = simple_patchifier(x, patch_size=patch_size)
    out = jax.block_until_ready(out)

    ref = _reference_patchifier(x, patch_size=patch_size)
    assert out.shape == (B, (H // patch_size) * (W // patch_size), C,
                         patch_size, patch_size), out.shape
    assert out.dtype == x.dtype
    assert jnp.array_equal(out, ref), "Pallas patchifier mismatch vs reference"

    print("KERNEL_OK")
</pallas_src>

<mosaic_0001>
module attributes {stable_mosaic.version = 11 : i64} {
  func.func @_patchify_strip_kernel(%arg0: i32, %arg1: i32, %arg2: memref<1x4x16x32xf32, #tpu.memory_space<vmem>>, %arg3: memref<1x1x2x1024xf32, #tpu.memory_space<vmem>>) attributes {dimension_semantics = [#tpu.dimension_semantics<parallel>, #tpu.dimension_semantics<parallel>], iteration_bounds = array<i64: 2, 2>, scalar_prefetch = 0 : i64, scratch_operands = 0 : i64, tpu.core_type = #tpu.core_type<tc>, window_params = [{transform_indices = @transform_0, window_bounds = array<i64: 1, 4, 16, 32>}, {transform_indices = @transform_1, window_bounds = array<i64: 1, 1, 2, 1024>}]} {
    %c0 = arith.constant 0 : index
    %c0_0 = arith.constant 0 : index
    %c0_1 = arith.constant 0 : index
    %c0_2 = arith.constant 0 : index
    %0 = vector.load %arg2[%c0, %c0_0, %c0_1, %c0_2] : memref<1x4x16x32xf32, #tpu.memory_space<vmem>>, vector<1x4x16x16xf32>
    %1 = vector.shape_cast %0 : vector<1x4x16x16xf32> to vector<4x16x16xf32>
    %2 = vector.shape_cast %1 : vector<4x16x16xf32> to vector<1x1024xf32>
    %c0_3 = arith.constant 0 : index
    %c0_4 = arith.constant 0 : index
    %c0_5 = arith.constant 0 : index
    %c0_6 = arith.constant 0 : index
    %3 = vector.load %arg3[%c0_3, %c0_4, %c0_5, %c0_6] : memref<1x1x2x1024xf32, #tpu.memory_space<vmem>>, vector<1x1x1x1024xf32>
    %4 = vector.shape_cast %3 : vector<1x1x1x1024xf32> to vector<1x1024xf32>
    %5 = vector.shape_cast %2 : vector<1x1024xf32> to vector<1x1x1x1024xf32>
    tpu.vector_store %arg3[%c0_3, %c0_4, %c0_5, %c0_6], %5 {strides = array<i32>} : memref<1x1x2x1024xf32, #tpu.memory_space<vmem>>, vector<1x1x1x1024xf32>,
    %c0_7 = arith.constant 0 : index
    %c0_8 = arith.constant 0 : index
    %c0_9 = arith.constant 0 : index
    %c16 = arith.constant 16 : index
    %6 = vector.load %arg2[%c0_7, %c0_8, %c0_9, %c16] : memref<1x4x16x32xf32, #tpu.memory_space<vmem>>, vector<1x4x16x16xf32>
    %7 = vector.shape_cast %6 : vector<1x4x16x16xf32> to vector<4x16x16xf32>
    %8 = vector.shape_cast %7 : vector<4x16x16xf32> to vector<1x1024xf32>
    %c0_10 = arith.constant 0 : index
    %c0_11 = arith.constant 0 : index
    %c1 = arith.constant 1 : index
    %c0_12 = arith.constant 0 : index
    %9 = vector.load %arg3[%c0_10, %c0_11, %c1, %c0_12] : memref<1x1x2x1024xf32, #tpu.memory_space<vmem>>, vector<1x1x1x1024xf32>
    %10 = vector.shape_cast %9 : vector<1x1x1x1024xf32> to vector<1x1024xf32>
    %11 = vector.shape_cast %8 : vector<1x1024xf32> to vector<1x1x1x1024xf32>
    tpu.vector_store %arg3[%c0_10, %c0_11, %c1, %c0_12], %11 {strides = array<i32>} : memref<1x1x2x1024xf32, #tpu.memory_space<vmem>>, vector<1x1x1x1024xf32>,
    return
  }
  func.func @transform_0(%arg0: i32, %arg1: i32) -> (i32, i32, i32, i32) {
    %c0_i32 = arith.constant 0 : i32
    %c0_i32_0 = arith.constant 0 : i32
    %c0_i32_1 = arith.constant 0 : i32
    return %arg0, %c0_i32, %arg1, %c0_i32_0 : i32, i32, i32, i32
  }
  func.func @transform_1(%arg0: i32, %arg1: i32) -> (i32, i32, i32, i32) {
    %c0_i32 = arith.constant 0 : i32
    %c0_i32_0 = arith.constant 0 : i32
    %c0_i32_1 = arith.constant 0 : i32
    return %arg0, %arg1, %c0_i32, %c0_i32_0 : i32, i32, i32, i32
  }
}

module attributes {stable_mosaic.version = 11 : i64} {
  func.func @_patchify_strip_kernel_fallback(%arg0: i32, %arg1: i32, %arg2: memref<1x4x16x32xf32, #tpu.memory_space<vmem>>, %arg3: memref<1x1x2x1024xf32, #tpu.memory_space<vmem>>) attributes {dimension_semantics = [#tpu.dimension_semantics<parallel>, #tpu.dimension_semantics<parallel>], iteration_bounds = array<i64: 2, 2>, scalar_prefetch = 0 : i64, scratch_operands = 0 : i64, tpu.core_type = #tpu.core_type<tc>, window_params = [{transform_indices = @transform_0, window_bounds = array<i64: 1, 4, 16, 32>}, {transform_indices = @transform_1, window_bounds = array<i64: 1, 1, 2, 1024>}]} {
    %c0 = arith.constant 0 : index
    %c0_0 = arith.constant 0 : index
    %c0_1 = arith.constant 0 : index
    %c0_2 = arith.constant 0 : index
    %0 = vector.load %arg2[%c0, %c0_0, %c0_1, %c0_2] : memref<1x4x16x32xf32, #tpu.memory_space<vmem>>, vector<1x1x1x16xf32>
    %1 = vector.shape_cast %0 : vector<1x1x1x16xf32> to vector<16xf32>
    %c0_3 = arith.constant 0 : index
    %c0_4 = arith.constant 0 : index
    %c0_5 = arith.constant 0 : index
    %c0_6 = arith.constant 0 : index
    %2 = vector.load %arg3[%c0_3, %c0_4, %c0_5, %c0_6] : memref<1x1x2x1024xf32, #tpu.memory_space<vmem>>, vector<1x1x1x16xf32>
    %3 = vector.shape_cast %2 : vector<1x1x1x16xf32> to vector<16xf32>
    %4 = vector.shape_cast %1 : vector<16xf32> to vector<1x1x1x16xf32>
    tpu.vector_store %arg3[%c0_3, %c0_4, %c0_5, %c0_6], %4 {strides = array<i32>} : memref<1x1x2x1024xf32, #tpu.memory_space<vmem>>, vector<1x1x1x16xf32>,
    %c0_7 = arith.constant 0 : index
    %c0_8 = arith.constant 0 : index
    %c1 = arith.constant 1 : index
    %c0_9 = arith.constant 0 : index
    %5 = vector.load %arg2[%c0_7, %c0_8, %c1, %c0_9] : memref<1x4x16x32xf32, #tpu.memory_space<vmem>>, vector<1x1x1x16xf32>
    %6 = vector.shape_cast %5 : vector<1x1x1x16xf32> to vector<16xf32>
    %c0_10 = arith.constant 0 : index
    %c0_11 = arith.constant 0 : index
    %c0_12 = arith.constant 0 : index
    %c16 = arith.constant 16 : index
    %7 = vector.load %arg3[%c0_10, %c0_11, %c0_12, %c16] : memref<1x1x2x1024xf32, #tpu.memory_space<vmem>>, vector<1x1x1x16xf32>
    %8 = vector.shape_cast %7 : vector<1x1x1x16xf32> to vector<16xf32>
    %9 = vector.shape_cast %6 : vector<16xf32> to vector<1x1x1x16xf32>
    tpu.vector_store %arg3[%c0_10, %c0_11, %c0_12, %c16], %9 {strides = array<i32>} : memref<1x1x2x1024xf32, #tpu.memory_space<vmem>>, vector<1x1x1x16xf32>,
    %c0_13 = arith.constant 0 : index
    %c0_14 = arith.constant 0 : index
    %c2 = arith.constant 2 : index
    %c0_15 = arith.constant 0 : index
    %10 = vector.load %arg2[%c0_13, %c0_14, %c2, %c0_15] : memref<1x4x16x32xf32, #tpu.memory_space<vmem>>, vector<1x1x1x16xf32>
    %11 = vector.shape_cast %10 : vector<1x1x1x16xf32> to vector<16xf32>
    %c0_16 = arith.constant 0 : index
    %c0_17 = arith.constant 0 : index
    %c0_18 = arith.constant 0 : index
    %c32 = arith.constant 32 : index
    %12 = vector.load %arg3[%c0_16, %c0_17, %c0_18, %c32] : memref<1x1x2x1024xf32, #tpu.memory_space<vmem>>, vector<1x1x1x16xf32>
    %13 = vector.shape_cast %12 : vector<1x1x1x16xf32> to vector<16xf32>
    %14 = vector.shape_cast %11 : vector<16xf32> to vector<1x1x1x16xf32>
    tpu.vector_store %arg3[%c0_16, %c0_17, %c0_18, %c32], %14 {strides = array<i32>} : memref<1x1x2x1024xf32, #tpu.memory_space<vmem>>, vector<1x1x1x16xf32>,
    %c0_19 = arith.constant 0 : index
    %c0_20 = arith.constant 0 : index
    %c3 = arith.constant 3 : index
    %c0_21 = arith.constant 0 : index
    %15 = vector.load %arg2[%c0_19, %c0_20, %c3, %c0_21] : memref<1x4x16x32xf32, #tpu.memory_space<vmem>>, vector<1x1x1x16xf32>
    %16 = vector.shape_cast %15 : vector<1x1x1x16xf32> to vector<16xf32>
    %c0_22 = arith.constant 0 : index
    %c0_23 = arith.constant 0 : index
    %c0_24 = arith.constant 0 : index
    %c48 = arith.constant 48 : index
    %17 = vector.load %arg3[%c0_22, %c0_23, %c0_24, %c48] : memref<1x1x2x1024xf32, #tpu.memory_space<vmem>>, vector<1x1x1x16xf32>
    %18 = vector.shape_cast %17 : vector<1x1x1x16xf32> to vector<16xf32>
    %19 = vector.shape_cast %16 : vector<16xf32> to vector<1x1x1x16xf32>
    tpu.vector_store %arg3[%c0_22, %c0_23, %c0_24, %c48], %19 {strides = array<i32>} : memref<1x1x2x1024xf32, #tpu.memory_space<vmem>>, vector<1x1x1x16xf32>,
    %c0_25 = arith.constant 0 : index
    %c0_26 = arith.constant 0 : index
    %c4 = arith.constant 4 : index
    %c0_27 = arith.constant 0 : index
    %20 = vector.load %arg2[%c0_25, %c0_26, %c4, %c0_27] : memref<1x4x16x32xf32, #tpu.memory_space<vmem>>, vector<1x1x1x16xf32>
    %21 = vector.shape_cast %20 : vector<1x1x1x16xf32> to vector<16xf32>
    %c0_28 = arith.constant 0 : index
    %c0_29 = arith.constant 0 : index
    %c0_30 = arith.constant 0 : index
    %c64 = arith.constant 64 : index
    %22 = vector.load %arg3[%c0_28, %c0_29, %c0_30, %c64] : memref<1x1x2x1024xf32, #tpu.memory_space<vmem>>, vector<1x1x1x16xf32>
    %23 = vector.shape_cast %22 : vector<1x1x1x16xf32> to vector<16xf32>
    %24 = vector.shape_cast %21 : vector<16xf32> to vector<1x1x1x16xf32>
    tpu.vector_store %arg3[%c0_28, %c0_29, %c0_30, %c64], %24 {strides = array<i32>} : memref<1x1x2x1024xf32, #tpu.memory_space<vmem>>, vector<1x1x1x16xf32>,
    %c0_31 = arith.constant 0 : index
    %c0_32 = arith.constant 0 : index
    %c5 = arith.constant 5 : index
    %c0_33 = arith.constant 0 : index
    %25 = vector.load %arg2[%c0_31, %c0_32, %c5, %c0_33] : memref<1x4x16x32xf32, #tpu.memory_space<vmem>>, vector<1x1x1x16xf32>
    %26 = vector.shape_cast %25 : vector<1x1x1x16xf32> to vector<16xf32>
    %c0_34 = arith.constant 0 : index
    %c0_35 = arith.constant 0 : index
    %c0_36 = arith.constant 0 : index
    %c80 = arith.constant 80 : index
    %27 = vector.load %arg3[%c0_34, %c0_35, %c0_36, %c80] : memref<1x1x2x1024xf32, #tpu.memory_space<vmem>>, vector<1x1x1x16xf32>
    %28 = vector.shape_cast %27 : vector<1x1x1x16xf32> to vector<16xf32>
    %29 = vector.shape_cast %26 : vector<16xf32> to vector<1x1x1x16xf32>
    tpu.vector_store %arg3[%c0_34, %c0_35, %c0_36, %c80], %29 {strides = array<i32>} : memref<1x1x2x1024xf32, #tpu.memory_space<vmem>>, vector<1x1x1x16xf32>,
    %c0_37 = arith.constant 0 : index
    %c0_38 = arith.constant 0 : index
    %c6 = arith.constant 6 : index
    %c0_39 = arith.constant 0 : index
    %30 = vector.load %arg2[%c0_37, %c0_38, %c6, %c0_39] : memref<1x4x16x32xf32, #tpu.memory_space<vmem>>, vector<1x1x1x16xf32>
    %31 = vector.shape_cast %30 : vector<1x1x1x16xf32> to vector<16xf32>
    %c0_40 = arith.constant 0 : index
    %c0_41 = arith.constant 0 : index
    %c0_42 = arith.constant 0 : index
    %c96 = arith.constant 96 : index
    %32 = vector.load %arg3[%c0_40, %c0_41, %c0_42, %c96] : memref<1x1x2x1024xf32, #tpu.memory_space<vmem>>, vector<1x1x1x16xf32>
    %33 = vector.shape_cast %32 : vector<1x1x1x16xf32> to vector<16xf32>
    %34 = vector.shape_cast %31 : vector<16xf32> to vector<1x1x1x16xf32>
    tpu.vector_store %arg3[%c0_40, %c0_41, %c0_42, %c96], %34 {strides = array<i32>} : memref<1x1x2x1024xf32, #tpu.memory_space<vmem>>, vector<1x1x1x16xf32>,
    %c0_43 = arith.constant 0 : index
    %c0_44 = arith.constant 0 : index
    %c7 = arith.constant 7 : index
    %c0_45 = arith.constant 0 : index
    %35 = vector.load %arg2[%c0_43, %c0_44, %c7, %c0_45] : memref<1x4x16x32xf32, #tpu.memory_space<vmem>>, vector<1x1x1x16xf32>
    %36 = vector.shape_cast %35 : vector<1x1x1x16xf32> to vector<16xf32>
    %c0_46 = arith.constant 0 : index
    %c0_47 = arith.constant 0 : index
    %c0_48 = arith.constant 0 : index
    %c112 = arith.constant 112 : index
    %37 = vector.load %arg3[%c0_46, %c0_47, %c0_48, %c112] : memref<1x1x2x1024xf32, #tpu.memory_space<vmem>>, vector<1x1x1x16xf32>
    %38 = vector.shape_cast %37 : vector<1x1x1x16xf32> to vector<16xf32>
    %39 = vector.shape_cast %36 : vector<16xf32> to vector<1x1x1x16xf32>
    tpu.vector_store %arg3[%c0_46, %c0_47, %c0_48, %c112], %39 {strides = array<i32>} : memref<1x1x2x1024xf32, #tpu.memory_space<vmem>>, vector<1x1x1x16xf32>,
    %c0_49 = arith.constant 0 : index
    %c0_50 = arith.constant 0 : index
    %c8 = arith.constant 8 : index
    %c0_51 = arith.constant 0 : index
    %40 = vector.load %arg2[%c0_49, %c0_50, %c8, %c0_51] : memref<1x4x16x32xf32, #tpu.memory_space<vmem>>, vector<1x1x1x16xf32>
    %41 = vector.shape_cast %40 : vector<1x1x1x16xf32> to vector<16xf32>
    %c0_52 = arith.constant 0 : index
    %c0_53 = arith.constant 0 : index
    %c0_54 = arith.constant 0 : index
    %c128 = arith.constant 128 : index
    %42 = vector.load %arg3[%c0_52, %c0_53, %c0_54, %c128] : memref<1x1x2x1024xf32, #tpu.memory_space<vmem>>, vector<1x1x1x16xf32>
    %43 = vector.shape_cast %42 : vector<1x1x1x16xf32> to vector<16xf32>
    %44 = vector.shape_cast %41 : vector<16xf32> to vector<1x1x1x16xf32>
    tpu.vector_store %arg3[%c0_52, %c0_53, %c0_54, %c128], %44 {strides = array<i32>} : memref<1x1x2x1024xf32, #tpu.memory_space<vmem>>, vector<1x1x1x16xf32>,
    %c0_55 = arith.constant 0 : index
    %c0_56 = arith.constant 0 : index
    %c9 = arith.constant 9 : index
    %c0_57 = arith.constant 0 : index
    %45 = vector.load %arg2[%c0_55, %c0_56, %c9, %c0_57] : memref<1x4x16x32xf32, #tpu.memory_space<vmem>>, vector<1x1x1x16xf32>
    %46 = vector.shape_cast %45 : vector<1x1x1x16xf32> to vector<16xf32>
    %c0_58 = arith.constant 0 : index
    %c0_59 = arith.constant 0 : index
    %c0_60 = arith.constant 0 : index
    %c144 = arith.constant 144 : index
    %47 = vector.load %arg3[%c0_58, %c0_59, %c0_60, %c144] : memref<1x1x2x1024xf32, #tpu.memory_space<vmem>>, vector<1x1x1x16xf32>
    %48 = vector.shape_cast %47 : vector<1x1x1x16xf32> to vector<16xf32>
    %49 = vector.shape_cast %46 : vector<16xf32> to vector<1x1x1x16xf32>
    tpu.vector_store %arg3[%c0_58, %c0_59, %c0_60, %c144], %49 {strides = array<i32>} : memref<1x1x2x1024xf32, #tpu.memory_space<vmem>>, vector<1x1x1x16xf32>,
    %c0_61 = arith.constant 0 : index
    %c0_62 = arith.constant 0 : index
    %c10 = arith.constant 10 : index
    %c0_63 = arith.constant 0 : index
    %50 = vector.load %arg2[%c0_61, %c0_62, %c10, %c0_63] : memref<1x4x16x32xf32, #tpu.memory_space<vmem>>, vector<1x1x1x16xf32>
    %51 = vector.shape_cast %50 : vector<1x1x1x16xf32> to vector<16xf32>
    %c0_64 = arith.constant 0 : index
    %c0_65 = arith.constant 0 : index
    %c0_66 = arith.constant 0 : index
    %c160 = arith.constant 160 : index
    %52 = vector.load %arg3[%c0_64, %c0_65, %c0_66, %c160] : memref<1x1x2x1024xf32, #tpu.memory_space<vmem>>, vector<1x1x1x16xf32>
    %53 = vector.shape_cast %52 : vector<1x1x1x16xf32> to vector<16xf32>
    %54 = vector.shape_cast %51 : vector<16xf32> to vector<1x1x1x16xf32>
    tpu.vector_store %arg3[%c0_64, %c0_65, %c0_66, %c160], %54 {strides = array<i32>} : memref<1x1x2x1024xf32, #tpu.memory_space<vmem>>, vector<1x1x1x16xf32>,
    %c0_67 = arith.constant 0 : index
    %c0_68 = arith.constant 0 : index
    %c11 = arith.constant 11 : index
    %c0_69 = arith.constant 0 : index
    %55 = vector.load %arg2[%c0_67, %c0_68, %c11, %c0_69] : memref<1x4x16x32xf32, #tpu.memory_space<vmem>>, vector<1x1x1x16xf32>
    %56 = vector.shape_cast %55 : vector<1x1x1x16xf32> to vector<16xf32>
    %c0_70 = arith.constant 0 : index
    %c0_71 = arith.constant 0 : index
    %c0_72 = arith.constant 0 : index
    %c176 = arith.constant 176 : index
    %57 = vector.load %arg3[%c0_70, %c0_71, %c0_72, %c176] : memref<1x1x2x1024xf32, #tpu.memory_space<vmem>>, vector<1x1x1x16xf32>
    %58 = vector.shape_cast %57 : vector<1x1x1x16xf32> to vector<16xf32>
    %59 = vector.shape_cast %56 : vector<16xf32> to vector<1x1x1x16xf32>
    tpu.vector_store %arg3[%c0_70, %c0_71, %c0_72, %c176], %59 {strides = array<i32>} : memref<1x1x2x1024xf32, #tpu.memory_space<vmem>>, vector<1x1x1x16xf32>,
    %c0_73 = arith.constant 0 : index
    %c0_74 = arith.constant 0 : index
    %c12 = arith.constant 12 : index
    %c0_75 = arith.constant 0 : index
    %60 = vector.load %arg2[%c0_73, %c0_74, %c12, %c0_75] : memref<1x4x16x32xf32, #tpu.memory_space<vmem>>, vector<1x1x1x16xf32>
    %61 = vector.shape_cast %60 : vector<1x1x1x16xf32> to vector<16xf32>
    %c0_76 = arith.constant 0 : index
    %c0_77 = arith.constant 0 : index
    %c0_78 = arith.constant 0 : index
    %c192 = arith.constant 192 : index
    %62 = vector.load %arg3[%c0_76, %c0_77, %c0_78, %c192] : memref<1x1x2x1024xf32, #tpu.memory_space<vmem>>, vector<1x1x1x16xf32>
    %63 = vector.shape_cast %62 : vector<1x1x1x16xf32> to vector<16xf32>
    %64 = vector.shape_cast %61 : vector<16xf32> to vector<1x1x1x16xf32>
    tpu.vector_store %arg3[%c0_76, %c0_77, %c0_78, %c192], %64 {strides = array<i32>} : memref<1x1x2x1024xf32, #tpu.memory_space<vmem>>, vector<1x1x1x16xf32>,
    %c0_79 = arith.constant 0 : index
    %c0_80 = arith.constant 0 : index
    %c13 = arith.constant 13 : index
    %c0_81 = arith.constant 0 : index
    %65 = vector.load %arg2[%c0_79, %c0_80, %c13, %c0_81] : memref<1x4x16x32xf32, #tpu.memory_space<vmem>>, vector<1x1x1x16xf32>
    %66 = vector.shape_cast %65 : vector<1x1x1x16xf32> to vector<16xf32>
    %c0_82 = arith.constant 0 : index
    %c0_83 = arith.constant 0 : index
    %c0_84 = arith.constant 0 : index
    %c208 = arith.constant 208 : index
    %67 = vector.load %arg3[%c0_82, %c0_83, %c0_84, %c208] : memref<1x1x2x1024xf32, #tpu.memory_space<vmem>>, vector<1x1x1x16xf32>
    %68 = vector.shape_cast %67 : vector<1x1x1x16xf32> to vector<16xf32>
    %69 = vector.shape_cast %66 : vector<16xf32> to vector<1x1x1x16xf32>
    tpu.vector_store %arg3[%c0_82, %c0_83, %c0_84, %c208], %69 {strides = array<i32>} : memref<1x1x2x1024xf32, #tpu.memory_space<vmem>>, vector<1x1x1x16xf32>,
    %c0_85 = arith.constant 0 : index
    %c0_86 = arith.constant 0 : index
    %c14 = arith.constant 14 : index
    %c0_87 = arith.constant 0 : index
    %70 = vector.load %arg2[%c0_85, %c0_86, %c14, %c0_87] : memref<1x4x16x32xf32, #tpu.memory_space<vmem>>, vector<1x1x1x16xf32>
    %71 = vector.shape_cast %70 : vector<1x1x1x16xf32> to vector<16xf32>
    %c0_88 = arith.constant 0 : index
    %c0_89 = arith.constant 0 : index
    %c0_90 = arith.constant 0 : index
    %c224 = arith.constant 224 : index
    %72 = vector.load %arg3[%c0_88, %c0_89, %c0_90, %c224] : memref<1x1x2x1024xf32, #tpu.memory_space<vmem>>, vector<1x1x1x16xf32>
    %73 = vector.shape_cast %72 : vector<1x1x1x16xf32> to vector<16xf32>
    %74 = vector.shape_cast %71 : vector<16xf32> to vector<1x1x1x16xf32>
    tpu.vector_store %arg3[%c0_88, %c0_89, %c0_90, %c224], %74 {strides = array<i32>} : memref<1x1x2x1024xf32, #tpu.memory_space<vmem>>, vector<1x1x1x16xf32>,
    %c0_91 = arith.constant 0 : index
    %c0_92 = arith.constant 0 : index
    %c15 = arith.constant 15 : index
    %c0_93 = arith.constant 0 : index
    %75 = vector.load %arg2[%c0_91, %c0_92, %c15, %c0_93] : memref<1x4x16x32xf32, #tpu.memory_space<vmem>>, vector<1x1x1x16xf32>
    %76 = vector.shape_cast %75 : vector<1x1x1x16xf32> to vector<16xf32>
    %c0_94 = arith.constant 0 : index
    %c0_95 = arith.constant 0 : index
    %c0_96 = arith.constant 0 : index
    %c240 = arith.constant 240 : index
    %77 = vector.load %arg3[%c0_94, %c0_95, %c0_96, %c240] : memref<1x1x2x1024xf32, #tpu.memory_space<vmem>>, vector<1x1x1x16xf32>
    %78 = vector.shape_cast %77 : vector<1x1x1x16xf32> to vector<16xf32>
    %79 = vector.shape_cast %76 : vector<16xf32> to vector<1x1x1x16xf32>
    tpu.vector_store %arg3[%c0_94, %c0_95, %c0_96, %c240], %79 {strides = array<i32>} : memref<1x1x2x1024xf32, #tpu.memory_space<vmem>>, vector<1x1x1x16xf32>,
    %c0_97 = arith.constant 0 : index
    %c1_98 = arith.constant 1 : index
    %c0_99 = arith.constant 0 : index
    %c0_100 = arith.constant 0 : index
    %80 = vector.load %arg2[%c0_97, %c1_98, %c0_99, %c0_100] : memref<1x4x16x32xf32, #tpu.memory_space<vmem>>, vector<1x1x1x16xf32>
    %81 = vector.shape_cast %80 : vector<1x1x1x16xf32> to vector<16xf32>
    %c0_101 = arith.constant 0 : index
    %c0_102 = arith.constant 0 : index
    %c0_103 = arith.constant 0 : index
    %c256 = arith.constant 256 : index
    %82 = vector.load %arg3[%c0_101, %c0_102, %c0_103, %c256] : memref<1x1x2x1024xf32, #tpu.memory_space<vmem>>, vector<1x1x1x16xf32>
    %83 = vector.shape_cast %82 : vector<1x1x1x16xf32> to vector<16xf32>
    %84 = vector.shape_cast %81 : vector<16xf32> to vector<1x1x1x16xf32>
    tpu.vector_store %arg3[%c0_101, %c0_102, %c0_103, %c256], %84 {strides = array<i32>} : memref<1x1x2x1024xf32, #tpu.memory_space<vmem>>, vector<1x1x1x16xf32>,
    %c0_104 = arith.constant 0 : index
    %c1_105 = arith.constant 1 : index
    %c1_106 = arith.constant 1 : index
    %c0_107 = arith.constant 0 : index
    %85 = vector.load %arg2[%c0_104, %c1_105, %c1_106, %c0_107] : memref<1x4x16x32xf32, #tpu.memory_space<vmem>>, vector<1x1x1x16xf32>
    %86 = vector.shape_cast %85 : vector<1x1x1x16xf32> to vector<16xf32>
    %c0_108 = arith.constant 0 : index
    %c0_109 = arith.constant 0 : index
    %c0_110 = arith.constant 0 : index
    %c272 = arith.constant 272 : index
    %87 = vector.load %arg3[%c0_108, %c0_109, %c0_110, %c272] : memref<1x1x2x1024xf32, #tpu.memory_space<vmem>>, vector<1x1x1x16xf32>
    %88 = vector.shape_cast %87 : vector<1x1x1x16xf32> to vector<16xf32>
    %89 = vector.shape_cast %86 : vector<16xf32> to vector<1x1x1x16xf32>
    tpu.vector_store %arg3[%c0_108, %c0_109, %c0_110, %c272], %89 {strides = array<i32>} : memref<1x1x2x1024xf32, #tpu.memory_space<vmem>>, vector<1x1x1x16xf32>,
    %c0_111 = arith.constant 0 : index
    %c1_112 = arith.constant 1 : index
    %c2_113 = arith.constant 2 : index
    %c0_114 = arith.constant 0 : index
    %90 = vector.load %arg2[%c0_111, %c1_112, %c2_113, %c0_114] : memref<1x4x16x32xf32, #tpu.memory_space<vmem>>, vector<1x1x1x16xf32>
    %91 = vector.shape_cast %90 : vector<1x1x1x16xf32> to vector<16xf32>
    %c0_115 = arith.constant 0 : index
    %c0_116 = arith.constant 0 : index
    %c0_117 = arith.constant 0 : index
    %c288 = arith.constant 288 : index
    %92 = vector.load %arg3[%c0_115, %c0_116, %c0_117, %c288] : memref<1x1x2x1024xf32, #tpu.memory_space<vmem>>, vector<1x1x1x16xf32>
    %93 = vector.shape_cast %92 : vector<1x1x1x16xf32> to vector<16xf32>
    %94 = vector.shape_cast %91 : vector<16xf32> to vector<1x1x1x16xf32>
    tpu.vector_store %arg3[%c0_115, %c0_116, %c0_117, %c288], %94 {strides = array<i32>} : memref<1x1x2x1024xf32, #tpu.memory_space<vmem>>, vector<1x1x1x16xf32>,
    %c0_118 = arith.constant 0 : index
    %c1_119 = arith.constant 1 : index
    %c3_120 = arith.constant 3 : index
    %c0_121 = arith.constant 0 : index
    %95 = vector.load %arg2[%c0_118, %c1_119, %c3_120, %c0_121] : memref<1x4x16x32xf32, #tpu.memory_space<vmem>>, vector<1x1x1x16xf32>
    %96 = vector.shape_cast %95 : vector<1x1x1x16xf32> to vector<16xf32>
    %c0_122 = arith.constant 0 : index
    %c0_123 = arith.constant 0 : index
    %c0_124 = arith.constant 0 : index
    %c304 = arith.constant 304 : index
    %97 = vector.load %arg3[%c0_122, %c0_123, %c0_124, %c304] : memref<1x1x2x1024xf32, #tpu.memory_space<vmem>>, vector<1x1x1x16xf32>
    %98 = vector.shape_cast %97 : vector<1x1x1x16xf32> to vector<16xf32>
    %99 = vector.shape_cast %96 : vector<16xf32> to vector<1x1x1x16xf32>
    tpu.vector_store %arg3[%c0_122, %c0_123, %c0_124, %c304], %99 {strides = array<i32>} : memref<1x1x2x1024xf32, #tpu.memory_space<vmem>>, vector<1x1x1x16xf32>,
    %c0_125 = arith.constant 0 : index
    %c1_126 = arith.constant 1 : index
    %c4_127 = arith.constant 4 : index
    %c0_128 = arith.constant 0 : index
    %100 = vector.load %arg2[%c0_125, %c1_126, %c4_127, %c0_128] : memref<1x4x16x32xf32, #tpu.memory_space<vmem>>, vector<1x1x1x16xf32>
    %101 = vector.shape_cast %100 : vector<1x1x1x16xf32> to vector<16xf32>
    %c0_129 = arith.constant 0 : index
    %c0_130 = arith.constant 0 : index
    %c0_131 = arith.constant 0 : index
    %c320 = arith.constant 320 : index
    %102 = vector.load %arg3[%c0_129, %c0_130, %c0_131, %c320] : memref<1x1x2x1024xf32, #tpu.memory_space<vmem>>, vector<1x1x1x16xf32>
    %103 = vector.shape_cast %102 : vector<1x1x1x16xf32> to vector<16xf32>
    %104 = vector.shape_cast %101 : vector<16xf32> to vector<1x1x1x16xf32>
    tpu.vector_store %arg3[%c0_129, %c0_130, %c0_131, %c320], %104 {strides = array<i32>} : memref<1x1x2x1024xf32, #tpu.memory_space<vmem>>, vector<1x1x1x16xf32>,
    %c0_132 = arith.constant 0 : index
    %c1_133 = arith.constant 1 : index
    %c5_134 = arith.constant 5 : index
    %c0_135 = arith.constant 0 : index
    %105 = vector.load %arg2[%c0_132, %c1_133, %c5_134, %c0_135] : memref<1x4x16x32xf32, #tpu.memory_space<vmem>>, vector<1x1x1x16xf32>
    %106 = vector.shape_cast %105 : vector<1x1x1x16xf32> to vector<16xf32>
    %c0_136 = arith.constant 0 : index
    %c0_137 = arith.constant 0 : index
    %c0_138 = arith.constant 0 : index
    %c336 = arith.constant 336 : index
    %107 = vector.load %arg3[%c0_136, %c0_137, %c0_138, %c336] : memref<1x1x2x1024xf32, #tpu.memory_space<vmem>>, vector<1x1x1x16xf32>
    %108 = vector.shape_cast %107 : vector<1x1x1x16xf32> to vector<16xf32>
    %109 = vector.shape_cast %106 : vector<16xf32> to vector<1x1x1x16xf32>
    tpu.vector_store %arg3[%c0_136, %c0_137, %c0_138, %c336], %109 {strides = array<i32>} : memref<1x1x2x1024xf32, #tpu.memory_space<vmem>>, vector<1x1x1x16xf32>,
    %c0_139 = arith.constant 0 : index
    %c1_140 = arith.constant 1 : index
    %c6_141 = arith.constant 6 : index
    %c0_142 = arith.constant 0 : index
    %110 = vector.load %arg2[%c0_139, %c1_140, %c6_141, %c0_142] : memref<1x4x16x32xf32, #tpu.memory_space<vmem>>, vector<1x1x1x16xf32>
    %111 = vector.shape_cast %110 : vector<1x1x1x16xf32> to vector<16xf32>
    %c0_143 = arith.constant 0 : index
    %c0_144 = arith.constant 0 : index
    %c0_145 = arith.constant 0 : index
    %c352 = arith.constant 352 : index
    %112 = vector.load %arg3[%c0_143, %c0_144, %c0_145, %c352] : memref<1x1x2x1024xf32, #tpu.memory_space<vmem>>, vector<1x1x1x16xf32>
    %113 = vector.shape_cast %112 : vector<1x1x1x16xf32> to vector<16xf32>
    %114 = vector.shape_cast %111 : vector<16xf32> to vector<1x1x1x16xf32>
    tpu.vector_store %arg3[%c0_143, %c0_144, %c0_145, %c352], %114 {strides = array<i32>} : memref<1x1x2x1024xf32, #tpu.memory_space<vmem>>, vector<1x1x1x16xf32>,
    %c0_146 = arith.constant 0 : index
    %c1_147 = arith.constant 1 : index
    %c7_148 = arith.constant 7 : index
    %c0_149 = arith.constant 0 : index
    %115 = vector.load %arg2[%c0_146, %c1_147, %c7_148, %c0_149] : memref<1x4x16x32xf32, #tpu.memory_space<vmem>>, vector<1x1x1x16xf32>
    %116 = vector.shape_cast %115 : vector<1x1x1x16xf32> to vector<16xf32>
    %c0_150 = arith.constant 0 : index
    %c0_151 = arith.constant 0 : index
    %c0_152 = arith.constant 0 : index
    %c368 = arith.constant 368 : index
    %117 = vector.load %arg3[%c0_150, %c0_151, %c0_152, %c368] : memref<1x1x2x1024xf32, #tpu.memory_space<vmem>>, vector<1x1x1x16xf32>
    %118 = vector.shape_cast %117 : vector<1x1x1x16xf32> to vector<16xf32>
    %119 = vector.shape_cast %116 : vector<16xf32> to vector<1x1x1x16xf32>
    tpu.vector_store %arg3[%c0_150, %c0_151, %c0_152, %c368], %119 {strides = array<i32>} : memref<1x1x2x1024xf32, #tpu.memory_space<vmem>>, vector<1x1x1x16xf32>,
    %c0_153 = arith.constant 0 : index
    %c1_154 = arith.constant 1 : index
    %c8_155 = arith.constant 8 : index
    %c0_156 = arith.constant 0 : index
    %120 = vector.load %arg2[%c0_153, %c1_154, %c8_155, %c0_156] : memref<1x4x16x32xf32, #tpu.memory_space<vmem>>, vector<1x1x1x16xf32>
    %121 = vector.shape_cast %120 : vector<1x1x1x16xf32> to vector<16xf32>
    %c0_157 = arith.constant 0 : index
    %c0_158 = arith.constant 0 : index
    %c0_159 = arith.constant 0 : index
    %c384 = arith.constant 384 : index
    %122 = vector.load %arg3[%c0_157, %c0_158, %c0_159, %c384] : memref<1x1x2x1024xf32, #tpu.memory_space<vmem>>, vector<1x1x1x16xf32>
    %123 = vector.shape_cast %122 : vector<1x1x1x16xf32> to vector<16xf32>
    %124 = vector.shape_cast %121 : vector<16xf32> to vector<1x1x1x16xf32>
    tpu.vector_store %arg3[%c0_157, %c0_158, %c0_159, %c384], %124 {strides = array<i32>} : memref<1x1x2x1024xf32, #tpu.memory_space<vmem>>, vector<1x1x1x16xf32>,
    %c0_160 = arith.constant 0 : index
    %c1_161 = arith.constant 1 : index
    %c9_162 = arith.constant 9 : index
    %c0_163 = arith.constant 0 : index
    %125 = vector.load %arg2[%c0_160, %c1_161, %c9_162, %c0_163] : memref<1x4x16x32xf32, #tpu.memory_space<vmem>>, vector<1x1x1x16xf32>
    %126 = vector.shape_cast %125 : vector<1x1x1x16xf32> to vector<16xf32>
    %c0_164 = arith.constant 0 : index
    %c0_165 = arith.constant 0 : index
    %c0_166 = arith.constant 0 : index
    %c400 = arith.constant 400 : index
    %127 = vector.load %arg3[%c0_164, %c0_165, %c0_166, %c400] : memref<1x1x2x1024xf32, #tpu.memory_space<vmem>>, vector<1x1x1x16xf32>
    %128 = vector.shape_cast %127 : vector<1x1x1x16xf32> to vector<16xf32>
    %129 = vector.shape_cast %126 : vector<16xf32> to vector<1x1x1x16xf32>
    tpu.vector_store %arg3[%c0_164, %c0_165, %c0_166, %c400], %129 {strides = array<i32>} : memref<1x1x2x1024xf32, #tpu.memory_space<vmem>>, vector<1x1x1x16xf32>,
    %c0_167 = arith.constant 0 : index
    %c1_168 = arith.constant 1 : index
    %c10_169 = arith.constant 10 : index
    %c0_170 = arith.constant 0 : index
    %130 = vector.load %arg2[%c0_167, %c1_168, %c10_169, %c0_170] : memref<1x4x16x32xf32, #tpu.memory_space<vmem>>, vector<1x1x1x16xf32>
    %131 = vector.shape_cast %130 : vector<1x1x1x16xf32> to vector<16xf32>
    %c0_171 = arith.constant 0 : index
    %c0_172 = arith.constant 0 : index
    %c0_173 = arith.constant 0 : index
    %c416 = arith.constant 416 : index
    %132 = vector.load %arg3[%c0_171, %c0_172, %c0_173, %c416] : memref<1x1x2x1024xf32, #tpu.memory_space<vmem>>, vector<1x1x1x16xf32>
    %133 = vector.shape_cast %132 : vector<1x1x1x16xf32> to vector<16xf32>
    %134 = vector.shape_cast %131 : vector<16xf32> to vector<1x1x1x16xf32>
    tpu.vector_store %arg3[%c0_171, %c0_172, %c0_173, %c416], %134 {strides = array<i32>} : memref<1x1x2x1024xf32, #tpu.memory_space<vmem>>, vector<1x1x1x16xf32>,
    %c0_174 = arith.constant 0 : index
    %c1_175 = arith.constant 1 : index
    %c11_176 = arith.constant 11 : index
    %c0_177 = arith.constant 0 : index
    %135 = vector.load %arg2[%c0_174, %c1_175, %c11_176, %c0_177] : memref<1x4x16x32xf32, #tpu.memory_space<vmem>>, vector<1x1x1x16xf32>
    %136 = vector.shape_cast %135 : vector<1x1x1x16xf32> to vector<16xf32>
    %c0_178 = arith.constant 0 : index
    %c0_179 = arith.constant 0 : index
    %c0_180 = arith.constant 0 : index
    %c432 = arith.constant 432 : index
    %137 = vector.load %arg3[%c0_178, %c0_179, %c0_180, %c432] : memref<1x1x2x1024xf32, #tpu.memory_space<vmem>>, vector<1x1x1x16xf32>
    %138 = vector.shape_cast %137 : vector<1x1x1x16xf32> to vector<16xf32>
    %139 = vector.shape_cast %136 : vector<16xf32> to vector<1x1x1x16xf32>
    tpu.vector_store %arg3[%c0_178, %c0_179, %c0_180, %c432], %139 {strides = array<i32>} : memref<1x1x2x1024xf32, #tpu.memory_space<vmem>>, vector<1x1x1x16xf32>,
    %c0_181 = arith.constant 0 : index
    %c1_182 = arith.constant 1 : index
    %c12_183 = arith.constant 12 : index
    %c0_184 = arith.constant 0 : index
    %140 = vector.load %arg2[%c0_181, %c1_182, %c12_183, %c0_184] : memref<1x4x16x32xf32, #tpu.memory_space<vmem>>, vector<1x1x1x16xf32>
    %141 = vector.shape_cast %140 : vector<1x1x1x16xf32> to vector<16xf32>
    %c0_185 = arith.constant 0 : index
    %c0_186 = arith.constant 0 : index
    %c0_187 = arith.constant 0 : index
    %c448 = arith.constant 448 : index
    %142 = vector.load %arg3[%c0_185, %c0_186, %c0_187, %c448] : memref<1x1x2x1024xf32, #tpu.memory_space<vmem>>, vector<1x1x1x16xf32>
    %143 = vector.shape_cast %142 : vector<1x1x1x16xf32> to vector<16xf32>
    %144 = vector.shape_cast %141 : vector<16xf32> to vector<1x1x1x16xf32>
    tpu.vector_store %arg3[%c0_185, %c0_186, %c0_187, %c448], %144 {strides = array<i32>} : memref<1x1x2x1024xf32, #tpu.memory_space<vmem>>, vector<1x1x1x16xf32>,
    %c0_188 = arith.constant 0 : index
    %c1_189 = arith.constant 1 : index
    %c13_190 = arith.constant 13 : index
    %c0_191 = arith.constant 0 : index
    %145 = vector.load %arg2[%c0_188, %c1_189, %c13_190, %c0_191] : memref<1x4x16x32xf32, #tpu.memory_space<vmem>>, vector<1x1x1x16xf32>
    %146 = vector.shape_cast %145 : vector<1x1x1x16xf32> to vector<16xf32>
    %c0_192 = arith.constant 0 : index
    %c0_193 = arith.constant 0 : index
    %c0_194 = arith.constant 0 : index
    %c464 = arith.constant 464 : index
    %147 = vector.load %arg3[%c0_192, %c0_193, %c0_194, %c464] : memref<1x1x2x1024xf32, #tpu.memory_space<vmem>>, vector<1x1x1x16xf32>
    %148 = vector.shape_cast %147 : vector<1x1x1x16xf32> to vector<16xf32>
    %149 = vector.shape_cast %146 : vector<16xf32> to vector<1x1x1x16xf32>
    tpu.vector_store %arg3[%c0_192, %c0_193, %c0_194, %c464], %149 {strides = array<i32>} : memref<1x1x2x1024xf32, #tpu.memory_space<vmem>>, vector<1x1x1x16xf32>,
    %c0_195 = arith.constant 0 : index
    %c1_196 = arith.constant 1 : index
    %c14_197 = arith.constant 14 : index
    %c0_198 = arith.constant 0 : index
    %150 = vector.load %arg2[%c0_195, %c1_196, %c14_197, %c0_198] : memref<1x4x16x32xf32, #tpu.memory_space<vmem>>, vector<1x1x1x16xf32>
    %151 = vector.shape_cast %150 : vector<1x1x1x16xf32> to vector<16xf32>
    %c0_199 = arith.constant 0 : index
    %c0_200 = arith.constant 0 : index
    %c0_201 = arith.constant 0 : index
    %c480 = arith.constant 480 : index
    %152 = vector.load %arg3[%c0_199, %c0_200, %c0_201, %c480] : memref<1x1x2x1024xf32, #tpu.memory_space<vmem>>, vector<1x1x1x16xf32>
    %153 = vector.shape_cast %152 : vector<1x1x1x16xf32> to vector<16xf32>
    %154 = vector.shape_cast %151 : vector<16xf32> to vector<1x1x1x16xf32>
    tpu.vector_store %arg3[%c0_199, %c0_200, %c0_201, %c480], %154 {strides = array<i32>} : memref<1x1x2x1024xf32, #tpu.memory_space<vmem>>, vector<1x1x1x16xf32>,
    %c0_202 = arith.constant 0 : index
    %c1_203 = arith.constant 1 : index
    %c15_204 = arith.constant 15 : index
    %c0_205 = arith.constant 0 : index
    %155 = vector.load %arg2[%c0_202, %c1_203, %c15_204, %c0_205] : memref<1x4x16x32xf32, #tpu.memory_space<vmem>>, vector<1x1x1x16xf32>
    %156 = vector.shape_cast %155 : vector<1x1x1x16xf32> to vector<16xf32>
    %c0_206 = arith.constant 0 : index
    %c0_207 = arith.constant 0 : index
    %c0_208 = arith.constant 0 : index
    %c496 = arith.constant 496 : index
    %157 = vector.load %arg3[%c0_206, %c0_207, %c0_208, %c496] : memref<1x1x2x1024xf32, #tpu.memory_space<vmem>>, vector<1x1x1x16xf32>
    %158 = vector.shape_cast %157 : vector<1x1x1x16xf32> to vector<16xf32>
    %159 = vector.shape_cast %156 : vector<16xf32> to vector<1x1x1x16xf32>
    tpu.vector_store %arg3[%c0_206, %c0_207, %c0_208, %c496], %159 {strides = array<i32>} : memref<1x1x2x1024xf32, #tpu.memory_space<vmem>>, vector<1x1x1x16xf32>,
    %c0_209 = arith.constant 0 : index
    %c2_210 = arith.constant 2 : index
    %c0_211 = arith.constant 0 : index
    %c0_212 = arith.constant 0 : index
    %160 = vector.load %arg2[%c0_209, %c2_210, %c0_211, %c0_212] : memref<1x4x16x32xf32, #tpu.memory_space<vmem>>, vector<1x1x1x16xf32>
    %161 = vector.shape_cast %160 : vector<1x1x1x16xf32> to vector<16xf32>
    %c0_213 = arith.constant 0 : index
    %c0_214 = arith.constant 0 : index
    %c0_215 = arith.constant 0 : index
    %c512 = arith.constant 512 : index
    %162 = vector.load %arg3[%c0_213, %c0_214, %c0_215, %c512] : memref<1x1x2x1024xf32, #tpu.memory_space<vmem>>, vector<1x1x1x16xf32>
    %163 = vector.shape_cast %162 : vector<1x1x1x16xf32> to vector<16xf32>
    %164 = vector.shape_cast %161 : vector<16xf32> to vector<1x1x1x16xf32>
    tpu.vector_store %arg3[%c0_213, %c0_214, %c0_215, %c512], %164 {strides = array<i32>} : memref<1x1x2x1024xf32, #tpu.memory_space<vmem>>, vector<1x1x1x16xf32>,
    %c0_216 = arith.constant 0 : index
    %c2_217 = arith.constant 2 : index
    %c1_218 = arith.constant 1 : index
    %c0_219 = arith.constant 0 : index
    %165 = vector.load %arg2[%c0_216, %c2_217, %c1_218, %c0_219] : memref<1x4x16x32xf32, #tpu.memory_space<vmem>>, vector<1x1x1x16xf32>
    %166 = vector.shape_cast %165 : vector<1x1x1x16xf32> to vector<16xf32>
    %c0_220 = arith.constant 0 : index
    %c0_221 = arith.constant 0 : index
    %c0_222 = arith.constant 0 : index
    %c528 = arith.constant 528 : index
    %167 = vector.load %arg3[%c0_220, %c0_221, %c0_222, %c528] : memref<1x1x2x1024xf32, #tpu.memory_space<vmem>>, vector<1x1x1x16xf32>
    %168 = vector.shape_cast %167 : vector<1x1x1x16xf32> to vector<16xf32>
    %169 = vector.shape_cast %166 : vector<16xf32> to vector<1x1x1x16xf32>
    tpu.vector_store %arg3[%c0_220, %c0_221, %c0_222, %c528], %169 {strides = array<i32>} : memref<1x1x2x1024xf32, #tpu.memory_space<vmem>>, vector<1x1x1x16xf32>,
    %c0_223 = arith.constant 0 : index
    %c2_224 = arith.constant 2 : index
    %c2_225 = arith.constant 2 : index
    %c0_226 = arith.constant 0 : index
    %170 = vector.load %arg2[%c0_223, %c2_224, %c2_225, %c0_226] : memref<1x4x16x32xf32, #tpu.memory_space<vmem>>, vector<1x1x1x16xf32>
    %171 = vector.shape_cast %170 : vector<1x1x1x16xf32> to vector<16xf32>
    %c0_227 = arith.constant 0 : index
    %c0_228 = arith.constant 0 : index
    %c0_229 = arith.constant 0 : index
    %c544 = arith.constant 544 : index
    %172 = vector.load %arg3[%c0_227, %c0_228, %c0_229, %c544] : memref<1x1x2x1024xf32, #tpu.memory_space<vmem>>, vector<1x1x1x16xf32>
    %173 = vector.shape_cast %172 : vector<1x1x1x16xf32> to vector<16xf32>
    %174 = vector.shape_cast %171 : vector<16xf32> to vector<1x1x1x16xf32>
    tpu.vector_store %arg3[%c0_227, %c0_228, %c0_229, %c544], %174 {strides = array<i32>} : memref<1x1x2x1024xf32, #tpu.memory_space<vmem>>, vector<1x1x1x16xf32>,
    %c0_230 = arith.constant 0 : index
    %c2_231 = arith.constant 2 : index
    %c3_232 = arith.constant 3 : index
    %c0_233 = arith.constant 0 : index
    %175 = vector.load %arg2[%c0_230, %c2_231, %c3_232, %c0_233] : memref<1x4x16x32xf32, #tpu.memory_space<vmem>>, vector<1x1x1x16xf32>
    %176 = vector.shape_cast %175 : vector<1x1x1x16xf32> to vector<16xf32>
    %c0_234 = arith.constant 0 : index
    %c0_235 = arith.constant 0 : index
    %c0_236 = arith.constant 0 : index
    %c560 = arith.constant 560 : index
    %177 = vector.load %arg3[%c0_234, %c0_235, %c0_236, %c560] : memref<1x1x2x1024xf32, #tpu.memory_space<vmem>>, vector<1x1x1x16xf32>
    %178 = vector.shape_cast %177 : vector<1x1x1x16xf32> to vector<16xf32>
    %179 = vector.shape_cast %176 : vector<16xf32> to vector<1x1x1x16xf32>
    tpu.vector_store %arg3[%c0_234, %c0_235, %c0_236, %c560], %179 {strides = array<i32>} : memref<1x1x2x1024xf32, #tpu.memory_space<vmem>>, vector<1x1x1x16xf32>,
    %c0_237 = arith.constant 0 : index
    %c2_238 = arith.constant 2 : index
    %c4_239 = arith.constant 4 : index
    %c0_240 = arith.constant 0 : index
    %180 = vector.load %arg2[%c0_237, %c2_238, %c4_239, %c0_240] : memref<1x4x16x32xf32, #tpu.memory_space<vmem>>, vector<1x1x1x16xf32>
    %181 = vector.shape_cast %180 : vector<1x1x1x16xf32> to vector<16xf32>
    %c0_241 = arith.constant 0 : index
    %c0_242 = arith.constant 0 : index
    %c0_243 = arith.constant 0 : index
    %c576 = arith.constant 576 : index
    %182 = vector.load %arg3[%c0_241, %c0_242, %c0_243, %c576] : memref<1x1x2x1024xf32, #tpu.memory_space<vmem>>, vector<1x1x1x16xf32>
    %183 = vector.shape_cast %182 : vector<1x1x1x16xf32> to vector<16xf32>
    %184 = vector.shape_cast %181 : vector<16xf32> to vector<1x1x1x16xf32>
    tpu.vector_store %arg3[%c0_241, %c0_242, %c0_243, %c576], %184 {strides = array<i32>} : memref<1x1x2x1024xf32, #tpu.memory_space<vmem>>, vector<1x1x1x16xf32>,
    %c0_244 = arith.constant 0 : index
    %c2_245 = arith.constant 2 : index
    %c5_246 = arith.constant 5 : index
    %c0_247 = arith.constant 0 : index
    %185 = vector.load %arg2[%c0_244, %c2_245, %c5_246, %c0_247] : memref<1x4x16x32xf32, #tpu.memory_space<vmem>>, vector<1x1x1x16xf32>
    %186 = vector.shape_cast %185 : vector<1x1x1x16xf32> to vector<16xf32>
    %c0_248 = arith.constant 0 : index
    %c0_249 = arith.constant 0 : index
    %c0_250 = arith.constant 0 : index
    %c592 = arith.constant 592 : index
    %187 = vector.load %arg3[%c0_248, %c0_249, %c0_250, %c592] : memref<1x1x2x1024xf32, #tpu.memory_space<vmem>>, vector<1x1x1x16xf32>
    %188 = vector.shape_cast %187 : vector<1x1x1x16xf32> to vector<16xf32>
    %189 = vector.shape_cast %186 : vector<16xf32> to vector<1x1x1x16xf32>
    tpu.vector_store %arg3[%c0_248, %c0_249, %c0_250, %c592], %189 {strides = array<i32>} : memref<1x1x2x1024xf32, #tpu.memory_space<vmem>>, vector<1x1x1x16xf32>,
    %c0_251 = arith.constant 0 : index
    %c2_252 = arith.constant 2 : index
    %c6_253 = arith.constant 6 : index
    %c0_254 = arith.constant 0 : index
    %190 = vector.load %arg2[%c0_251, %c2_252, %c6_253, %c0_254] : memref<1x4x16x32xf32, #tpu.memory_space<vmem>>, vector<1x1x1x16xf32>
    %191 = vector.shape_cast %190 : vector<1x1x1x16xf32> to vector<16xf32>
    %c0_255 = arith.constant 0 : index
    %c0_256 = arith.constant 0 : index
    %c0_257 = arith.constant 0 : index
    %c608 = arith.constant 608 : index
    %192 = vector.load %arg3[%c0_255, %c0_256, %c0_257, %c608] : memref<1x1x2x1024xf32, #tpu.memory_space<vmem>>, vector<1x1x1x16xf32>
    %193 = vector.shape_cast %192 : vector<1x1x1x16xf32> to vector<16xf32>
    %194 = vector.shape_cast %191 : vector<16xf32> to vector<1x1x1x16xf32>
    tpu.vector_store %arg3[%c0_255, %c0_256, %c0_257, %c608], %194 {strides = array<i32>} : memref<1x1x2x1024xf32, #tpu.memory_space<vmem>>, vector<1x1x1x16xf32>,
    %c0_258 = arith.constant 0 : index
    %c2_259 = arith.constant 2 : index
    %c7_260 = arith.constant 7 : index
    %c0_261 = arith.constant 0 : index
    %195 = vector.load %arg2[%c0_258, %c2_259, %c7_260, %c0_261] : memref<1x4x16x32xf32, #tpu.memory_space<vmem>>, vector<1x1x1x16xf32>
    %196 = vector.shape_cast %195 : vector<1x1x1x16xf32> to vector<16xf32>
    %c0_262 = arith.constant 0 : index
    %c0_263 = arith.constant 0 : index
    %c0_264 = arith.constant 0 : index
    %c624 = arith.constant 624 : index
    %197 = vector.load %arg3[%c0_262, %c0_263, %c0_264, %c624] : memref<1x1x2x1024xf32, #tpu.memory_space<vmem>>, vector<1x1x1x16xf32>
    %198 = vector.shape_cast %197 : vector<1x1x1x16xf32> to vector<16xf32>
    %199 = vector.shape_cast %196 : vector<16xf32> to vector<1x1x1x16xf32>
    tpu.vector_store %arg3[%c0_262, %c0_263, %c0_264, %c624], %199 {strides = array<i32>} : memref<1x1x2x1024xf32, #tpu.memory_space<vmem>>, vector<1x1x1x16xf32>,
    %c0_265 = arith.constant 0 : index
    %c2_266 = arith.constant 2 : index
    %c8_267 = arith.constant 8 : index
    %c0_268 = arith.constant 0 : index
    %200 = vector.load %arg2[%c0_265, %c2_266, %c8_267, %c0_268] : memref<1x4x16x32xf32, #tpu.memory_space<vmem>>, vector<1x1x1x16xf32>
    %201 = vector.shape_cast %200 : vector<1x1x1x16xf32> to vector<16xf32>
    %c0_269 = arith.constant 0 : index
    %c0_270 = arith.constant 0 : index
    %c0_271 = arith.constant 0 : index
    %c640 = arith.constant 640 : index
    %202 = vector.load %arg3[%c0_269, %c0_270, %c0_271, %c640] : memref<1x1x2x1024xf32, #tpu.memory_space<vmem>>, vector<1x1x1x16xf32>
    %203 = vector.shape_cast %202 : vector<1x1x1x16xf32> to vector<16xf32>
    %204 = vector.shape_cast %201 : vector<16xf32> to vector<1x1x1x16xf32>
    tpu.vector_store %arg3[%c0_269, %c0_270, %c0_271, %c640], %204 {strides = array<i32>} : memref<1x1x2x1024xf32, #tpu.memory_space<vmem>>, vector<1x1x1x16xf32>,
    %c0_272 = arith.constant 0 : index
    %c2_273 = arith.constant 2 : index
    %c9_274 = arith.constant 9 : index
    %c0_275 = arith.constant 0 : index
    %205 = vector.load %arg2[%c0_272, %c2_273, %c9_274, %c0_275] : memref<1x4x16x32xf32, #tpu.memory_space<vmem>>, vector<1x1x1x16xf32>
    %206 = vector.shape_cast %205 : vector<1x1x1x16xf32> to vector<16xf32>
    %c0_276 = arith.constant 0 : index
    %c0_277 = arith.constant 0 : index
    %c0_278 = arith.constant 0 : index
    %c656 = arith.constant 656 : index
    %207 = vector.load %arg3[%c0_276, %c0_277, %c0_278, %c656] : memref<1x1x2x1024xf32, #tpu.memory_space<vmem>>, vector<1x1x1x16xf32>
    %208 = vector.shape_cast %207 : vector<1x1x1x16xf32> to vector<16xf32>
    %209 = vector.shape_cast %206 : vector<16xf32> to vector<1x1x1x16xf32>
    tpu.vector_store %arg3[%c0_276, %c0_277, %c0_278, %c656], %209 {strides = array<i32>} : memref<1x1x2x1024xf32, #tpu.memory_space<vmem>>, vector<1x1x1x16xf32>,
    %c0_279 = arith.constant 0 : index
    %c2_280 = arith.constant 2 : index
    %c10_281 = arith.constant 10 : index
    %c0_282 = arith.constant 0 : index
    %210 = vector.load %arg2[%c0_279, %c2_280, %c10_281, %c0_282] : memref<1x4x16x32xf32, #tpu.memory_space<vmem>>, vector<1x1x1x16xf32>
    %211 = vector.shape_cast %210 : vector<1x1x1x16xf32> to vector<16xf32>
    %c0_283 = arith.constant 0 : index
    %c0_284 = arith.constant 0 : index
    %c0_285 = arith.constant 0 : index
    %c672 = arith.constant 672 : index
    %212 = vector.load %arg3[%c0_283, %c0_284, %c0_285, %c672] : memref<1x1x2x1024xf32, #tpu.memory_space<vmem>>, vector<1x1x1x16xf32>
    %213 = vector.shape_cast %212 : vector<1x1x1x16xf32> to vector<16xf32>
    %214 = vector.shape_cast %211 : vector<16xf32> to vector<1x1x1x16xf32>
    tpu.vector_store %arg3[%c0_283, %c0_284, %c0_285, %c672], %214 {strides = array<i32>} : memref<1x1x2x1024xf32, #tpu.memory_space<vmem>>, vector<1x1x1x16xf32>,
    %c0_286 = arith.constant 0 : index
    %c2_287 = arith.constant 2 : index
    %c11_288 = arith.constant 11 : index
    %c0_289 = arith.constant 0 : index
    %215 = vector.load %arg2[%c0_286, %c2_287, %c11_288, %c0_289] : memref<1x4x16x32xf32, #tpu.memory_space<vmem>>, vector<1x1x1x16xf32>
    %216 = vector.shape_cast %215 : vector<1x1x1x16xf32> to vector<16xf32>
    %c0_290 = arith.constant 0 : index
    %c0_291 = arith.constant 0 : index
    %c0_292 = arith.constant 0 : index
    %c688 = arith.constant 688 : index
    %217 = vector.load %arg3[%c0_290, %c0_291, %c0_292, %c688] : memref<1x1x2x1024xf32, #tpu.memory_space<vmem>>, vector<1x1x1x16xf32>
    %218 = vector.shape_cast %217 : vector<1x1x1x16xf32> to vector<16xf32>
    %219 = vector.shape_cast %216 : vector<16xf32> to vector<1x1x1x16xf32>
    tpu.vector_store %arg3[%c0_290, %c0_291, %c0_292, %c688], %219 {strides = array<i32>} : memref<1x1x2x1024xf32, #tpu.memory_space<vmem>>, vector<1x1x1x16xf32>,
    %c0_293 = arith.constant 0 : index
    %c2_294 = arith.constant 2 : index
    %c12_295 = arith.constant 12 : index
    %c0_296 = arith.constant 0 : index
    %220 = vector.load %arg2[%c0_293, %c2_294, %c12_295, %c0_296] : memref<1x4x16x32xf32, #tpu.memory_space<vmem>>, vector<1x1x1x16xf32>
    %221 = vector.shape_cast %220 : vector<1x1x1x16xf32> to vector<16xf32>
    %c0_297 = arith.constant 0 : index
    %c0_298 = arith.constant 0 : index
    %c0_299 = arith.constant 0 : index
    %c704 = arith.constant 704 : index
    %222 = vector.load %arg3[%c0_297, %c0_298, %c0_299, %c704] : memref<1x1x2x1024xf32, #tpu.memory_space<vmem>>, vector<1x1x1x16xf32>
    %223 = vector.shape_cast %222 : vector<1x1x1x16xf32> to vector<16xf32>
    %224 = vector.shape_cast %221 : vector<16xf32> to vector<1x1x1x16xf32>
    tpu.vector_store %arg3[%c0_297, %c0_298, %c0_299, %c704], %224 {strides = array<i32>} : memref<1x1x2x1024xf32, #tpu.memory_space<vmem>>, vector<1x1x1x16xf32>,
    %c0_300 = arith.constant 0 : index
    %c2_301 = arith.constant 2 : index
    %c13_302 = arith.constant 13 : index
    %c0_303 = arith.constant 0 : index
    %225 = vector.load %arg2[%c0_300, %c2_301, %c13_302, %c0_303] : memref<1x4x16x32xf32, #tpu.memory_space<vmem>>, vector<1x1x1x16xf32>
    %226 = vector.shape_cast %225 : vector<1x1x1x16xf32> to vector<16xf32>
    %c0_304 = arith.constant 0 : index
    %c0_305 = arith.constant 0 : index
    %c0_306 = arith.constant 0 : index
    %c720 = arith.constant 720 : index
    %227 = vector.load %arg3[%c0_304, %c0_305, %c0_306, %c720] : memref<1x1x2x1024xf32, #tpu.memory_space<vmem>>, vector<1x1x1x16xf32>
    %228 = vector.shape_cast %227 : vector<1x1x1x16xf32> to vector<16xf32>
    %229 = vector.shape_cast %226 : vector<16xf32> to vector<1x1x1x16xf32>
    tpu.vector_store %arg3[%c0_304, %c0_305, %c0_306, %c720], %229 {strides = array<i32>} : memref<1x1x2x1024xf32, #tpu.memory_space<vmem>>, vector<1x1x1x16xf32>,
    %c0_307 = arith.constant 0 : index
    %c2_308 = arith.constant 2 : index
    %c14_309 = arith.constant 14 : index
    %c0_310 = arith.constant 0 : index
    %230 = vector.load %arg2[%c0_307, %c2_308, %c14_309, %c0_310] : memref<1x4x16x32xf32, #tpu.memory_space<vmem>>, vector<1x1x1x16xf32>
    %231 = vector.shape_cast %230 : vector<1x1x1x16xf32> to vector<16xf32>
    %c0_311 = arith.constant 0 : index
    %c0_312 = arith.constant 0 : index
    %c0_313 = arith.constant 0 : index
    %c736 = arith.constant 736 : index
    %232 = vector.load %arg3[%c0_311, %c0_312, %c0_313, %c736] : memref<1x1x2x1024xf32, #tpu.memory_space<vmem>>, vector<1x1x1x16xf32>
    %233 = vector.shape_cast %232 : vector<1x1x1x16xf32> to vector<16xf32>
    %234 = vector.shape_cast %231 : vector<16xf32> to vector<1x1x1x16xf32>
    tpu.vector_store %arg3[%c0_311, %c0_312, %c0_313, %c736], %234 {strides = array<i32>} : memref<1x1x2x1024xf32, #tpu.memory_space<vmem>>, vector<1x1x1x16xf32>,
    %c0_314 = arith.constant 0 : index
    %c2_315 = arith.constant 2 : index
    %c15_316 = arith.constant 15 : index
    %c0_317 = arith.constant 0 : index
    %235 = vector.load %arg2[%c0_314, %c2_315, %c15_316, %c0_317] : memref<1x4x16x32xf32, #tpu.memory_space<vmem>>, vector<1x1x1x16xf32>
    %236 = vector.shape_cast %235 : vector<1x1x1x16xf32> to vector<16xf32>
    %c0_318 = arith.constant 0 : index
    %c0_319 = arith.constant 0 : index
    %c0_320 = arith.constant 0 : index
    %c752 = arith.constant 752 : index
    %237 = vector.load %arg3[%c0_318, %c0_319, %c0_320, %c752] : memref<1x1x2x1024xf32, #tpu.memory_space<vmem>>, vector<1x1x1x16xf32>
    %238 = vector.shape_cast %237 : vector<1x1x1x16xf32> to vector<16xf32>
    %239 = vector.shape_cast %236 : vector<16xf32> to vector<1x1x1x16xf32>
    tpu.vector_store %arg3[%c0_318, %c0_319, %c0_320, %c752], %239 {strides = array<i32>} : memref<1x1x2x1024xf32, #tpu.memory_space<vmem>>, vector<1x1x1x16xf32>,
    %c0_321 = arith.constant 0 : index
    %c3_322 = arith.constant 3 : index
    %c0_323 = arith.constant 0 : index
    %c0_324 = arith.constant 0 : index
    %240 = vector.load %arg2[%c0_321, %c3_322, %c0_323, %c0_324] : memref<1x4x16x32xf32, #tpu.memory_space<vmem>>, vector<1x1x1x16xf32>
    %241 = vector.shape_cast %240 : vector<1x1x1x16xf32> to vector<16xf32>
    %c0_325 = arith.constant 0 : index
    %c0_326 = arith.constant 0 : index
    %c0_327 = arith.constant 0 : index
    %c768 = arith.constant 768 : index
    %242 = vector.load %arg3[%c0_325, %c0_326, %c0_327, %c768] : memref<1x1x2x1024xf32, #tpu.memory_space<vmem>>, vector<1x1x1x16xf32>
    %243 = vector.shape_cast %242 : vector<1x1x1x16xf32> to vector<16xf32>
    %244 = vector.shape_cast %241 : vector<16xf32> to vector<1x1x1x16xf32>
    tpu.vector_store %arg3[%c0_325, %c0_326, %c0_327, %c768], %244 {strides = array<i32>} : memref<1x1x2x1024xf32, #tpu.memory_space<vmem>>, vector<1x1x1x16xf32>,
    %c0_328 = arith.constant 0 : index
    %c3_329 = arith.constant 3 : index
    %c1_330 = arith.constant 1 : index
    %c0_331 = arith.constant 0 : index
    %245 = vector.load %arg2[%c0_328, %c3_329, %c1_330, %c0_331] : memref<1x4x16x32xf32, #tpu.memory_space<vmem>>, vector<1x1x1x16xf32>
    %246 = vector.shape_cast %245 : vector<1x1x1x16xf32> to vector<16xf32>
    %c0_332 = arith.constant 0 : index
    %c0_333 = arith.constant 0 : index
    %c0_334 = arith.constant 0 : index
    %c784 = arith.constant 784 : index
    %247 = vector.load %arg3[%c0_332, %c0_333, %c0_334, %c784] : memref<1x1x2x1024xf32, #tpu.memory_space<vmem>>, vector<1x1x1x16xf32>
    %248 = vector.shape_cast %247 : vector<1x1x1x16xf32> to vector<16xf32>
    %249 = vector.shape_cast %246 : vector<16xf32> to vector<1x1x1x16xf32>
    tpu.vector_store %arg3[%c0_332, %c0_333, %c0_334, %c784], %249 {strides = array<i32>} : memref<1x1x2x1024xf32, #tpu.memory_space<vmem>>, vector<1x1x1x16xf32>,
    %c0_335 = arith.constant 0 : index
    %c3_336 = arith.constant 3 : index
    %c2_337 = arith.constant 2 : index
    %c0_338 = arith.constant 0 : index
    %250 = vector.load %arg2[%c0_335, %c3_336, %c2_337, %c0_338] : memref<1x4x16x32xf32, #tpu.memory_space<vmem>>, vector<1x1x1x16xf32>
    %251 = vector.shape_cast %250 : vector<1x1x1x16xf32> to vector<16xf32>
    %c0_339 = arith.constant 0 : index
    %c0_340 = arith.constant 0 : index
    %c0_341 = arith.constant 0 : index
    %c800 = arith.constant 800 : index
    %252 = vector.load %arg3[%c0_339, %c0_340, %c0_341, %c800] : memref<1x1x2x1024xf32, #tpu.memory_space<vmem>>, vector<1x1x1x16xf32>
    %253 = vector.shape_cast %252 : vector<1x1x1x16xf32> to vector<16xf32>
    %254 = vector.shape_cast %251 : vector<16xf32> to vector<1x1x1x16xf32>
    tpu.vector_store %arg3[%c0_339, %c0_340, %c0_341, %c800], %254 {strides = array<i32>} : memref<1x1x2x1024xf32, #tpu.memory_space<vmem>>, vector<1x1x1x16xf32>,
    %c0_342 = arith.constant 0 : index
    %c3_343 = arith.constant 3 : index
    %c3_344 = arith.constant 3 : index
    %c0_345 = arith.constant 0 : index
    %255 = vector.load %arg2[%c0_342, %c3_343, %c3_344, %c0_345] : memref<1x4x16x32xf32, #tpu.memory_space<vmem>>, vector<1x1x1x16xf32>
    %256 = vector.shape_cast %255 : vector<1x1x1x16xf32> to vector<16xf32>
    %c0_346 = arith.constant 0 : index
    %c0_347 = arith.constant 0 : index
    %c0_348 = arith.constant 0 : index
    %c816 = arith.constant 816 : index
    %257 = vector.load %arg3[%c0_346, %c0_347, %c0_348, %c816] : memref<1x1x2x1024xf32, #tpu.memory_space<vmem>>, vector<1x1x1x16xf32>
    %258 = vector.shape_cast %257 : vector<1x1x1x16xf32> to vector<16xf32>
    %259 = vector.shape_cast %256 : vector<16xf32> to vector<1x1x1x16xf32>
    tpu.vector_store %arg3[%c0_346, %c0_347, %c0_348, %c816], %259 {strides = array<i32>} : memref<1x1x2x1024xf32, #tpu.memory_space<vmem>>, vector<1x1x1x16xf32>,
    %c0_349 = arith.constant 0 : index
    %c3_350 = arith.constant 3 : index
    %c4_351 = arith.constant 4 : index
    %c0_352 = arith.constant 0 : index
    %260 = vector.load %arg2[%c0_349, %c3_350, %c4_351, %c0_352] : memref<1x4x16x32xf32, #tpu.memory_space<vmem>>, vector<1x1x1x16xf32>
    %261 = vector.shape_cast %260 : vector<1x1x1x16xf32> to vector<16xf32>
    %c0_353 = arith.constant 0 : index
    %c0_354 = arith.constant 0 : index
    %c0_355 = arith.constant 0 : index
    %c832 = arith.constant 832 : index
    %262 = vector.load %arg3[%c0_353, %c0_354, %c0_355, %c832] : memref<1x1x2x1024xf32, #tpu.memory_space<vmem>>, vector<1x1x1x16xf32>
    %263 = vector.shape_cast %262 : vector<1x1x1x16xf32> to vector<16xf32>
    %264 = vector.shape_cast %261 : vector<16xf32> to vector<1x1x1x16xf32>
    tpu.vector_store %arg3[%c0_353, %c0_354, %c0_355, %c832], %264 {strides = array<i32>} : memref<1x1x2x1024xf32, #tpu.memory_space<vmem>>, vector<1x1x1x16xf32>,
    %c0_356 = arith.constant 0 : index
    %c3_357 = arith.constant 3 : index
    %c5_358 = arith.constant 5 : index
    %c0_359 = arith.constant 0 : index
    %265 = vector.load %arg2[%c0_356, %c3_357, %c5_358, %c0_359] : memref<1x4x16x32xf32, #tpu.memory_space<vmem>>, vector<1x1x1x16xf32>
    %266 = vector.shape_cast %265 : vector<1x1x1x16xf32> to vector<16xf32>
    %c0_360 = arith.constant 0 : index
    %c0_361 = arith.constant 0 : index
    %c0_362 = arith.constant 0 : index
    %c848 = arith.constant 848 : index
    %267 = vector.load %arg3[%c0_360, %c0_361, %c0_362, %c848] : memref<1x1x2x1024xf32, #tpu.memory_space<vmem>>, vector<1x1x1x16xf32>
    %268 = vector.shape_cast %267 : vector<1x1x1x16xf32> to vector<16xf32>
    %269 = vector.shape_cast %266 : vector<16xf32> to vector<1x1x1x16xf32>
    tpu.vector_store %arg3[%c0_360, %c0_361, %c0_362, %c848], %269 {strides = array<i32>} : memref<1x1x2x1024xf32, #tpu.memory_space<vmem>>, vector<1x1x1x16xf32>,
    %c0_363 = arith.constant 0 : index
    %c3_364 = arith.constant 3 : index
    %c6_365 = arith.constant 6 : index
    %c0_366 = arith.constant 0 : index
    %270 = vector.load %arg2[%c0_363, %c3_364, %c6_365, %c0_366] : memref<1x4x16x32xf32, #tpu.memory_space<vmem>>, vector<1x1x1x16xf32>
    %271 = vector.shape_cast %270 : vector<1x1x1x16xf32> to vector<16xf32>
    %c0_367 = arith.constant 0 : index
    %c0_368 = arith.constant 0 : index
    %c0_369 = arith.constant 0 : index
    %c864 = arith.constant 864 : index
    %272 = vector.load %arg3[%c0_367, %c0_368, %c0_369, %c864] : memref<1x1x2x1024xf32, #tpu.memory_space<vmem>>, vector<1x1x1x16xf32>
    %273 = vector.shape_cast %272 : vector<1x1x1x16xf32> to vector<16xf32>
    %274 = vector.shape_cast %271 : vector<16xf32> to vector<1x1x1x16xf32>
    tpu.vector_store %arg3[%c0_367, %c0_368, %c0_369, %c864], %274 {strides = array<i32>} : memref<1x1x2x1024xf32, #tpu.memory_space<vmem>>, vector<1x1x1x16xf32>,
    %c0_370 = arith.constant 0 : index
    %c3_371 = arith.constant 3 : index
    %c7_372 = arith.constant 7 : index
    %c0_373 = arith.constant 0 : index
    %275 = vector.load %arg2[%c0_370, %c3_371, %c7_372, %c0_373] : memref<1x4x16x32xf32, #tpu.memory_space<vmem>>, vector<1x1x1x16xf32>
    %276 = vector.shape_cast %275 : vector<1x1x1x16xf32> to vector<16xf32>
    %c0_374 = arith.constant 0 : index
    %c0_375 = arith.constant 0 : index
    %c0_376 = arith.constant 0 : index
    %c880 = arith.constant 880 : index
    %277 = vector.load %arg3[%c0_374, %c0_375, %c0_376, %c880] : memref<1x1x2x1024xf32, #tpu.memory_space<vmem>>, vector<1x1x1x16xf32>
    %278 = vector.shape_cast %277 : vector<1x1x1x16xf32> to vector<16xf32>
    %279 = vector.shape_cast %276 : vector<16xf32> to vector<1x1x1x16xf32>
    tpu.vector_store %arg3[%c0_374, %c0_375, %c0_376, %c880], %279 {strides = array<i32>} : memref<1x1x2x1024xf32, #tpu.memory_space<vmem>>, vector<1x1x1x16xf32>,
    %c0_377 = arith.constant 0 : index
    %c3_378 = arith.constant 3 : index
    %c8_379 = arith.constant 8 : index
    %c0_380 = arith.constant 0 : index
    %280 = vector.load %arg2[%c0_377, %c3_378, %c8_379, %c0_380] : memref<1x4x16x32xf32, #tpu.memory_space<vmem>>, vector<1x1x1x16xf32>
    %281 = vector.shape_cast %280 : vector<1x1x1x16xf32> to vector<16xf32>
    %c0_381 = arith.constant 0 : index
    %c0_382 = arith.constant 0 : index
    %c0_383 = arith.constant 0 : index
    %c896 = arith.constant 896 : index
    %282 = vector.load %arg3[%c0_381, %c0_382, %c0_383, %c896] : memref<1x1x2x1024xf32, #tpu.memory_space<vmem>>, vector<1x1x1x16xf32>
    %283 = vector.shape_cast %282 : vector<1x1x1x16xf32> to vector<16xf32>
    %284 = vector.shape_cast %281 : vector<16xf32> to vector<1x1x1x16xf32>
    tpu.vector_store %arg3[%c0_381, %c0_382, %c0_383, %c896], %284 {strides = array<i32>} : memref<1x1x2x1024xf32, #tpu.memory_space<vmem>>, vector<1x1x1x16xf32>,
    %c0_384 = arith.constant 0 : index
    %c3_385 = arith.constant 3 : index
    %c9_386 = arith.constant 9 : index
    %c0_387 = arith.constant 0 : index
    %285 = vector.load %arg2[%c0_384, %c3_385, %c9_386, %c0_387] : memref<1x4x16x32xf32, #tpu.memory_space<vmem>>, vector<1x1x1x16xf32>
    %286 = vector.shape_cast %285 : vector<1x1x1x16xf32> to vector<16xf32>
    %c0_388 = arith.constant 0 : index
    %c0_389 = arith.constant 0 : index
    %c0_390 = arith.constant 0 : index
    %c912 = arith.constant 912 : index
    %287 = vector.load %arg3[%c0_388, %c0_389, %c0_390, %c912] : memref<1x1x2x1024xf32, #tpu.memory_space<vmem>>, vector<1x1x1x16xf32>
    %288 = vector.shape_cast %287 : vector<1x1x1x16xf32> to vector<16xf32>
    %289 = vector.shape_cast %286 : vector<16xf32> to vector<1x1x1x16xf32>
    tpu.vector_store %arg3[%c0_388, %c0_389, %c0_390, %c912], %289 {strides = array<i32>} : memref<1x1x2x1024xf32, #tpu.memory_space<vmem>>, vector<1x1x1x16xf32>,
    %c0_391 = arith.constant 0 : index
    %c3_392 = arith.constant 3 : index
    %c10_393 = arith.constant 10 : index
    %c0_394 = arith.constant 0 : index
    %290 = vector.load %arg2[%c0_391, %c3_392, %c10_393, %c0_394] : memref<1x4x16x32xf32, #tpu.memory_space<vmem>>, vector<1x1x1x16xf32>
    %291 = vector.shape_cast %290 : vector<1x1x1x16xf32> to vector<16xf32>
    %c0_395 = arith.constant 0 : index
    %c0_396 = arith.constant 0 : index
    %c0_397 = arith.constant 0 : index
    %c928 = arith.constant 928 : index
    %292 = vector.load %arg3[%c0_395, %c0_396, %c0_397, %c928] : memref<1x1x2x1024xf32, #tpu.memory_space<vmem>>, vector<1x1x1x16xf32>
    %293 = vector.shape_cast %292 : vector<1x1x1x16xf32> to vector<16xf32>
    %294 = vector.shape_cast %291 : vector<16xf32> to vector<1x1x1x16xf32>
    tpu.vector_store %arg3[%c0_395, %c0_396, %c0_397, %c928], %294 {strides = array<i32>} : memref<1x1x2x1024xf32, #tpu.memory_space<vmem>>, vector<1x1x1x16xf32>,
    %c0_398 = arith.constant 0 : index
    %c3_399 = arith.constant 3 : index
    %c11_400 = arith.constant 11 : index
    %c0_401 = arith.constant 0 : index
    %295 = vector.load %arg2[%c0_398, %c3_399, %c11_400, %c0_401] : memref<1x4x16x32xf32, #tpu.memory_space<vmem>>, vector<1x1x1x16xf32>
    %296 = vector.shape_cast %295 : vector<1x1x1x16xf32> to vector<16xf32>
    %c0_402 = arith.constant 0 : index
    %c0_403 = arith.constant 0 : index
    %c0_404 = arith.constant 0 : index
    %c944 = arith.constant 944 : index
    %297 = vector.load %arg3[%c0_402, %c0_403, %c0_404, %c944] : memref<1x1x2x1024xf32, #tpu.memory_space<vmem>>, vector<1x1x1x16xf32>
    %298 = vector.shape_cast %297 : vector<1x1x1x16xf32> to vector<16xf32>
    %299 = vector.shape_cast %296 : vector<16xf32> to vector<1x1x1x16xf32>
    tpu.vector_store %arg3[%c0_402, %c0_403, %c0_404, %c944], %299 {strides = array<i32>} : memref<1x1x2x1024xf32, #tpu.memory_space<vmem>>, vector<1x1x1x16xf32>,
    %c0_405 = arith.constant 0 : index
    %c3_406 = arith.constant 3 : index
    %c12_407 = arith.constant 12 : index
    %c0_408 = arith.constant 0 : index
    %300 = vector.load %arg2[%c0_405, %c3_406, %c12_407, %c0_408] : memref<1x4x16x32xf32, #tpu.memory_space<vmem>>, vector<1x1x1x16xf32>
    %301 = vector.shape_cast %300 : vector<1x1x1x16xf32> to vector<16xf32>
    %c0_409 = arith.constant 0 : index
    %c0_410 = arith.constant 0 : index
    %c0_411 = arith.constant 0 : index
    %c960 = arith.constant 960 : index
    %302 = vector.load %arg3[%c0_409, %c0_410, %c0_411, %c960] : memref<1x1x2x1024xf32, #tpu.memory_space<vmem>>, vector<1x1x1x16xf32>
    %303 = vector.shape_cast %302 : vector<1x1x1x16xf32> to vector<16xf32>
    %304 = vector.shape_cast %301 : vector<16xf32> to vector<1x1x1x16xf32>
    tpu.vector_store %arg3[%c0_409, %c0_410, %c0_411, %c960], %304 {strides = array<i32>} : memref<1x1x2x1024xf32, #tpu.memory_space<vmem>>, vector<1x1x1x16xf32>,
    %c0_412 = arith.constant 0 : index
    %c3_413 = arith.constant 3 : index
    %c13_414 = arith.constant 13 : index
    %c0_415 = arith.constant 0 : index
    %305 = vector.load %arg2[%c0_412, %c3_413, %c13_414, %c0_415] : memref<1x4x16x32xf32, #tpu.memory_space<vmem>>, vector<1x1x1x16xf32>
    %306 = vector.shape_cast %305 : vector<1x1x1x16xf32> to vector<16xf32>
    %c0_416 = arith.constant 0 : index
    %c0_417 = arith.constant 0 : index
    %c0_418 = arith.constant 0 : index
    %c976 = arith.constant 976 : index
    %307 = vector.load %arg3[%c0_416, %c0_417, %c0_418, %c976] : memref<1x1x2x1024xf32, #tpu.memory_space<vmem>>, vector<1x1x1x16xf32>
    %308 = vector.shape_cast %307 : vector<1x1x1x16xf32> to vector<16xf32>
    %309 = vector.shape_cast %306 : vector<16xf32> to vector<1x1x1x16xf32>
    tpu.vector_store %arg3[%c0_416, %c0_417, %c0_418, %c976], %309 {strides = array<i32>} : memref<1x1x2x1024xf32, #tpu.memory_space<vmem>>, vector<1x1x1x16xf32>,
    %c0_419 = arith.constant 0 : index
    %c3_420 = arith.constant 3 : index
    %c14_421 = arith.constant 14 : index
    %c0_422 = arith.constant 0 : index
    %310 = vector.load %arg2[%c0_419, %c3_420, %c14_421, %c0_422] : memref<1x4x16x32xf32, #tpu.memory_space<vmem>>, vector<1x1x1x16xf32>
    %311 = vector.shape_cast %310 : vector<1x1x1x16xf32> to vector<16xf32>
    %c0_423 = arith.constant 0 : index
    %c0_424 = arith.constant 0 : index
    %c0_425 = arith.constant 0 : index
    %c992 = arith.constant 992 : index
    %312 = vector.load %arg3[%c0_423, %c0_424, %c0_425, %c992] : memref<1x1x2x1024xf32, #tpu.memory_space<vmem>>, vector<1x1x1x16xf32>
    %313 = vector.shape_cast %312 : vector<1x1x1x16xf32> to vector<16xf32>
    %314 = vector.shape_cast %311 : vector<16xf32> to vector<1x1x1x16xf32>
    tpu.vector_store %arg3[%c0_423, %c0_424, %c0_425, %c992], %314 {strides = array<i32>} : memref<1x1x2x1024xf32, #tpu.memory_space<vmem>>, vector<1x1x1x16xf32>,
    %c0_426 = arith.constant 0 : index
    %c3_427 = arith.constant 3 : index
    %c15_428 = arith.constant 15 : index
    %c0_429 = arith.constant 0 : index
    %315 = vector.load %arg2[%c0_426, %c3_427, %c15_428, %c0_429] : memref<1x4x16x32xf32, #tpu.memory_space<vmem>>, vector<1x1x1x16xf32>
    %316 = vector.shape_cast %315 : vector<1x1x1x16xf32> to vector<16xf32>
    %c0_430 = arith.constant 0 : index
    %c0_431 = arith.constant 0 : index
    %c0_432 = arith.constant 0 : index
    %c1008 = arith.constant 1008 : index
    %317 = vector.load %arg3[%c0_430, %c0_431, %c0_432, %c1008] : memref<1x1x2x1024xf32, #tpu.memory_space<vmem>>, vector<1x1x1x16xf32>
    %318 = vector.shape_cast %317 : vector<1x1x1x16xf32> to vector<16xf32>
    %319 = vector.shape_cast %316 : vector<16xf32> to vector<1x1x1x16xf32>
    tpu.vector_store %arg3[%c0_430, %c0_431, %c0_432, %c1008], %319 {strides = array<i32>} : memref<1x1x2x1024xf32, #tpu.memory_space<vmem>>, vector<1x1x1x16xf32>,
    %c0_433 = arith.constant 0 : index
    %c0_434 = arith.constant 0 : index
    %c0_435 = arith.constant 0 : index
    %c16_436 = arith.constant 16 : index
    %320 = vector.load %arg2[%c0_433, %c0_434, %c0_435, %c16_436] : memref<1x4x16x32xf32, #tpu.memory_space<vmem>>, vector<1x1x1x16xf32>
    %321 = vector.shape_cast %320 : vector<1x1x1x16xf32> to vector<16xf32>
    %c0_437 = arith.constant 0 : index
    %c0_438 = arith.constant 0 : index
    %c1_439 = arith.constant 1 : index
    %c0_440 = arith.constant 0 : index
    %322 = vector.load %arg3[%c0_437, %c0_438, %c1_439, %c0_440] : memref<1x1x2x1024xf32, #tpu.memory_space<vmem>>, vector<1x1x1x16xf32>
    %323 = vector.shape_cast %322 : vector<1x1x1x16xf32> to vector<16xf32>
    %324 = vector.shape_cast %321 : vector<16xf32> to vector<1x1x1x16xf32>
    tpu.vector_store %arg3[%c0_437, %c0_438, %c1_439, %c0_440], %324 {strides = array<i32>} : memref<1x1x2x1024xf32, #tpu.memory_space<vmem>>, vector<1x1x1x16xf32>,
    %c0_441 = arith.constant 0 : index
    %c0_442 = arith.constant 0 : index
    %c1_443 = arith.constant 1 : index
    %c16_444 = arith.constant 16 : index
    %325 = vector.load %arg2[%c0_441, %c0_442, %c1_443, %c16_444] : memref<1x4x16x32xf32, #tpu.memory_space<vmem>>, vector<1x1x1x16xf32>
    %326 = vector.shape_cast %325 : vector<1x1x1x16xf32> to vector<16xf32>
    %c0_445 = arith.constant 0 : index
    %c0_446 = arith.constant 0 : index
    %c1_447 = arith.constant 1 : index
    %c16_448 = arith.constant 16 : index
    %327 = vector.load %arg3[%c0_445, %c0_446, %c1_447, %c16_448] : memref<1x1x2x1024xf32, #tpu.memory_space<vmem>>, vector<1x1x1x16xf32>
    %328 = vector.shape_cast %327 : vector<1x1x1x16xf32> to vector<16xf32>
    %329 = vector.shape_cast %326 : vector<16xf32> to vector<1x1x1x16xf32>
    tpu.vector_store %arg3[%c0_445, %c0_446, %c1_447, %c16_448], %329 {strides = array<i32>} : memref<1x1x2x1024xf32, #tpu.memory_space<vmem>>, vector<1x1x1x16xf32>,
    %c0_449 = arith.constant 0 : index
    %c0_450 = arith.constant 0 : index
    %c2_451 = arith.constant 2 : index
    %c16_452 = arith.constant 16 : index
    %330 = vector.load %arg2[%c0_449, %c0_450, %c2_451, %c16_452] : memref<1x4x16x32xf32, #tpu.memory_space<vmem>>, vector<1x1x1x16xf32>
    %331 = vector.shape_cast %330 : vector<1x1x1x16xf32> to vector<16xf32>
    %c0_453 = arith.constant 0 : index
    %c0_454 = arith.constant 0 : index
    %c1_455 = arith.constant 1 : index
    %c32_456 = arith.constant 32 : index
    %332 = vector.load %arg3[%c0_453, %c0_454, %c1_455, %c32_456] : memref<1x1x2x1024xf32, #tpu.memory_space<vmem>>, vector<1x1x1x16xf32>
    %333 = vector.shape_cast %332 : vector<1x1x1x16xf32> to vector<16xf32>
    %334 = vector.shape_cast %331 : vector<16xf32> to vector<1x1x1x16xf32>
    tpu.vector_store %arg3[%c0_453, %c0_454, %c1_455, %c32_456], %334 {strides = array<i32>} : memref<1x1x2x1024xf32, #tpu.memory_space<vmem>>, vector<1x1x1x16xf32>,
    %c0_457 = arith.constant 0 : index
    %c0_458 = arith.constant 0 : index
    %c3_459 = arith.constant 3 : index
    %c16_460 = arith.constant 16 : index
    %335 = vector.load %arg2[%c0_457, %c0_458, %c3_459, %c16_460] : memref<1x4x16x32xf32, #tpu.memory_space<vmem>>, vector<1x1x1x16xf32>
    %336 = vector.shape_cast %335 : vector<1x1x1x16xf32> to vector<16xf32>
    %c0_461 = arith.constant 0 : index
    %c0_462 = arith.constant 0 : index
    %c1_463 = arith.constant 1 : index
    %c48_464 = arith.constant 48 : index
    %337 = vector.load %arg3[%c0_461, %c0_462, %c1_463, %c48_464] : memref<1x1x2x1024xf32, #tpu.memory_space<vmem>>, vector<1x1x1x16xf32>
    %338 = vector.shape_cast %337 : vector<1x1x1x16xf32> to vector<16xf32>
    %339 = vector.shape_cast %336 : vector<16xf32> to vector<1x1x1x16xf32>
    tpu.vector_store %arg3[%c0_461, %c0_462, %c1_463, %c48_464], %339 {strides = array<i32>} : memref<1x1x2x1024xf32, #tpu.memory_space<vmem>>, vector<1x1x1x16xf32>,
    %c0_465 = arith.constant 0 : index
    %c0_466 = arith.constant 0 : index
    %c4_467 = arith.constant 4 : index
    %c16_468 = arith.constant 16 : index
    %340 = vector.load %arg2[%c0_465, %c0_466, %c4_467, %c16_468] : memref<1x4x16x32xf32, #tpu.memory_space<vmem>>, vector<1x1x1x16xf32>
    %341 = vector.shape_cast %340 : vector<1x1x1x16xf32> to vector<16xf32>
    %c0_469 = arith.constant 0 : index
    %c0_470 = arith.constant 0 : index
    %c1_471 = arith.constant 1 : index
    %c64_472 = arith.constant 64 : index
    %342 = vector.load %arg3[%c0_469, %c0_470, %c1_471, %c64_472] : memref<1x1x2x1024xf32, #tpu.memory_space<vmem>>, vector<1x1x1x16xf32>
    %343 = vector.shape_cast %342 : vector<1x1x1x16xf32> to vector<16xf32>
    %344 = vector.shape_cast %341 : vector<16xf32> to vector<1x1x1x16xf32>
    tpu.vector_store %arg3[%c0_469, %c0_470, %c1_471, %c64_472], %344 {strides = array<i32>} : memref<1x1x2x1024xf32, #tpu.memory_space<vmem>>, vector<1x1x1x16xf32>,
    %c0_473 = arith.constant 0 : index
    %c0_474 = arith.constant 0 : index
    %c5_475 = arith.constant 5 : index
    %c16_476 = arith.constant 16 : index
    %345 = vector.load %arg2[%c0_473, %c0_474, %c5_475, %c16_476] : memref<1x4x16x32xf32, #tpu.memory_space<vmem>>, vector<1x1x1x16xf32>
    %346 = vector.shape_cast %345 : vector<1x1x1x16xf32> to vector<16xf32>
    %c0_477 = arith.constant 0 : index
    %c0_478 = arith.constant 0 : index
    %c1_479 = arith.constant 1 : index
    %c80_480 = arith.constant 80 : index
    %347 = vector.load %arg3[%c0_477, %c0_478, %c1_479, %c80_480] : memref<1x1x2x1024xf32, #tpu.memory_space<vmem>>, vector<1x1x1x16xf32>
    %348 = vector.shape_cast %347 : vector<1x1x1x16xf32> to vector<16xf32>
    %349 = vector.shape_cast %346 : vector<16xf32> to vector<1x1x1x16xf32>
    tpu.vector_store %arg3[%c0_477, %c0_478, %c1_479, %c80_480], %349 {strides = array<i32>} : memref<1x1x2x1024xf32, #tpu.memory_space<vmem>>, vector<1x1x1x16xf32>,
    %c0_481 = arith.constant 0 : index
    %c0_482 = arith.constant 0 : index
    %c6_483 = arith.constant 6 : index
    %c16_484 = arith.constant 16 : index
    %350 = vector.load %arg2[%c0_481, %c0_482, %c6_483, %c16_484] : memref<1x4x16x32xf32, #tpu.memory_space<vmem>>, vector<1x1x1x16xf32>
    %351 = vector.shape_cast %350 : vector<1x1x1x16xf32> to vector<16xf32>
    %c0_485 = arith.constant 0 : index
    %c0_486 = arith.constant 0 : index
    %c1_487 = arith.constant 1 : index
    %c96_488 = arith.constant 96 : index
    %352 = vector.load %arg3[%c0_485, %c0_486, %c1_487, %c96_488] : memref<1x1x2x1024xf32, #tpu.memory_space<vmem>>, vector<1x1x1x16xf32>
    %353 = vector.shape_cast %352 : vector<1x1x1x16xf32> to vector<16xf32>
    %354 = vector.shape_cast %351 : vector<16xf32> to vector<1x1x1x16xf32>
    tpu.vector_store %arg3[%c0_485, %c0_486, %c1_487, %c96_488], %354 {strides = array<i32>} : memref<1x1x2x1024xf32, #tpu.memory_space<vmem>>, vector<1x1x1x16xf32>,
    %c0_489 = arith.constant 0 : index
    %c0_490 = arith.constant 0 : index
    %c7_491 = arith.constant 7 : index
    %c16_492 = arith.constant 16 : index
    %355 = vector.load %arg2[%c0_489, %c0_490, %c7_491, %c16_492] : memref<1x4x16x32xf32, #tpu.memory_space<vmem>>, vector<1x1x1x16xf32>
    %356 = vector.shape_cast %355 : vector<1x1x1x16xf32> to vector<16xf32>
    %c0_493 = arith.constant 0 : index
    %c0_494 = arith.constant 0 : index
    %c1_495 = arith.constant 1 : index
    %c112_496 = arith.constant 112 : index
    %357 = vector.load %arg3[%c0_493, %c0_494, %c1_495, %c112_496] : memref<1x1x2x1024xf32, #tpu.memory_space<vmem>>, vector<1x1x1x16xf32>
    %358 = vector.shape_cast %357 : vector<1x1x1x16xf32> to vector<16xf32>
    %359 = vector.shape_cast %356 : vector<16xf32> to vector<1x1x1x16xf32>
    tpu.vector_store %arg3[%c0_493, %c0_494, %c1_495, %c112_496], %359 {strides = array<i32>} : memref<1x1x2x1024xf32, #tpu.memory_space<vmem>>, vector<1x1x1x16xf32>,
    %c0_497 = arith.constant 0 : index
    %c0_498 = arith.constant 0 : index
    %c8_499 = arith.constant 8 : index
    %c16_500 = arith.constant 16 : index
    %360 = vector.load %arg2[%c0_497, %c0_498, %c8_499, %c16_500] : memref<1x4x16x32xf32, #tpu.memory_space<vmem>>, vector<1x1x1x16xf32>
    %361 = vector.shape_cast %360 : vector<1x1x1x16xf32> to vector<16xf32>
    %c0_501 = arith.constant 0 : index
    %c0_502 = arith.constant 0 : index
    %c1_503 = arith.constant 1 : index
    %c128_504 = arith.constant 128 : index
    %362 = vector.load %arg3[%c0_501, %c0_502, %c1_503, %c128_504] : memref<1x1x2x1024xf32, #tpu.memory_space<vmem>>, vector<1x1x1x16xf32>
    %363 = vector.shape_cast %362 : vector<1x1x1x16xf32> to vector<16xf32>
    %364 = vector.shape_cast %361 : vector<16xf32> to vector<1x1x1x16xf32>
    tpu.vector_store %arg3[%c0_501, %c0_502, %c1_503, %c128_504], %364 {strides = array<i32>} : memref<1x1x2x1024xf32, #tpu.memory_space<vmem>>, vector<1x1x1x16xf32>,
    %c0_505 = arith.constant 0 : index
    %c0_506 = arith.constant 0 : index
    %c9_507 = arith.constant 9 : index
    %c16_508 = arith.constant 16 : index
    %365 = vector.load %arg2[%c0_505, %c0_506, %c9_507, %c16_508] : memref<1x4x16x32xf32, #tpu.memory_space<vmem>>, vector<1x1x1x16xf32>
    %366 = vector.shape_cast %365 : vector<1x1x1x16xf32> to vector<16xf32>
    %c0_509 = arith.constant 0 : index
    %c0_510 = arith.constant 0 : index
    %c1_511 = arith.constant 1 : index
    %c144_512 = arith.constant 144 : index
    %367 = vector.load %arg3[%c0_509, %c0_510, %c1_511, %c144_512] : memref<1x1x2x1024xf32, #tpu.memory_space<vmem>>, vector<1x1x1x16xf32>
    %368 = vector.shape_cast %367 : vector<1x1x1x16xf32> to vector<16xf32>
    %369 = vector.shape_cast %366 : vector<16xf32> to vector<1x1x1x16xf32>
    tpu.vector_store %arg3[%c0_509, %c0_510, %c1_511, %c144_512], %369 {strides = array<i32>} : memref<1x1x2x1024xf32, #tpu.memory_space<vmem>>, vector<1x1x1x16xf32>,
    %c0_513 = arith.constant 0 : index
    %c0_514 = arith.constant 0 : index
    %c10_515 = arith.constant 10 : index
    %c16_516 = arith.constant 16 : index
    %370 = vector.load %arg2[%c0_513, %c0_514, %c10_515, %c16_516] : memref<1x4x16x32xf32, #tpu.memory_space<vmem>>, vector<1x1x1x16xf32>
    %371 = vector.shape_cast %370 : vector<1x1x1x16xf32> to vector<16xf32>
    %c0_517 = arith.constant 0 : index
    %c0_518 = arith.constant 0 : index
    %c1_519 = arith.constant 1 : index
    %c160_520 = arith.constant 160 : index
    %372 = vector.load %arg3[%c0_517, %c0_518, %c1_519, %c160_520] : memref<1x1x2x1024xf32, #tpu.memory_space<vmem>>, vector<1x1x1x16xf32>
    %373 = vector.shape_cast %372 : vector<1x1x1x16xf32> to vector<16xf32>
    %374 = vector.shape_cast %371 : vector<16xf32> to vector<1x1x1x16xf32>
    tpu.vector_store %arg3[%c0_517, %c0_518, %c1_519, %c160_520], %374 {strides = array<i32>} : memref<1x1x2x1024xf32, #tpu.memory_space<vmem>>, vector<1x1x1x16xf32>,
    %c0_521 = arith.constant 0 : index
    %c0_522 = arith.constant 0 : index
    %c11_523 = arith.constant 11 : index
    %c16_524 = arith.constant 16 : index
    %375 = vector.load %arg2[%c0_521, %c0_522, %c11_523, %c16_524] : memref<1x4x16x32xf32, #tpu.memory_space<vmem>>, vector<1x1x1x16xf32>
    %376 = vector.shape_cast %375 : vector<1x1x1x16xf32> to vector<16xf32>
    %c0_525 = arith.constant 0 : index
    %c0_526 = arith.constant 0 : index
    %c1_527 = arith.constant 1 : index
    %c176_528 = arith.constant 176 : index
    %377 = vector.load %arg3[%c0_525, %c0_526, %c1_527, %c176_528] : memref<1x1x2x1024xf32, #tpu.memory_space<vmem>>, vector<1x1x1x16xf32>
    %378 = vector.shape_cast %377 : vector<1x1x1x16xf32> to vector<16xf32>
    %379 = vector.shape_cast %376 : vector<16xf32> to vector<1x1x1x16xf32>
    tpu.vector_store %arg3[%c0_525, %c0_526, %c1_527, %c176_528], %379 {strides = array<i32>} : memref<1x1x2x1024xf32, #tpu.memory_space<vmem>>, vector<1x1x1x16xf32>,
    %c0_529 = arith.constant 0 : index
    %c0_530 = arith.constant 0 : index
    %c12_531 = arith.constant 12 : index
    %c16_532 = arith.constant 16 : index
    %380 = vector.load %arg2[%c0_529, %c0_530, %c12_531, %c16_532] : memref<1x4x16x32xf32, #tpu.memory_space<vmem>>, vector<1x1x1x16xf32>
    %381 = vector.shape_cast %380 : vector<1x1x1x16xf32> to vector<16xf32>
    %c0_533 = arith.constant 0 : index
    %c0_534 = arith.constant 0 : index
    %c1_535 = arith.constant 1 : index
    %c192_536 = arith.constant 192 : index
    %382 = vector.load %arg3[%c0_533, %c0_534, %c1_535, %c192_536] : memref<1x1x2x1024xf32, #tpu.memory_space<vmem>>, vector<1x1x1x16xf32>
    %383 = vector.shape_cast %382 : vector<1x1x1x16xf32> to vector<16xf32>
    %384 = vector.shape_cast %381 : vector<16xf32> to vector<1x1x1x16xf32>
    tpu.vector_store %arg3[%c0_533, %c0_534, %c1_535, %c192_536], %384 {strides = array<i32>} : memref<1x1x2x1024xf32, #tpu.memory_space<vmem>>, vector<1x1x1x16xf32>,
    %c0_537 = arith.constant 0 : index
    %c0_538 = arith.constant 0 : index
    %c13_539 = arith.constant 13 : index
    %c16_540 = arith.constant 16 : index
    %385 = vector.load %arg2[%c0_537, %c0_538, %c13_539, %c16_540] : memref<1x4x16x32xf32, #tpu.memory_space<vmem>>, vector<1x1x1x16xf32>
    %386 = vector.shape_cast %385 : vector<1x1x1x16xf32> to vector<16xf32>
    %c0_541 = arith.constant 0 : index
    %c0_542 = arith.constant 0 : index
    %c1_543 = arith.constant 1 : index
    %c208_544 = arith.constant 208 : index
    %387 = vector.load %arg3[%c0_541, %c0_542, %c1_543, %c208_544] : memref<1x1x2x1024xf32, #tpu.memory_space<vmem>>, vector<1x1x1x16xf32>
    %388 = vector.shape_cast %387 : vector<1x1x1x16xf32> to vector<16xf32>
    %389 = vector.shape_cast %386 : vector<16xf32> to vector<1x1x1x16xf32>
    tpu.vector_store %arg3[%c0_541, %c0_542, %c1_543, %c208_544], %389 {strides = array<i32>} : memref<1x1x2x1024xf32, #tpu.memory_space<vmem>>, vector<1x1x1x16xf32>,
    %c0_545 = arith.constant 0 : index
    %c0_546 = arith.constant 0 : index
    %c14_547 = arith.constant 14 : index
    %c16_548 = arith.constant 16 : index
    %390 = vector.load %arg2[%c0_545, %c0_546, %c14_547, %c16_548] : memref<1x4x16x32xf32, #tpu.memory_space<vmem>>, vector<1x1x1x16xf32>
    %391 = vector.shape_cast %390 : vector<1x1x1x16xf32> to vector<16xf32>
    %c0_549 = arith.constant 0 : index
    %c0_550 = arith.constant 0 : index
    %c1_551 = arith.constant 1 : index
    %c224_552 = arith.constant 224 : index
    %392 = vector.load %arg3[%c0_549, %c0_550, %c1_551, %c224_552] : memref<1x1x2x1024xf32, #tpu.memory_space<vmem>>, vector<1x1x1x16xf32>
    %393 = vector.shape_cast %392 : vector<1x1x1x16xf32> to vector<16xf32>
    %394 = vector.shape_cast %391 : vector<16xf32> to vector<1x1x1x16xf32>
    tpu.vector_store %arg3[%c0_549, %c0_550, %c1_551, %c224_552], %394 {strides = array<i32>} : memref<1x1x2x1024xf32, #tpu.memory_space<vmem>>, vector<1x1x1x16xf32>,
    %c0_553 = arith.constant 0 : index
    %c0_554 = arith.constant 0 : index
    %c15_555 = arith.constant 15 : index
    %c16_556 = arith.constant 16 : index
    %395 = vector.load %arg2[%c0_553, %c0_554, %c15_555, %c16_556] : memref<1x4x16x32xf32, #tpu.memory_space<vmem>>, vector<1x1x1x16xf32>
    %396 = vector.shape_cast %395 : vector<1x1x1x16xf32> to vector<16xf32>
    %c0_557 = arith.constant 0 : index
    %c0_558 = arith.constant 0 : index
    %c1_559 = arith.constant 1 : index
    %c240_560 = arith.constant 240 : index
    %397 = vector.load %arg3[%c0_557, %c0_558, %c1_559, %c240_560] : memref<1x1x2x1024xf32, #tpu.memory_space<vmem>>, vector<1x1x1x16xf32>
    %398 = vector.shape_cast %397 : vector<1x1x1x16xf32> to vector<16xf32>
    %399 = vector.shape_cast %396 : vector<16xf32> to vector<1x1x1x16xf32>
    tpu.vector_store %arg3[%c0_557, %c0_558, %c1_559, %c240_560], %399 {strides = array<i32>} : memref<1x1x2x1024xf32, #tpu.memory_space<vmem>>, vector<1x1x1x16xf32>,
    %c0_561 = arith.constant 0 : index
    %c1_562 = arith.constant 1 : index
    %c0_563 = arith.constant 0 : index
    %c16_564 = arith.constant 16 : index
    %400 = vector.load %arg2[%c0_561, %c1_562, %c0_563, %c16_564] : memref<1x4x16x32xf32, #tpu.memory_space<vmem>>, vector<1x1x1x16xf32>
    %401 = vector.shape_cast %400 : vector<1x1x1x16xf32> to vector<16xf32>
    %c0_565 = arith.constant 0 : index
    %c0_566 = arith.constant 0 : index
    %c1_567 = arith.constant 1 : index
    %c256_568 = arith.constant 256 : index
    %402 = vector.load %arg3[%c0_565, %c0_566, %c1_567, %c256_568] : memref<1x1x2x1024xf32, #tpu.memory_space<vmem>>, vector<1x1x1x16xf32>
    %403 = vector.shape_cast %402 : vector<1x1x1x16xf32> to vector<16xf32>
    %404 = vector.shape_cast %401 : vector<16xf32> to vector<1x1x1x16xf32>
    tpu.vector_store %arg3[%c0_565, %c0_566, %c1_567, %c256_568], %404 {strides = array<i32>} : memref<1x1x2x1024xf32, #tpu.memory_space<vmem>>, vector<1x1x1x16xf32>,
    %c0_569 = arith.constant 0 : index
    %c1_570 = arith.constant 1 : index
    %c1_571 = arith.constant 1 : index
    %c16_572 = arith.constant 16 : index
    %405 = vector.load %arg2[%c0_569, %c1_570, %c1_571, %c16_572] : memref<1x4x16x32xf32, #tpu.memory_space<vmem>>, vector<1x1x1x16xf32>
    %406 = vector.shape_cast %405 : vector<1x1x1x16xf32> to vector<16xf32>
    %c0_573 = arith.constant 0 : index
    %c0_574 = arith.constant 0 : index
    %c1_575 = arith.constant 1 : index
    %c272_576 = arith.constant 272 : index
    %407 = vector.load %arg3[%c0_573, %c0_574, %c1_575, %c272_576] : memref<1x1x2x1024xf32, #tpu.memory_space<vmem>>, vector<1x1x1x16xf32>
    %408 = vector.shape_cast %407 : vector<1x1x1x16xf32> to vector<16xf32>
    %409 = vector.shape_cast %406 : vector<16xf32> to vector<1x1x1x16xf32>
    tpu.vector_store %arg3[%c0_573, %c0_574, %c1_575, %c272_576], %409 {strides = array<i32>} : memref<1x1x2x1024xf32, #tpu.memory_space<vmem>>, vector<1x1x1x16xf32>,
    %c0_577 = arith.constant 0 : index
    %c1_578 = arith.constant 1 : index
    %c2_579 = arith.constant 2 : index
    %c16_580 = arith.constant 16 : index
    %410 = vector.load %arg2[%c0_577, %c1_578, %c2_579, %c16_580] : memref<1x4x16x32xf32, #tpu.memory_space<vmem>>, vector<1x1x1x16xf32>
    %411 = vector.shape_cast %410 : vector<1x1x1x16xf32> to vector<16xf32>
    %c0_581 = arith.constant 0 : index
    %c0_582 = arith.constant 0 : index
    %c1_583 = arith.constant 1 : index
    %c288_584 = arith.constant 288 : index
    %412 = vector.load %arg3[%c0_581, %c0_582, %c1_583, %c288_584] : memref<1x1x2x1024xf32, #tpu.memory_space<vmem>>, vector<1x1x1x16xf32>
    %413 = vector.shape_cast %412 : vector<1x1x1x16xf32> to vector<16xf32>
    %414 = vector.shape_cast %411 : vector<16xf32> to vector<1x1x1x16xf32>
    tpu.vector_store %arg3[%c0_581, %c0_582, %c1_583, %c288_584], %414 {strides = array<i32>} : memref<1x1x2x1024xf32, #tpu.memory_space<vmem>>, vector<1x1x1x16xf32>,
    %c0_585 = arith.constant 0 : index
    %c1_586 = arith.constant 1 : index
    %c3_587 = arith.constant 3 : index
    %c16_588 = arith.constant 16 : index
    %415 = vector.load %arg2[%c0_585, %c1_586, %c3_587, %c16_588] : memref<1x4x16x32xf32, #tpu.memory_space<vmem>>, vector<1x1x1x16xf32>
    %416 = vector.shape_cast %415 : vector<1x1x1x16xf32> to vector<16xf32>
    %c0_589 = arith.constant 0 : index
    %c0_590 = arith.constant 0 : index
    %c1_591 = arith.constant 1 : index
    %c304_592 = arith.constant 304 : index
    %417 = vector.load %arg3[%c0_589, %c0_590, %c1_591, %c304_592] : memref<1x1x2x1024xf32, #tpu.memory_space<vmem>>, vector<1x1x1x16xf32>
    %418 = vector.shape_cast %417 : vector<1x1x1x16xf32> to vector<16xf32>
    %419 = vector.shape_cast %416 : vector<16xf32> to vector<1x1x1x16xf32>
    tpu.vector_store %arg3[%c0_589, %c0_590, %c1_591, %c304_592], %419 {strides = array<i32>} : memref<1x1x2x1024xf32, #tpu.memory_space<vmem>>, vector<1x1x1x16xf32>,
    %c0_593 = arith.constant 0 : index
    %c1_594 = arith.constant 1 : index
    %c4_595 = arith.constant 4 : index
    %c16_596 = arith.constant 16 : index
    %420 = vector.load %arg2[%c0_593, %c1_594, %c4_595, %c16_596] : memref<1x4x16x32xf32, #tpu.memory_space<vmem>>, vector<1x1x1x16xf32>
    %421 = vector.shape_cast %420 : vector<1x1x1x16xf32> to vector<16xf32>
    %c0_597 = arith.constant 0 : index
    %c0_598 = arith.constant 0 : index
    %c1_599 = arith.constant 1 : index
    %c320_600 = arith.constant 320 : index
    %422 = vector.load %arg3[%c0_597, %c0_598, %c1_599, %c320_600] : memref<1x1x2x1024xf32, #tpu.memory_space<vmem>>, vector<1x1x1x16xf32>
    %423 = vector.shape_cast %422 : vector<1x1x1x16xf32> to vector<16xf32>
    %424 = vector.shape_cast %421 : vector<16xf32> to vector<1x1x1x16xf32>
    tpu.vector_store %arg3[%c0_597, %c0_598, %c1_599, %c320_600], %424 {strides = array<i32>} : memref<1x1x2x1024xf32, #tpu.memory_space<vmem>>, vector<1x1x1x16xf32>,
    %c0_601 = arith.constant 0 : index
    %c1_602 = arith.constant 1 : index
    %c5_603 = arith.constant 5 : index
    %c16_604 = arith.constant 16 : index
    %425 = vector.load %arg2[%c0_601, %c1_602, %c5_603, %c16_604] : memref<1x4x16x32xf32, #tpu.memory_space<vmem>>, vector<1x1x1x16xf32>
    %426 = vector.shape_cast %425 : vector<1x1x1x16xf32> to vector<16xf32>
    %c0_605 = arith.constant 0 : index
    %c0_606 = arith.constant 0 : index
    %c1_607 = arith.constant 1 : index
    %c336_608 = arith.constant 336 : index
    %427 = vector.load %arg3[%c0_605, %c0_606, %c1_607, %c336_608] : memref<1x1x2x1024xf32, #tpu.memory_space<vmem>>, vector<1x1x1x16xf32>
    %428 = vector.shape_cast %427 : vector<1x1x1x16xf32> to vector<16xf32>
    %429 = vector.shape_cast %426 : vector<16xf32> to vector<1x1x1x16xf32>
    tpu.vector_store %arg3[%c0_605, %c0_606, %c1_607, %c336_608], %429 {strides = array<i32>} : memref<1x1x2x1024xf32, #tpu.memory_space<vmem>>, vector<1x1x1x16xf32>,
    %c0_609 = arith.constant 0 : index
    %c1_610 = arith.constant 1 : index
    %c6_611 = arith.constant 6 : index
    %c16_612 = arith.constant 16 : index
    %430 = vector.load %arg2[%c0_609, %c1_610, %c6_611, %c16_612] : memref<1x4x16x32xf32, #tpu.memory_space<vmem>>, vector<1x1x1x16xf32>
    %431 = vector.shape_cast %430 : vector<1x1x1x16xf32> to vector<16xf32>
    %c0_613 = arith.constant 0 : index
    %c0_614 = arith.constant 0 : index
    %c1_615 = arith.constant 1 : index
    %c352_616 = arith.constant 352 : index
    %432 = vector.load %arg3[%c0_613, %c0_614, %c1_615, %c352_616] : memref<1x1x2x1024xf32, #tpu.memory_space<vmem>>, vector<1x1x1x16xf32>
    %433 = vector.shape_cast %432 : vector<1x1x1x16xf32> to vector<16xf32>
    %434 = vector.shape_cast %431 : vector<16xf32> to vector<1x1x1x16xf32>
    tpu.vector_store %arg3[%c0_613, %c0_614, %c1_615, %c352_616], %434 {strides = array<i32>} : memref<1x1x2x1024xf32, #tpu.memory_space<vmem>>, vector<1x1x1x16xf32>,
    %c0_617 = arith.constant 0 : index
    %c1_618 = arith.constant 1 : index
    %c7_619 = arith.constant 7 : index
    %c16_620 = arith.constant 16 : index
    %435 = vector.load %arg2[%c0_617, %c1_618, %c7_619, %c16_620] : memref<1x4x16x32xf32, #tpu.memory_space<vmem>>, vector<1x1x1x16xf32>
    %436 = vector.shape_cast %435 : vector<1x1x1x16xf32> to vector<16xf32>
    %c0_621 = arith.constant 0 : index
    %c0_622 = arith.constant 0 : index
    %c1_623 = arith.constant 1 : index
    %c368_624 = arith.constant 368 : index
    %437 = vector.load %arg3[%c0_621, %c0_622, %c1_623, %c368_624] : memref<1x1x2x1024xf32, #tpu.memory_space<vmem>>, vector<1x1x1x16xf32>
    %438 = vector.shape_cast %437 : vector<1x1x1x16xf32> to vector<16xf32>
    %439 = vector.shape_cast %436 : vector<16xf32> to vector<1x1x1x16xf32>
    tpu.vector_store %arg3[%c0_621, %c0_622, %c1_623, %c368_624], %439 {strides = array<i32>} : memref<1x1x2x1024xf32, #tpu.memory_space<vmem>>, vector<1x1x1x16xf32>,
    %c0_625 = arith.constant 0 : index
    %c1_626 = arith.constant 1 : index
    %c8_627 = arith.constant 8 : index
    %c16_628 = arith.constant 16 : index
    %440 = vector.load %arg2[%c0_625, %c1_626, %c8_627, %c16_628] : memref<1x4x16x32xf32, #tpu.memory_space<vmem>>, vector<1x1x1x16xf32>
    %441 = vector.shape_cast %440 : vector<1x1x1x16xf32> to vector<16xf32>
    %c0_629 = arith.constant 0 : index
    %c0_630 = arith.constant 0 : index
    %c1_631 = arith.constant 1 : index
    %c384_632 = arith.constant 384 : index
    %442 = vector.load %arg3[%c0_629, %c0_630, %c1_631, %c384_632] : memref<1x1x2x1024xf32, #tpu.memory_space<vmem>>, vector<1x1x1x16xf32>
    %443 = vector.shape_cast %442 : vector<1x1x1x16xf32> to vector<16xf32>
    %444 = vector.shape_cast %441 : vector<16xf32> to vector<1x1x1x16xf32>
    tpu.vector_store %arg3[%c0_629, %c0_630, %c1_631, %c384_632], %444 {strides = array<i32>} : memref<1x1x2x1024xf32, #tpu.memory_space<vmem>>, vector<1x1x1x16xf32>,
    %c0_633 = arith.constant 0 : index
    %c1_634 = arith.constant 1 : index
    %c9_635 = arith.constant 9 : index
    %c16_636 = arith.constant 16 : index
    %445 = vector.load %arg2[%c0_633, %c1_634, %c9_635, %c16_636] : memref<1x4x16x32xf32, #tpu.memory_space<vmem>>, vector<1x1x1x16xf32>
    %446 = vector.shape_cast %445 : vector<1x1x1x16xf32> to vector<16xf32>
    %c0_637 = arith.constant 0 : index
    %c0_638 = arith.constant 0 : index
    %c1_639 = arith.constant 1 : index
    %c400_640 = arith.constant 400 : index
    %447 = vector.load %arg3[%c0_637, %c0_638, %c1_639, %c400_640] : memref<1x1x2x1024xf32, #tpu.memory_space<vmem>>, vector<1x1x1x16xf32>
    %448 = vector.shape_cast %447 : vector<1x1x1x16xf32> to vector<16xf32>
    %449 = vector.shape_cast %446 : vector<16xf32> to vector<1x1x1x16xf32>
    tpu.vector_store %arg3[%c0_637, %c0_638, %c1_639, %c400_640], %449 {strides = array<i32>} : memref<1x1x2x1024xf32, #tpu.memory_space<vmem>>, vector<1x1x1x16xf32>,
    %c0_641 = arith.constant 0 : index
    %c1_642 = arith.constant 1 : index
    %c10_643 = arith.constant 10 : index
    %c16_644 = arith.constant 16 : index
    %450 = vector.load %arg2[%c0_641, %c1_642, %c10_643, %c16_644] : memref<1x4x16x32xf32, #tpu.memory_space<vmem>>, vector<1x1x1x16xf32>
    %451 = vector.shape_cast %450 : vector<1x1x1x16xf32> to vector<16xf32>
    %c0_645 = arith.constant 0 : index
    %c0_646 = arith.constant 0 : index
    %c1_647 = arith.constant 1 : index
    %c416_648 = arith.constant 416 : index
    %452 = vector.load %arg3[%c0_645, %c0_646, %c1_647, %c416_648] : memref<1x1x2x1024xf32, #tpu.memory_space<vmem>>, vector<1x1x1x16xf32>
    %453 = vector.shape_cast %452 : vector<1x1x1x16xf32> to vector<16xf32>
    %454 = vector.shape_cast %451 : vector<16xf32> to vector<1x1x1x16xf32>
    tpu.vector_store %arg3[%c0_645, %c0_646, %c1_647, %c416_648], %454 {strides = array<i32>} : memref<1x1x2x1024xf32, #tpu.memory_space<vmem>>, vector<1x1x1x16xf32>,
    %c0_649 = arith.constant 0 : index
    %c1_650 = arith.constant 1 : index
    %c11_651 = arith.constant 11 : index
    %c16_652 = arith.constant 16 : index
    %455 = vector.load %arg2[%c0_649, %c1_650, %c11_651, %c16_652] : memref<1x4x16x32xf32, #tpu.memory_space<vmem>>, vector<1x1x1x16xf32>
    %456 = vector.shape_cast %455 : vector<1x1x1x16xf32> to vector<16xf32>
    %c0_653 = arith.constant 0 : index
    %c0_654 = arith.constant 0 : index
    %c1_655 = arith.constant 1 : index
    %c432_656 = arith.constant 432 : index
    %457 = vector.load %arg3[%c0_653, %c0_654, %c1_655, %c432_656] : memref<1x1x2x1024xf32, #tpu.memory_space<vmem>>, vector<1x1x1x16xf32>
    %458 = vector.shape_cast %457 : vector<1x1x1x16xf32> to vector<16xf32>
    %459 = vector.shape_cast %456 : vector<16xf32> to vector<1x1x1x16xf32>
    tpu.vector_store %arg3[%c0_653, %c0_654, %c1_655, %c432_656], %459 {strides = array<i32>} : memref<1x1x2x1024xf32, #tpu.memory_space<vmem>>, vector<1x1x1x16xf32>,
    %c0_657 = arith.constant 0 : index
    %c1_658 = arith.constant 1 : index
    %c12_659 = arith.constant 12 : index
    %c16_660 = arith.constant 16 : index
    %460 = vector.load %arg2[%c0_657, %c1_658, %c12_659, %c16_660] : memref<1x4x16x32xf32, #tpu.memory_space<vmem>>, vector<1x1x1x16xf32>
    %461 = vector.shape_cast %460 : vector<1x1x1x16xf32> to vector<16xf32>
    %c0_661 = arith.constant 0 : index
    %c0_662 = arith.constant 0 : index
    %c1_663 = arith.constant 1 : index
    %c448_664 = arith.constant 448 : index
    %462 = vector.load %arg3[%c0_661, %c0_662, %c1_663, %c448_664] : memref<1x1x2x1024xf32, #tpu.memory_space<vmem>>, vector<1x1x1x16xf32>
    %463 = vector.shape_cast %462 : vector<1x1x1x16xf32> to vector<16xf32>
    %464 = vector.shape_cast %461 : vector<16xf32> to vector<1x1x1x16xf32>
    tpu.vector_store %arg3[%c0_661, %c0_662, %c1_663, %c448_664], %464 {strides = array<i32>} : memref<1x1x2x1024xf32, #tpu.memory_space<vmem>>, vector<1x1x1x16xf32>,
    %c0_665 = arith.constant 0 : index
    %c1_666 = arith.constant 1 : index
    %c13_667 = arith.constant 13 : index
    %c16_668 = arith.constant 16 : index
    %465 = vector.load %arg2[%c0_665, %c1_666, %c13_667, %c16_668] : memref<1x4x16x32xf32, #tpu.memory_space<vmem>>, vector<1x1x1x16xf32>
    %466 = vector.shape_cast %465 : vector<1x1x1x16xf32> to vector<16xf32>
    %c0_669 = arith.constant 0 : index
    %c0_670 = arith.constant 0 : index
    %c1_671 = arith.constant 1 : index
    %c464_672 = arith.constant 464 : index
    %467 = vector.load %arg3[%c0_669, %c0_670, %c1_671, %c464_672] : memref<1x1x2x1024xf32, #tpu.memory_space<vmem>>, vector<1x1x1x16xf32>
    %468 = vector.shape_cast %467 : vector<1x1x1x16xf32> to vector<16xf32>
    %469 = vector.shape_cast %466 : vector<16xf32> to vector<1x1x1x16xf32>
    tpu.vector_store %arg3[%c0_669, %c0_670, %c1_671, %c464_672], %469 {strides = array<i32>} : memref<1x1x2x1024xf32, #tpu.memory_space<vmem>>, vector<1x1x1x16xf32>,
    %c0_673 = arith.constant 0 : index
    %c1_674 = arith.constant 1 : index
    %c14_675 = arith.constant 14 : index
    %c16_676 = arith.constant 16 : index
    %470 = vector.load %arg2[%c0_673, %c1_674, %c14_675, %c16_676] : memref<1x4x16x32xf32, #tpu.memory_space<vmem>>, vector<1x1x1x16xf32>
    %471 = vector.shape_cast %470 : vector<1x1x1x16xf32> to vector<16xf32>
    %c0_677 = arith.constant 0 : index
    %c0_678 = arith.constant 0 : index
    %c1_679 = arith.constant 1 : index
    %c480_680 = arith.constant 480 : index
    %472 = vector.load %arg3[%c0_677, %c0_678, %c1_679, %c480_680] : memref<1x1x2x1024xf32, #tpu.memory_space<vmem>>, vector<1x1x1x16xf32>
    %473 = vector.shape_cast %472 : vector<1x1x1x16xf32> to vector<16xf32>
    %474 = vector.shape_cast %471 : vector<16xf32> to vector<1x1x1x16xf32>
    tpu.vector_store %arg3[%c0_677, %c0_678, %c1_679, %c480_680], %474 {strides = array<i32>} : memref<1x1x2x1024xf32, #tpu.memory_space<vmem>>, vector<1x1x1x16xf32>,
    %c0_681 = arith.constant 0 : index
    %c1_682 = arith.constant 1 : index
    %c15_683 = arith.constant 15 : index
    %c16_684 = arith.constant 16 : index
    %475 = vector.load %arg2[%c0_681, %c1_682, %c15_683, %c16_684] : memref<1x4x16x32xf32, #tpu.memory_space<vmem>>, vector<1x1x1x16xf32>
    %476 = vector.shape_cast %475 : vector<1x1x1x16xf32> to vector<16xf32>
    %c0_685 = arith.constant 0 : index
    %c0_686 = arith.constant 0 : index
    %c1_687 = arith.constant 1 : index
    %c496_688 = arith.constant 496 : index
    %477 = vector.load %arg3[%c0_685, %c0_686, %c1_687, %c496_688] : memref<1x1x2x1024xf32, #tpu.memory_space<vmem>>, vector<1x1x1x16xf32>
    %478 = vector.shape_cast %477 : vector<1x1x1x16xf32> to vector<16xf32>
    %479 = vector.shape_cast %476 : vector<16xf32> to vector<1x1x1x16xf32>
    tpu.vector_store %arg3[%c0_685, %c0_686, %c1_687, %c496_688], %479 {strides = array<i32>} : memref<1x1x2x1024xf32, #tpu.memory_space<vmem>>, vector<1x1x1x16xf32>,
    %c0_689 = arith.constant 0 : index
    %c2_690 = arith.constant 2 : index
    %c0_691 = arith.constant 0 : index
    %c16_692 = arith.constant 16 : index
    %480 = vector.load %arg2[%c0_689, %c2_690, %c0_691, %c16_692] : memref<1x4x16x32xf32, #tpu.memory_space<vmem>>, vector<1x1x1x16xf32>
    %481 = vector.shape_cast %480 : vector<1x1x1x16xf32> to vector<16xf32>
    %c0_693 = arith.constant 0 : index
    %c0_694 = arith.constant 0 : index
    %c1_695 = arith.constant 1 : index
    %c512_696 = arith.constant 512 : index
    %482 = vector.load %arg3[%c0_693, %c0_694, %c1_695, %c512_696] : memref<1x1x2x1024xf32, #tpu.memory_space<vmem>>, vector<1x1x1x16xf32>
    %483 = vector.shape_cast %482 : vector<1x1x1x16xf32> to vector<16xf32>
    %484 = vector.shape_cast %481 : vector<16xf32> to vector<1x1x1x16xf32>
    tpu.vector_store %arg3[%c0_693, %c0_694, %c1_695, %c512_696], %484 {strides = array<i32>} : memref<1x1x2x1024xf32, #tpu.memory_space<vmem>>, vector<1x1x1x16xf32>,
    %c0_697 = arith.constant 0 : index
    %c2_698 = arith.constant 2 : index
    %c1_699 = arith.constant 1 : index
    %c16_700 = arith.constant 16 : index
    %485 = vector.load %arg2[%c0_697, %c2_698, %c1_699, %c16_700] : memref<1x4x16x32xf32, #tpu.memory_space<vmem>>, vector<1x1x1x16xf32>
    %486 = vector.shape_cast %485 : vector<1x1x1x16xf32> to vector<16xf32>
    %c0_701 = arith.constant 0 : index
    %c0_702 = arith.constant 0 : index
    %c1_703 = arith.constant 1 : index
    %c528_704 = arith.constant 528 : index
    %487 = vector.load %arg3[%c0_701, %c0_702, %c1_703, %c528_704] : memref<1x1x2x1024xf32, #tpu.memory_space<vmem>>, vector<1x1x1x16xf32>
    %488 = vector.shape_cast %487 : vector<1x1x1x16xf32> to vector<16xf32>
    %489 = vector.shape_cast %486 : vector<16xf32> to vector<1x1x1x16xf32>
    tpu.vector_store %arg3[%c0_701, %c0_702, %c1_703, %c528_704], %489 {strides = array<i32>} : memref<1x1x2x1024xf32, #tpu.memory_space<vmem>>, vector<1x1x1x16xf32>,
    %c0_705 = arith.constant 0 : index
    %c2_706 = arith.constant 2 : index
    %c2_707 = arith.constant 2 : index
    %c16_708 = arith.constant 16 : index
    %490 = vector.load %arg2[%c0_705, %c2_706, %c2_707, %c16_708] : memref<1x4x16x32xf32, #tpu.memory_space<vmem>>, vector<1x1x1x16xf32>
    %491 = vector.shape_cast %490 : vector<1x1x1x16xf32> to vector<16xf32>
    %c0_709 = arith.constant 0 : index
    %c0_710 = arith.constant 0 : index
    %c1_711 = arith.constant 1 : index
    %c544_712 = arith.constant 544 : index
    %492 = vector.load %arg3[%c0_709, %c0_710, %c1_711, %c544_712] : memref<1x1x2x1024xf32, #tpu.memory_space<vmem>>, vector<1x1x1x16xf32>
    %493 = vector.shape_cast %492 : vector<1x1x1x16xf32> to vector<16xf32>
    %494 = vector.shape_cast %491 : vector<16xf32> to vector<1x1x1x16xf32>
    tpu.vector_store %arg3[%c0_709, %c0_710, %c1_711, %c544_712], %494 {strides = array<i32>} : memref<1x1x2x1024xf32, #tpu.memory_space<vmem>>, vector<1x1x1x16xf32>,
    %c0_713 = arith.constant 0 : index
    %c2_714 = arith.constant 2 : index
    %c3_715 = arith.constant 3 : index
    %c16_716 = arith.constant 16 : index
    %495 = vector.load %arg2[%c0_713, %c2_714, %c3_715, %c16_716] : memref<1x4x16x32xf32, #tpu.memory_space<vmem>>, vector<1x1x1x16xf32>
    %496 = vector.shape_cast %495 : vector<1x1x1x16xf32> to vector<16xf32>
    %c0_717 = arith.constant 0 : index
    %c0_718 = arith.constant 0 : index
    %c1_719 = arith.constant 1 : index
    %c560_720 = arith.constant 560 : index
    %497 = vector.load %arg3[%c0_717, %c0_718, %c1_719, %c560_720] : memref<1x1x2x1024xf32, #tpu.memory_space<vmem>>, vector<1x1x1x16xf32>
    %498 = vector.shape_cast %497 : vector<1x1x1x16xf32> to vector<16xf32>
    %499 = vector.shape_cast %496 : vector<16xf32> to vector<1x1x1x16xf32>
    tpu.vector_store %arg3[%c0_717, %c0_718, %c1_719, %c560_720], %499 {strides = array<i32>} : memref<1x1x2x1024xf32, #tpu.memory_space<vmem>>, vector<1x1x1x16xf32>,
    %c0_721 = arith.constant 0 : index
    %c2_722 = arith.constant 2 : index
    %c4_723 = arith.constant 4 : index
    %c16_724 = arith.constant 16 : index
    %500 = vector.load %arg2[%c0_721, %c2_722, %c4_723, %c16_724] : memref<1x4x16x32xf32, #tpu.memory_space<vmem>>, vector<1x1x1x16xf32>
    %501 = vector.shape_cast %500 : vector<1x1x1x16xf32> to vector<16xf32>
    %c0_725 = arith.constant 0 : index
    %c0_726 = arith.constant 0 : index
    %c1_727 = arith.constant 1 : index
    %c576_728 = arith.constant 576 : index
    %502 = vector.load %arg3[%c0_725, %c0_726, %c1_727, %c576_728] : memref<1x1x2x1024xf32, #tpu.memory_space<vmem>>, vector<1x1x1x16xf32>
    %503 = vector.shape_cast %502 : vector<1x1x1x16xf32> to vector<16xf32>
    %504 = vector.shape_cast %501 : vector<16xf32> to vector<1x1x1x16xf32>
    tpu.vector_store %arg3[%c0_725, %c0_726, %c1_727, %c576_728], %504 {strides = array<i32>} : memref<1x1x2x1024xf32, #tpu.memory_space<vmem>>, vector<1x1x1x16xf32>,
    %c0_729 = arith.constant 0 : index
    %c2_730 = arith.constant 2 : index
    %c5_731 = arith.constant 5 : index
    %c16_732 = arith.constant 16 : index
    %505 = vector.load %arg2[%c0_729, %c2_730, %c5_731, %c16_732] : memref<1x4x16x32xf32, #tpu.memory_space<vmem>>, vector<1x1x1x16xf32>
    %506 = vector.shape_cast %505 : vector<1x1x1x16xf32> to vector<16xf32>
    %c0_733 = arith.constant 0 : index
    %c0_734 = arith.constant 0 : index
    %c1_735 = arith.constant 1 : index
    %c592_736 = arith.constant 592 : index
    %507 = vector.load %arg3[%c0_733, %c0_734, %c1_735, %c592_736] : memref<1x1x2x1024xf32, #tpu.memory_space<vmem>>, vector<1x1x1x16xf32>
    %508 = vector.shape_cast %507 : vector<1x1x1x16xf32> to vector<16xf32>
    %509 = vector.shape_cast %506 : vector<16xf32> to vector<1x1x1x16xf32>
    tpu.vector_store %arg3[%c0_733, %c0_734, %c1_735, %c592_736], %509 {strides = array<i32>} : memref<1x1x2x1024xf32, #tpu.memory_space<vmem>>, vector<1x1x1x16xf32>,
    %c0_737 = arith.constant 0 : index
    %c2_738 = arith.constant 2 : index
    %c6_739 = arith.constant 6 : index
    %c16_740 = arith.constant 16 : index
    %510 = vector.load %arg2[%c0_737, %c2_738, %c6_739, %c16_740] : memref<1x4x16x32xf32, #tpu.memory_space<vmem>>, vector<1x1x1x16xf32>
    %511 = vector.shape_cast %510 : vector<1x1x1x16xf32> to vector<16xf32>
    %c0_741 = arith.constant 0 : index
    %c0_742 = arith.constant 0 : index
    %c1_743 = arith.constant 1 : index
    %c608_744 = arith.constant 608 : index
    %512 = vector.load %arg3[%c0_741, %c0_742, %c1_743, %c608_744] : memref<1x1x2x1024xf32, #tpu.memory_space<vmem>>, vector<1x1x1x16xf32>
    %513 = vector.shape_cast %512 : vector<1x1x1x16xf32> to vector<16xf32>
    %514 = vector.shape_cast %511 : vector<16xf32> to vector<1x1x1x16xf32>
    tpu.vector_store %arg3[%c0_741, %c0_742, %c1_743, %c608_744], %514 {strides = array<i32>} : memref<1x1x2x1024xf32, #tpu.memory_space<vmem>>, vector<1x1x1x16xf32>,
    %c0_745 = arith.constant 0 : index
    %c2_746 = arith.constant 2 : index
    %c7_747 = arith.constant 7 : index
    %c16_748 = arith.constant 16 : index
    %515 = vector.load %arg2[%c0_745, %c2_746, %c7_747, %c16_748] : memref<1x4x16x32xf32, #tpu.memory_space<vmem>>, vector<1x1x1x16xf32>
    %516 = vector.shape_cast %515 : vector<1x1x1x16xf32> to vector<16xf32>
    %c0_749 = arith.constant 0 : index
    %c0_750 = arith.constant 0 : index
    %c1_751 = arith.constant 1 : index
    %c624_752 = arith.constant 624 : index
    %517 = vector.load %arg3[%c0_749, %c0_750, %c1_751, %c624_752] : memref<1x1x2x1024xf32, #tpu.memory_space<vmem>>, vector<1x1x1x16xf32>
    %518 = vector.shape_cast %517 : vector<1x1x1x16xf32> to vector<16xf32>
    %519 = vector.shape_cast %516 : vector<16xf32> to vector<1x1x1x16xf32>
    tpu.vector_store %arg3[%c0_749, %c0_750, %c1_751, %c624_752], %519 {strides = array<i32>} : memref<1x1x2x1024xf32, #tpu.memory_space<vmem>>, vector<1x1x1x16xf32>,
    %c0_753 = arith.constant 0 : index
    %c2_754 = arith.constant 2 : index
    %c8_755 = arith.constant 8 : index
    %c16_756 = arith.constant 16 : index
    %520 = vector.load %arg2[%c0_753, %c2_754, %c8_755, %c16_756] : memref<1x4x16x32xf32, #tpu.memory_space<vmem>>, vector<1x1x1x16xf32>
    %521 = vector.shape_cast %520 : vector<1x1x1x16xf32> to vector<16xf32>
    %c0_757 = arith.constant 0 : index
    %c0_758 = arith.constant 0 : index
    %c1_759 = arith.constant 1 : index
    %c640_760 = arith.constant 640 : index
    %522 = vector.load %arg3[%c0_757, %c0_758, %c1_759, %c640_760] : memref<1x1x2x1024xf32, #tpu.memory_space<vmem>>, vector<1x1x1x16xf32>
    %523 = vector.shape_cast %522 : vector<1x1x1x16xf32> to vector<16xf32>
    %524 = vector.shape_cast %521 : vector<16xf32> to vector<1x1x1x16xf32>
    tpu.vector_store %arg3[%c0_757, %c0_758, %c1_759, %c640_760], %524 {strides = array<i32>} : memref<1x1x2x1024xf32, #tpu.memory_space<vmem>>, vector<1x1x1x16xf32>,
    %c0_761 = arith.constant 0 : index
    %c2_762 = arith.constant 2 : index
    %c9_763 = arith.constant 9 : index
    %c16_764 = arith.constant 16 : index
    %525 = vector.load %arg2[%c0_761, %c2_762, %c9_763, %c16_764] : memref<1x4x16x32xf32, #tpu.memory_space<vmem>>, vector<1x1x1x16xf32>
    %526 = vector.shape_cast %525 : vector<1x1x1x16xf32> to vector<16xf32>
    %c0_765 = arith.constant 0 : index
    %c0_766 = arith.constant 0 : index
    %c1_767 = arith.constant 1 : index
    %c656_768 = arith.constant 656 : index
    %527 = vector.load %arg3[%c0_765, %c0_766, %c1_767, %c656_768] : memref<1x1x2x1024xf32, #tpu.memory_space<vmem>>, vector<1x1x1x16xf32>
    %528 = vector.shape_cast %527 : vector<1x1x1x16xf32> to vector<16xf32>
    %529 = vector.shape_cast %526 : vector<16xf32> to vector<1x1x1x16xf32>
    tpu.vector_store %arg3[%c0_765, %c0_766, %c1_767, %c656_768], %529 {strides = array<i32>} : memref<1x1x2x1024xf32, #tpu.memory_space<vmem>>, vector<1x1x1x16xf32>,
    %c0_769 = arith.constant 0 : index
    %c2_770 = arith.constant 2 : index
    %c10_771 = arith.constant 10 : index
    %c16_772 = arith.constant 16 : index
    %530 = vector.load %arg2[%c0_769, %c2_770, %c10_771, %c16_772] : memref<1x4x16x32xf32, #tpu.memory_space<vmem>>, vector<1x1x1x16xf32>
    %531 = vector.shape_cast %530 : vector<1x1x1x16xf32> to vector<16xf32>
    %c0_773 = arith.constant 0 : index
    %c0_774 = arith.constant 0 : index
    %c1_775 = arith.constant 1 : index
    %c672_776 = arith.constant 672 : index
    %532 = vector.load %arg3[%c0_773, %c0_774, %c1_775, %c672_776] : memref<1x1x2x1024xf32, #tpu.memory_space<vmem>>, vector<1x1x1x16xf32>
    %533 = vector.shape_cast %532 : vector<1x1x1x16xf32> to vector<16xf32>
    %534 = vector.shape_cast %531 : vector<16xf32> to vector<1x1x1x16xf32>
    tpu.vector_store %arg3[%c0_773, %c0_774, %c1_775, %c672_776], %534 {strides = array<i32>} : memref<1x1x2x1024xf32, #tpu.memory_space<vmem>>, vector<1x1x1x16xf32>,
    %c0_777 = arith.constant 0 : index
    %c2_778 = arith.constant 2 : index
    %c11_779 = arith.constant 11 : index
    %c16_780 = arith.constant 16 : index
    %535 = vector.load %arg2[%c0_777, %c2_778, %c11_779, %c16_780] : memref<1x4x16x32xf32, #tpu.memory_space<vmem>>, vector<1x1x1x16xf32>
    %536 = vector.shape_cast %535 : vector<1x1x1x16xf32> to vector<16xf32>
    %c0_781 = arith.constant 0 : index
    %c0_782 = arith.constant 0 : index
    %c1_783 = arith.constant 1 : index
    %c688_784 = arith.constant 688 : index
    %537 = vector.load %arg3[%c0_781, %c0_782, %c1_783, %c688_784] : memref<1x1x2x1024xf32, #tpu.memory_space<vmem>>, vector<1x1x1x16xf32>
    %538 = vector.shape_cast %537 : vector<1x1x1x16xf32> to vector<16xf32>
    %539 = vector.shape_cast %536 : vector<16xf32> to vector<1x1x1x16xf32>
    tpu.vector_store %arg3[%c0_781, %c0_782, %c1_783, %c688_784], %539 {strides = array<i32>} : memref<1x1x2x1024xf32, #tpu.memory_space<vmem>>, vector<1x1x1x16xf32>,
    %c0_785 = arith.constant 0 : index
    %c2_786 = arith.constant 2 : index
    %c12_787 = arith.constant 12 : index
    %c16_788 = arith.constant 16 : index
    %540 = vector.load %arg2[%c0_785, %c2_786, %c12_787, %c16_788] : memref<1x4x16x32xf32, #tpu.memory_space<vmem>>, vector<1x1x1x16xf32>
    %541 = vector.shape_cast %540 : vector<1x1x1x16xf32> to vector<16xf32>
    %c0_789 = arith.constant 0 : index
    %c0_790 = arith.constant 0 : index
    %c1_791 = arith.constant 1 : index
    %c704_792 = arith.constant 704 : index
    %542 = vector.load %arg3[%c0_789, %c0_790, %c1_791, %c704_792] : memref<1x1x2x1024xf32, #tpu.memory_space<vmem>>, vector<1x1x1x16xf32>
    %543 = vector.shape_cast %542 : vector<1x1x1x16xf32> to vector<16xf32>
    %544 = vector.shape_cast %541 : vector<16xf32> to vector<1x1x1x16xf32>
    tpu.vector_store %arg3[%c0_789, %c0_790, %c1_791, %c704_792], %544 {strides = array<i32>} : memref<1x1x2x1024xf32, #tpu.memory_space<vmem>>, vector<1x1x1x16xf32>,
    %c0_793 = arith.constant 0 : index
    %c2_794 = arith.constant 2 : index
    %c13_795 = arith.constant 13 : index
    %c16_796 = arith.constant 16 : index
    %545 = vector.load %arg2[%c0_793, %c2_794, %c13_795, %c16_796] : memref<1x4x16x32xf32, #tpu.memory_space<vmem>>, vector<1x1x1x16xf32>
    %546 = vector.shape_cast %545 : vector<1x1x1x16xf32> to vector<16xf32>
    %c0_797 = arith.constant 0 : index
    %c0_798 = arith.constant 0 : index
    %c1_799 = arith.constant 1 : index
    %c720_800 = arith.constant 720 : index
    %547 = vector.load %arg3[%c0_797, %c0_798, %c1_799, %c720_800] : memref<1x1x2x1024xf32, #tpu.memory_space<vmem>>, vector<1x1x1x16xf32>
    %548 = vector.shape_cast %547 : vector<1x1x1x16xf32> to vector<16xf32>
    %549 = vector.shape_cast %546 : vector<16xf32> to vector<1x1x1x16xf32>
    tpu.vector_store %arg3[%c0_797, %c0_798, %c1_799, %c720_800], %549 {strides = array<i32>} : memref<1x1x2x1024xf32, #tpu.memory_space<vmem>>, vector<1x1x1x16xf32>,
    %c0_801 = arith.constant 0 : index
    %c2_802 = arith.constant 2 : index
    %c14_803 = arith.constant 14 : index
    %c16_804 = arith.constant 16 : index
    %550 = vector.load %arg2[%c0_801, %c2_802, %c14_803, %c16_804] : memref<1x4x16x32xf32, #tpu.memory_space<vmem>>, vector<1x1x1x16xf32>
    %551 = vector.shape_cast %550 : vector<1x1x1x16xf32> to vector<16xf32>
    %c0_805 = arith.constant 0 : index
    %c0_806 = arith.constant 0 : index
    %c1_807 = arith.constant 1 : index
    %c736_808 = arith.constant 736 : index
    %552 = vector.load %arg3[%c0_805, %c0_806, %c1_807, %c736_808] : memref<1x1x2x1024xf32, #tpu.memory_space<vmem>>, vector<1x1x1x16xf32>
    %553 = vector.shape_cast %552 : vector<1x1x1x16xf32> to vector<16xf32>
    %554 = vector.shape_cast %551 : vector<16xf32> to vector<1x1x1x16xf32>
    tpu.vector_store %arg3[%c0_805, %c0_806, %c1_807, %c736_808], %554 {strides = array<i32>} : memref<1x1x2x1024xf32, #tpu.memory_space<vmem>>, vector<1x1x1x16xf32>,
    %c0_809 = arith.constant 0 : index
    %c2_810 = arith.constant 2 : index
    %c15_811 = arith.constant 15 : index
    %c16_812 = arith.constant 16 : index
    %555 = vector.load %arg2[%c0_809, %c2_810, %c15_811, %c16_812] : memref<1x4x16x32xf32, #tpu.memory_space<vmem>>, vector<1x1x1x16xf32>
    %556 = vector.shape_cast %555 : vector<1x1x1x16xf32> to vector<16xf32>
    %c0_813 = arith.constant 0 : index
    %c0_814 = arith.constant 0 : index
    %c1_815 = arith.constant 1 : index
    %c752_816 = arith.constant 752 : index
    %557 = vector.load %arg3[%c0_813, %c0_814, %c1_815, %c752_816] : memref<1x1x2x1024xf32, #tpu.memory_space<vmem>>, vector<1x1x1x16xf32>
    %558 = vector.shape_cast %557 : vector<1x1x1x16xf32> to vector<16xf32>
    %559 = vector.shape_cast %556 : vector<16xf32> to vector<1x1x1x16xf32>
    tpu.vector_store %arg3[%c0_813, %c0_814, %c1_815, %c752_816], %559 {strides = array<i32>} : memref<1x1x2x1024xf32, #tpu.memory_space<vmem>>, vector<1x1x1x16xf32>,
    %c0_817 = arith.constant 0 : index
    %c3_818 = arith.constant 3 : index
    %c0_819 = arith.constant 0 : index
    %c16_820 = arith.constant 16 : index
    %560 = vector.load %arg2[%c0_817, %c3_818, %c0_819, %c16_820] : memref<1x4x16x32xf32, #tpu.memory_space<vmem>>, vector<1x1x1x16xf32>
    %561 = vector.shape_cast %560 : vector<1x1x1x16xf32> to vector<16xf32>
    %c0_821 = arith.constant 0 : index
    %c0_822 = arith.constant 0 : index
    %c1_823 = arith.constant 1 : index
    %c768_824 = arith.constant 768 : index
    %562 = vector.load %arg3[%c0_821, %c0_822, %c1_823, %c768_824] : memref<1x1x2x1024xf32, #tpu.memory_space<vmem>>, vector<1x1x1x16xf32>
    %563 = vector.shape_cast %562 : vector<1x1x1x16xf32> to vector<16xf32>
    %564 = vector.shape_cast %561 : vector<16xf32> to vector<1x1x1x16xf32>
    tpu.vector_store %arg3[%c0_821, %c0_822, %c1_823, %c768_824], %564 {strides = array<i32>} : memref<1x1x2x1024xf32, #tpu.memory_space<vmem>>, vector<1x1x1x16xf32>,
    %c0_825 = arith.constant 0 : index
    %c3_826 = arith.constant 3 : index
    %c1_827 = arith.constant 1 : index
    %c16_828 = arith.constant 16 : index
    %565 = vector.load %arg2[%c0_825, %c3_826, %c1_827, %c16_828] : memref<1x4x16x32xf32, #tpu.memory_space<vmem>>, vector<1x1x1x16xf32>
    %566 = vector.shape_cast %565 : vector<1x1x1x16xf32> to vector<16xf32>
    %c0_829 = arith.constant 0 : index
    %c0_830 = arith.constant 0 : index
    %c1_831 = arith.constant 1 : index
    %c784_832 = arith.constant 784 : index
    %567 = vector.load %arg3[%c0_829, %c0_830, %c1_831, %c784_832] : memref<1x1x2x1024xf32, #tpu.memory_space<vmem>>, vector<1x1x1x16xf32>
    %568 = vector.shape_cast %567 : vector<1x1x1x16xf32> to vector<16xf32>
    %569 = vector.shape_cast %566 : vector<16xf32> to vector<1x1x1x16xf32>
    tpu.vector_store %arg3[%c0_829, %c0_830, %c1_831, %c784_832], %569 {strides = array<i32>} : memref<1x1x2x1024xf32, #tpu.memory_space<vmem>>, vector<1x1x1x16xf32>,
    %c0_833 = arith.constant 0 : index
    %c3_834 = arith.constant 3 : index
    %c2_835 = arith.constant 2 : index
    %c16_836 = arith.constant 16 : index
    %570 = vector.load %arg2[%c0_833, %c3_834, %c2_835, %c16_836] : memref<1x4x16x32xf32, #tpu.memory_space<vmem>>, vector<1x1x1x16xf32>
    %571 = vector.shape_cast %570 : vector<1x1x1x16xf32> to vector<16xf32>
    %c0_837 = arith.constant 0 : index
    %c0_838 = arith.constant 0 : index
    %c1_839 = arith.constant 1 : index
    %c800_840 = arith.constant 800 : index
    %572 = vector.load %arg3[%c0_837, %c0_838, %c1_839, %c800_840] : memref<1x1x2x1024xf32, #tpu.memory_space<vmem>>, vector<1x1x1x16xf32>
    %573 = vector.shape_cast %572 : vector<1x1x1x16xf32> to vector<16xf32>
    %574 = vector.shape_cast %571 : vector<16xf32> to vector<1x1x1x16xf32>
    tpu.vector_store %arg3[%c0_837, %c0_838, %c1_839, %c800_840], %574 {strides = array<i32>} : memref<1x1x2x1024xf32, #tpu.memory_space<vmem>>, vector<1x1x1x16xf32>,
    %c0_841 = arith.constant 0 : index
    %c3_842 = arith.constant 3 : index
    %c3_843 = arith.constant 3 : index
    %c16_844 = arith.constant 16 : index
    %575 = vector.load %arg2[%c0_841, %c3_842, %c3_843, %c16_844] : memref<1x4x16x32xf32, #tpu.memory_space<vmem>>, vector<1x1x1x16xf32>
    %576 = vector.shape_cast %575 : vector<1x1x1x16xf32> to vector<16xf32>
    %c0_845 = arith.constant 0 : index
    %c0_846 = arith.constant 0 : index
    %c1_847 = arith.constant 1 : index
    %c816_848 = arith.constant 816 : index
    %577 = vector.load %arg3[%c0_845, %c0_846, %c1_847, %c816_848] : memref<1x1x2x1024xf32, #tpu.memory_space<vmem>>, vector<1x1x1x16xf32>
    %578 = vector.shape_cast %577 : vector<1x1x1x16xf32> to vector<16xf32>
    %579 = vector.shape_cast %576 : vector<16xf32> to vector<1x1x1x16xf32>
    tpu.vector_store %arg3[%c0_845, %c0_846, %c1_847, %c816_848], %579 {strides = array<i32>} : memref<1x1x2x1024xf32, #tpu.memory_space<vmem>>, vector<1x1x1x16xf32>,
    %c0_849 = arith.constant 0 : index
    %c3_850 = arith.constant 3 : index
    %c4_851 = arith.constant 4 : index
    %c16_852 = arith.constant 16 : index
    %580 = vector.load %arg2[%c0_849, %c3_850, %c4_851, %c16_852] : memref<1x4x16x32xf32, #tpu.memory_space<vmem>>, vector<1x1x1x16xf32>
    %581 = vector.shape_cast %580 : vector<1x1x1x16xf32> to vector<16xf32>
    %c0_853 = arith.constant 0 : index
    %c0_854 = arith.constant 0 : index
    %c1_855 = arith.constant 1 : index
    %c832_856 = arith.constant 832 : index
    %582 = vector.load %arg3[%c0_853, %c0_854, %c1_855, %c832_856] : memref<1x1x2x1024xf32, #tpu.memory_space<vmem>>, vector<1x1x1x16xf32>
    %583 = vector.shape_cast %582 : vector<1x1x1x16xf32> to vector<16xf32>
    %584 = vector.shape_cast %581 : vector<16xf32> to vector<1x1x1x16xf32>
    tpu.vector_store %arg3[%c0_853, %c0_854, %c1_855, %c832_856], %584 {strides = array<i32>} : memref<1x1x2x1024xf32, #tpu.memory_space<vmem>>, vector<1x1x1x16xf32>,
    %c0_857 = arith.constant 0 : index
    %c3_858 = arith.constant 3 : index
    %c5_859 = arith.constant 5 : index
    %c16_860 = arith.constant 16 : index
    %585 = vector.load %arg2[%c0_857, %c3_858, %c5_859, %c16_860] : memref<1x4x16x32xf32, #tpu.memory_space<vmem>>, vector<1x1x1x16xf32>
    %586 = vector.shape_cast %585 : vector<1x1x1x16xf32> to vector<16xf32>
    %c0_861 = arith.constant 0 : index
    %c0_862 = arith.constant 0 : index
    %c1_863 = arith.constant 1 : index
    %c848_864 = arith.constant 848 : index
    %587 = vector.load %arg3[%c0_861, %c0_862, %c1_863, %c848_864] : memref<1x1x2x1024xf32, #tpu.memory_space<vmem>>, vector<1x1x1x16xf32>
    %588 = vector.shape_cast %587 : vector<1x1x1x16xf32> to vector<16xf32>
    %589 = vector.shape_cast %586 : vector<16xf32> to vector<1x1x1x16xf32>
    tpu.vector_store %arg3[%c0_861, %c0_862, %c1_863, %c848_864], %589 {strides = array<i32>} : memref<1x1x2x1024xf32, #tpu.memory_space<vmem>>, vector<1x1x1x16xf32>,
    %c0_865 = arith.constant 0 : index
    %c3_866 = arith.constant 3 : index
    %c6_867 = arith.constant 6 : index
    %c16_868 = arith.constant 16 : index
    %590 = vector.load %arg2[%c0_865, %c3_866, %c6_867, %c16_868] : memref<1x4x16x32xf32, #tpu.memory_space<vmem>>, vector<1x1x1x16xf32>
    %591 = vector.shape_cast %590 : vector<1x1x1x16xf32> to vector<16xf32>
    %c0_869 = arith.constant 0 : index
    %c0_870 = arith.constant 0 : index
    %c1_871 = arith.constant 1 : index
    %c864_872 = arith.constant 864 : index
    %592 = vector.load %arg3[%c0_869, %c0_870, %c1_871, %c864_872] : memref<1x1x2x1024xf32, #tpu.memory_space<vmem>>, vector<1x1x1x16xf32>
    %593 = vector.shape_cast %592 : vector<1x1x1x16xf32> to vector<16xf32>
    %594 = vector.shape_cast %591 : vector<16xf32> to vector<1x1x1x16xf32>
    tpu.vector_store %arg3[%c0_869, %c0_870, %c1_871, %c864_872], %594 {strides = array<i32>} : memref<1x1x2x1024xf32, #tpu.memory_space<vmem>>, vector<1x1x1x16xf32>,
    %c0_873 = arith.constant 0 : index
    %c3_874 = arith.constant 3 : index
    %c7_875 = arith.constant 7 : index
    %c16_876 = arith.constant 16 : index
    %595 = vector.load %arg2[%c0_873, %c3_874, %c7_875, %c16_876] : memref<1x4x16x32xf32, #tpu.memory_space<vmem>>, vector<1x1x1x16xf32>
    %596 = vector.shape_cast %595 : vector<1x1x1x16xf32> to vector<16xf32>
    %c0_877 = arith.constant 0 : index
    %c0_878 = arith.constant 0 : index
    %c1_879 = arith.constant 1 : index
    %c880_880 = arith.constant 880 : index
    %597 = vector.load %arg3[%c0_877, %c0_878, %c1_879, %c880_880] : memref<1x1x2x1024xf32, #tpu.memory_space<vmem>>, vector<1x1x1x16xf32>
    %598 = vector.shape_cast %597 : vector<1x1x1x16xf32> to vector<16xf32>
    %599 = vector.shape_cast %596 : vector<16xf32> to vector<1x1x1x16xf32>
    tpu.vector_store %arg3[%c0_877, %c0_878, %c1_879, %c880_880], %599 {strides = array<i32>} : memref<1x1x2x1024xf32, #tpu.memory_space<vmem>>, vector<1x1x1x16xf32>,
    %c0_881 = arith.constant 0 : index
    %c3_882 = arith.constant 3 : index
    %c8_883 = arith.constant 8 : index
    %c16_884 = arith.constant 16 : index
    %600 = vector.load %arg2[%c0_881, %c3_882, %c8_883, %c16_884] : memref<1x4x16x32xf32, #tpu.memory_space<vmem>>, vector<1x1x1x16xf32>
    %601 = vector.shape_cast %600 : vector<1x1x1x16xf32> to vector<16xf32>
    %c0_885 = arith.constant 0 : index
    %c0_886 = arith.constant 0 : index
    %c1_887 = arith.constant 1 : index
    %c896_888 = arith.constant 896 : index
    %602 = vector.load %arg3[%c0_885, %c0_886, %c1_887, %c896_888] : memref<1x1x2x1024xf32, #tpu.memory_space<vmem>>, vector<1x1x1x16xf32>
    %603 = vector.shape_cast %602 : vector<1x1x1x16xf32> to vector<16xf32>
    %604 = vector.shape_cast %601 : vector<16xf32> to vector<1x1x1x16xf32>
    tpu.vector_store %arg3[%c0_885, %c0_886, %c1_887, %c896_888], %604 {strides = array<i32>} : memref<1x1x2x1024xf32, #tpu.memory_space<vmem>>, vector<1x1x1x16xf32>,
    %c0_889 = arith.constant 0 : index
    %c3_890 = arith.constant 3 : index
    %c9_891 = arith.constant 9 : index
    %c16_892 = arith.constant 16 : index
    %605 = vector.load %arg2[%c0_889, %c3_890, %c9_891, %c16_892] : memref<1x4x16x32xf32, #tpu.memory_space<vmem>>, vector<1x1x1x16xf32>
    %606 = vector.shape_cast %605 : vector<1x1x1x16xf32> to vector<16xf32>
    %c0_893 = arith.constant 0 : index
    %c0_894 = arith.constant 0 : index
    %c1_895 = arith.constant 1 : index
    %c912_896 = arith.constant 912 : index
    %607 = vector.load %arg3[%c0_893, %c0_894, %c1_895, %c912_896] : memref<1x1x2x1024xf32, #tpu.memory_space<vmem>>, vector<1x1x1x16xf32>
    %608 = vector.shape_cast %607 : vector<1x1x1x16xf32> to vector<16xf32>
    %609 = vector.shape_cast %606 : vector<16xf32> to vector<1x1x1x16xf32>
    tpu.vector_store %arg3[%c0_893, %c0_894, %c1_895, %c912_896], %609 {strides = array<i32>} : memref<1x1x2x1024xf32, #tpu.memory_space<vmem>>, vector<1x1x1x16xf32>,
    %c0_897 = arith.constant 0 : index
    %c3_898 = arith.constant 3 : index
    %c10_899 = arith.constant 10 : index
    %c16_900 = arith.constant 16 : index
    %610 = vector.load %arg2[%c0_897, %c3_898, %c10_899, %c16_900] : memref<1x4x16x32xf32, #tpu.memory_space<vmem>>, vector<1x1x1x16xf32>
    %611 = vector.shape_cast %610 : vector<1x1x1x16xf32> to vector<16xf32>
    %c0_901 = arith.constant 0 : index
    %c0_902 = arith.constant 0 : index
    %c1_903 = arith.constant 1 : index
    %c928_904 = arith.constant 928 : index
    %612 = vector.load %arg3[%c0_901, %c0_902, %c1_903, %c928_904] : memref<1x1x2x1024xf32, #tpu.memory_space<vmem>>, vector<1x1x1x16xf32>
    %613 = vector.shape_cast %612 : vector<1x1x1x16xf32> to vector<16xf32>
    %614 = vector.shape_cast %611 : vector<16xf32> to vector<1x1x1x16xf32>
    tpu.vector_store %arg3[%c0_901, %c0_902, %c1_903, %c928_904], %614 {strides = array<i32>} : memref<1x1x2x1024xf32, #tpu.memory_space<vmem>>, vector<1x1x1x16xf32>,
    %c0_905 = arith.constant 0 : index
    %c3_906 = arith.constant 3 : index
    %c11_907 = arith.constant 11 : index
    %c16_908 = arith.constant 16 : index
    %615 = vector.load %arg2[%c0_905, %c3_906, %c11_907, %c16_908] : memref<1x4x16x32xf32, #tpu.memory_space<vmem>>, vector<1x1x1x16xf32>
    %616 = vector.shape_cast %615 : vector<1x1x1x16xf32> to vector<16xf32>
    %c0_909 = arith.constant 0 : index
    %c0_910 = arith.constant 0 : index
    %c1_911 = arith.constant 1 : index
    %c944_912 = arith.constant 944 : index
    %617 = vector.load %arg3[%c0_909, %c0_910, %c1_911, %c944_912] : memref<1x1x2x1024xf32, #tpu.memory_space<vmem>>, vector<1x1x1x16xf32>
    %618 = vector.shape_cast %617 : vector<1x1x1x16xf32> to vector<16xf32>
    %619 = vector.shape_cast %616 : vector<16xf32> to vector<1x1x1x16xf32>
    tpu.vector_store %arg3[%c0_909, %c0_910, %c1_911, %c944_912], %619 {strides = array<i32>} : memref<1x1x2x1024xf32, #tpu.memory_space<vmem>>, vector<1x1x1x16xf32>,
    %c0_913 = arith.constant 0 : index
    %c3_914 = arith.constant 3 : index
    %c12_915 = arith.constant 12 : index
    %c16_916 = arith.constant 16 : index
    %620 = vector.load %arg2[%c0_913, %c3_914, %c12_915, %c16_916] : memref<1x4x16x32xf32, #tpu.memory_space<vmem>>, vector<1x1x1x16xf32>
    %621 = vector.shape_cast %620 : vector<1x1x1x16xf32> to vector<16xf32>
    %c0_917 = arith.constant 0 : index
    %c0_918 = arith.constant 0 : index
    %c1_919 = arith.constant 1 : index
    %c960_920 = arith.constant 960 : index
    %622 = vector.load %arg3[%c0_917, %c0_918, %c1_919, %c960_920] : memref<1x1x2x1024xf32, #tpu.memory_space<vmem>>, vector<1x1x1x16xf32>
    %623 = vector.shape_cast %622 : vector<1x1x1x16xf32> to vector<16xf32>
    %624 = vector.shape_cast %621 : vector<16xf32> to vector<1x1x1x16xf32>
    tpu.vector_store %arg3[%c0_917, %c0_918, %c1_919, %c960_920], %624 {strides = array<i32>} : memref<1x1x2x1024xf32, #tpu.memory_space<vmem>>, vector<1x1x1x16xf32>,
    %c0_921 = arith.constant 0 : index
    %c3_922 = arith.constant 3 : index
    %c13_923 = arith.constant 13 : index
    %c16_924 = arith.constant 16 : index
    %625 = vector.load %arg2[%c0_921, %c3_922, %c13_923, %c16_924] : memref<1x4x16x32xf32, #tpu.memory_space<vmem>>, vector<1x1x1x16xf32>
    %626 = vector.shape_cast %625 : vector<1x1x1x16xf32> to vector<16xf32>
    %c0_925 = arith.constant 0 : index
    %c0_926 = arith.constant 0 : index
    %c1_927 = arith.constant 1 : index
    %c976_928 = arith.constant 976 : index
    %627 = vector.load %arg3[%c0_925, %c0_926, %c1_927, %c976_928] : memref<1x1x2x1024xf32, #tpu.memory_space<vmem>>, vector<1x1x1x16xf32>
    %628 = vector.shape_cast %627 : vector<1x1x1x16xf32> to vector<16xf32>
    %629 = vector.shape_cast %626 : vector<16xf32> to vector<1x1x1x16xf32>
    tpu.vector_store %arg3[%c0_925, %c0_926, %c1_927, %c976_928], %629 {strides = array<i32>} : memref<1x1x2x1024xf32, #tpu.memory_space<vmem>>, vector<1x1x1x16xf32>,
    %c0_929 = arith.constant 0 : index
    %c3_930 = arith.constant 3 : index
    %c14_931 = arith.constant 14 : index
    %c16_932 = arith.constant 16 : index
    %630 = vector.load %arg2[%c0_929, %c3_930, %c14_931, %c16_932] : memref<1x4x16x32xf32, #tpu.memory_space<vmem>>, vector<1x1x1x16xf32>
    %631 = vector.shape_cast %630 : vector<1x1x1x16xf32> to vector<16xf32>
    %c0_933 = arith.constant 0 : index
    %c0_934 = arith.constant 0 : index
    %c1_935 = arith.constant 1 : index
    %c992_936 = arith.constant 992 : index
    %632 = vector.load %arg3[%c0_933, %c0_934, %c1_935, %c992_936] : memref<1x1x2x1024xf32, #tpu.memory_space<vmem>>, vector<1x1x1x16xf32>
    %633 = vector.shape_cast %632 : vector<1x1x1x16xf32> to vector<16xf32>
    %634 = vector.shape_cast %631 : vector<16xf32> to vector<1x1x1x16xf32>
    tpu.vector_store %arg3[%c0_933, %c0_934, %c1_935, %c992_936], %634 {strides = array<i32>} : memref<1x1x2x1024xf32, #tpu.memory_space<vmem>>, vector<1x1x1x16xf32>,
    %c0_937 = arith.constant 0 : index
    %c3_938 = arith.constant 3 : index
    %c15_939 = arith.constant 15 : index
    %c16_940 = arith.constant 16 : index
    %635 = vector.load %arg2[%c0_937, %c3_938, %c15_939, %c16_940] : memref<1x4x16x32xf32, #tpu.memory_space<vmem>>, vector<1x1x1x16xf32>
    %636 = vector.shape_cast %635 : vector<1x1x1x16xf32> to vector<16xf32>
    %c0_941 = arith.constant 0 : index
    %c0_942 = arith.constant 0 : index
    %c1_943 = arith.constant 1 : index
    %c1008_944 = arith.constant 1008 : index
    %637 = vector.load %arg3[%c0_941, %c0_942, %c1_943, %c1008_944] : memref<1x1x2x1024xf32, #tpu.memory_space<vmem>>, vector<1x1x1x16xf32>
    %638 = vector.shape_cast %637 : vector<1x1x1x16xf32> to vector<16xf32>
    %639 = vector.shape_cast %636 : vector<16xf32> to vector<1x1x1x16xf32>
    tpu.vector_store %arg3[%c0_941, %c0_942, %c1_943, %c1008_944], %639 {strides = array<i32>} : memref<1x1x2x1024xf32, #tpu.memory_space<vmem>>, vector<1x1x1x16xf32>,
    return
  }
  func.func @transform_0(%arg0: i32, %arg1: i32) -> (i32, i32, i32, i32) {
    %c0_i32 = arith.constant 0 : i32
    %c0_i32_0 = arith.constant 0 : i32
    %c0_i32_1 = arith.constant 0 : i32
    return %arg0, %c0_i32, %arg1, %c0_i32_0 : i32, i32, i32, i32
  }
  func.func @transform_1(%arg0: i32, %arg1: i32) -> (i32, i32, i32, i32) {
    %c0_i32 = arith.constant 0 : i32
    %c0_i32_0 = arith.constant 0 : i32
    %c0_i32_1 = arith.constant 0 : i32
    return %arg0, %arg1, %c0_i32, %c0_i32_0 : i32, i32, i32, i32
  }
}

</mosaic_0001>

<llo_original>
// kernel: tpu_custom_call.1
$region0: #{tpu_custom_call.1}
  #allocation0 [shape = 'u32[]', space=smem, size = 0x4, offset = 0x4, fixed_abs, tag = 'smem constant byte address 0x4 - core index']
  #allocation1 [shape = 'u32[144,128]{1,0:T(1,128)}', space=vmem, size = 0x12000, scoped, tag = 'internal scratch']
  #allocation6 [shape = 's32[]', space=sflag, size = 0x4, offset = 0, fixed_abs, tag = 'sflag constant byte address 0x0 - dummy sync flag']
  %s0 = inlined_call_operand.hbm [shape: f32[2,4,32,32], index: 0, kind: input, shape index: {}]
  %s1 = inlined_call_operand.hbm [shape: f32[2,2,2,1024], index: 1, kind: output, shape index: {}]
  %s2 = sld [smem:[#allocation0]]
  $region41: #{tpu_custom_call.1} parent=0
    _
  %s4 = ssub.s32 1, %s2
  %s5 = scalar_select 0, %s4, %s2
  $region1: #{tpu_custom_call.1} parent=0
    #allocation2 [shape = 'u8[65536]{0}', space=vmem, size = 0x10000, scoped, tag = 'input window, operand 0']
    #allocation3 [shape = 's32[2]{0}', space=sflag, size = 0x8, scoped, tag = 'scoped memory for tpu_custom_call.1']
    #allocation4 [shape = 's32[2]{0}', space=sflag, size = 0x8, scoped, tag = 'scoped memory for tpu_custom_call.1']
    #allocation5 [shape = 'u8[16384]{0}', space=vmem, size = 0x4000, scoped, tag = 'output window, operand 0']
    %6 = vsyncpa [#allocation3], 0
    %s7 = scalar_lea.sflag [#allocation3], 1
    %8 = vsyncpa %s7, 0
    %9 = vsyncpa [#allocation4], 0
    %s10 = scalar_lea.sflag [#allocation4], 1
    %11 = vsyncpa %s10, 0
    loop: start=0, step=1, limit=6
    $region2: #{tpu_custom_call.1} parent=1 // loop_pre_header
      _
    $region3: #{tpu_custom_call.1} parent=1 // loop_header
      %s13 = sphi 0, %s17
      %p14 = scmp.ge.s32.totalorder %s13, 6
      %s20 = sphi 0, %s32
      %s21 = sphi 0, %s28
      %s22 = sphi 0, %s20
      %s23 = sphi 0, %s21
      %s24 = sphi 0, %s22
      %s25 = sphi 0, %s23
      %s37 = sphi 0, %s39
      %s40 = sphi 0, %s37
      %s41 = sphi 0, %s40
      %s57 = sphi 0, %s41
      %s65 = sphi 0, %s67
      %s68 = sphi 0, %s65
      %s69 = sphi 0, %s68
      %s85 = sphi 0, %s69
    $region4: #{tpu_custom_call.1} parent=1 // loop_header_branch
      %16 = sbr.rel (%p14) target = $region8
    $region5: #{tpu_custom_call.1} parent=1 // loop_body
      %s18 = ssub.s32 %s13, 1
      %s19 = ssub.s32 %s13, 2
      %s26 = sadd.s32 1, %s21
      %p27 = scmp.ge.s32.totalorder %s26, 2
      %s28 = scalar_select %p27, 0, %s26
      %s29 = sadd.s32 1, %s20
      %s30 = scalar_select %p27, %s29, %s20
      %p31 = scmp.ge.s32.totalorder %s30, 2
      %s32 = scalar_select %p31, 0, %s30
      %s33 = ssub.s32 %s20, %s32
      %s34 = ssub.s32 %s21, %s28
      %s35 = sor.u32 %s33, %s34
      %p36 = scmp.eq.s32.totalorder %s35, 0
      %s38 = sadd.s32 %s37, 1
      %s39 = scalar_select %p36, %s37, %s38
      %p42 = pneg %p36
      %p43 = scmp.eq.s32.totalorder %s13, 3
      %p44 = por %p42, %p43
      %p45 = scmp.ne.s32.totalorder %s37, %s40
      %p46 = scmp.eq.s32.totalorder %s13, 0
      %p47 = por %p45, %p46
      %p48 = scmp.ne.s32.totalorder %s37, %s40
      %p49 = scmp.eq.s32.totalorder %s18, 3
      %p50 = por %p48, %p49
      %p51 = scmp.ne.s32.totalorder %s40, %s41
      %p52 = scmp.eq.s32.totalorder %s18, 0
      %p53 = por %p51, %p52
      %p54 = scmp.ne.s32.totalorder %s40, %s41
      %p55 = scmp.eq.s32.totalorder %s19, 3
      %p56 = por %p54, %p55
      %p58 = scmp.ne.s32.totalorder %s41, %s57
      %p59 = scmp.eq.s32.totalorder %s19, 0
      %p60 = por %p58, %p59
      %s61 = ssub.s32 %s20, %s32
      %s62 = ssub.s32 %s21, %s28
      %s63 = sor.u32 %s61, %s62
      %p64 = scmp.eq.s32.totalorder %s63, 0
      %s66 = sadd.s32 %s65, 1
      %s67 = scalar_select %p64, %s65, %s66
      %p70 = pneg %p64
      %p71 = scmp.eq.s32.totalorder %s13, 3
      %p72 = por %p70, %p71
      %p73 = scmp.ne.s32.totalorder %s65, %s68
      %p74 = scmp.eq.s32.totalorder %s13, 0
      %p75 = por %p73, %p74
      %p76 = scmp.ne.s32.totalorder %s65, %s68
      %p77 = scmp.eq.s32.totalorder %s18, 3
      %p78 = por %p76, %p77
      %p79 = scmp.ne.s32.totalorder %s68, %s69
      %p80 = scmp.eq.s32.totalorder %s18, 0
      %p81 = por %p79, %p80
      %p82 = scmp.ne.s32.totalorder %s68, %s69
      %p83 = scmp.eq.s32.totalorder %s19, 3
      %p84 = por %p82, %p83
      %p86 = scmp.ne.s32.totalorder %s69, %s85
      %p87 = scmp.eq.s32.totalorder %s19, 0
      %p88 = por %p86, %p87
      %p89 = scmp.le.s32.totalorder 1, %s13
      %p90 = scmp.lt.s32.totalorder %s13, 5
      %p91 = pnand %p89, %p90
      %p92 = pneg %p91
      // Predicated region
      $region9: #{tpu_custom_call.1} parent=5 // pred_check
        _
      $region10: #{tpu_custom_call.1} parent=5 // pred_check_branch
        %94 = sbr.rel (%p91) target = $region12
      $region11: #{tpu_custom_call.1} parent=5 // pred_region
        %s95 = ssub.s32 %s13, 1
      $region12: #{tpu_custom_call.1} parent=5 // pred_fallthru
        _
      %p96 = scmp.lt.s32.totalorder %s13, 4
      // Predicated region
      $region13: #{tpu_custom_call.1} parent=5 // pred_check
        %p97 = pneg %p96
      $region14: #{tpu_custom_call.1} parent=5 // pred_check_branch
        %99 = sbr.rel (%p97) target = $region16
      $region15: #{tpu_custom_call.1} parent=5 // pred_region
        // Predicated region
        $region17: #{tpu_custom_call.1} parent=15 // pred_check
          %p100 = pneg %p47
        $region18: #{tpu_custom_call.1} parent=15 // pred_check_branch
          %102 = sbr.rel (%p100) target = $region20
        $region19: #{tpu_custom_call.1} parent=15 // pred_region
          #allocation7 [shape = 'u32[6]{0}', space=smem, size = 0x18, scoped, tag = 'DMA stride descriptor']
          %s103 = sand.u32 %s37, 1
          %s104 = scalar_lea.sflag [#allocation3], %s103
          %s105 = sand.u32 %s37, 1
          %s106 = smul.addr %s105, 64
          %s107 = scalar_lea.vmem [#allocation2], %s106
          %s108 = smul.u32 2, %s21
          %s110 = ssub.s32 1024, 1024
          %111 = vsyncadd %s104, %s110
          %s112 = smul.addr %s20, 16
          %s113 = sadd.s32 %s108, %s112
          %s114 = smul.addr %s113, 128
          %s115 = scalar_lea.hbm %s0, %s114
          %s117 = sshll.u32 1, 14
          %s118 = sxor.u32 4294967295, %s117
          %s120 = sld [smem:[#allocation0]]
          %s121 = sadd.s32 2, %s120
          %s123 = sshll.u32 7, 26
          %s124 = sxor.u32 4294967295, %s123
          %s125 = sand.u32 0, %s124
          %s126 = sshll.u32 %s121, 26
          %s127 = sor.u32 %s125, %s126
          %s128 = sshll.u32 %s107, 4
          %s129 = int_to_ptr.vmem [resolvable:$true] %s128
          %135 = sst [smem:[#allocation7]] 512
          %s136 = scalar_lea.smem [#allocation7], 1
          %137 = sst [smem:[%s136]] 256
          %s138 = scalar_lea.smem [#allocation7], 2
          %139 = sst [smem:[%s138]] 2
          %s140 = scalar_lea.smem [#allocation7], 3
          %141 = sst [smem:[%s140]] 128
          %s142 = scalar_lea.smem [#allocation7], 4
          %143 = sst [smem:[%s142]] 128
          %s144 = scalar_lea.smem [#allocation7], 5
          %145 = sst [smem:[%s144]] 8
          %147 = dma.general %s115, 1024, %s129, %s104, 131072, [#allocation7], %s127, 0
        $region20: #{tpu_custom_call.1} parent=15 // pred_fallthru
          _
      $region16: #{tpu_custom_call.1} parent=5 // pred_fallthru
        _
      %p148 = scmp.le.s32.totalorder 1, %s13
      %p149 = scmp.lt.s32.totalorder %s13, 5
      %p150 = pnand %p148, %p149
      %p151 = pneg %p150
      // Predicated region
      $region21: #{tpu_custom_call.1} parent=5 // pred_check
        _
      $region22: #{tpu_custom_call.1} parent=5 // pred_check_branch
        %153 = sbr.rel (%p150) target = $region24
      $region23: #{tpu_custom_call.1} parent=5 // pred_region
        %s154 = ssub.s32 %s13, 1
        %s155 = sand.u32 %s40, 1
        %s156 = scalar_lea.sflag [#allocation3], %s155
        %s157 = sand.u32 %s40, 1
        %s158 = smul.addr %s157, 64
        %s159 = scalar_lea.vmem [#allocation2], %s158
        // Predicated region
        $region25: #{tpu_custom_call.1} parent=23 // pred_check
          %p160 = pneg %p53
        $region26: #{tpu_custom_call.1} parent=23 // pred_check_branch
          %162 = sbr.rel (%p160) target = $region28
        $region27: #{tpu_custom_call.1} parent=23 // pred_region
          %163 = dma.done %s156, 1024
        $region28: #{tpu_custom_call.1} parent=23 // pred_fallthru
          _
        %s164 = sand.u32 %s40, 1
        %s165 = scalar_lea.sflag [#allocation3], %s164
        %s166 = sand.u32 %s40, 1
        %s167 = smul.addr %s166, 64
        %s168 = scalar_lea.vmem [#allocation2], %s167
        %p169 = pneg %p53
        %p170 = pneg %p50
        %p171 = pneg %p81
        %p172 = pneg %p78
        %s173 = sand.u32 %s68, 1
        %s174 = scalar_lea.sflag [#allocation4], %s173
        %s175 = sand.u32 %s68, 1
        %s176 = smul.addr %s175, 16
        %s177 = scalar_lea.vmem [#allocation5], %s176
        %s178 = smul.u32 2, %s23
        %v179 = vld [vmem:[%s159] sm:$0x1]
        %vm180 = vcmask 122880
        %181 = vst.msk [vmem:[%s177] sm:$0x1] %vm180, %v179
        %v182 = vld [vmem:[%s159 + $0x1] sm:$0x1]
        %v185 = vunpack.c.l.s4 1983009808
        %v186 = vunpack.c.0.s8 %v185
        %v187 = vlaneseq
        %v188 = vshrl.u32 %v187, 7
        %v189 = vsub.s32 %v186, %v188
        %v190 = vrot.slane %v182, %v189
        %191 = vrot.lane.b32.xlu0 %v190, 16
        %v192 = vpop.permute.xlu0 %191
        %vm194 = vcmask 254080
        %195 = vst.msk [vmem:[%s177] sm:$0x1] %vm194, %v192
        %v196 = vld [vmem:[%s159 + $0x2] sm:$0x1]
        %v199 = vunpack.c.l.s4 1983009808
        %v200 = vunpack.c.0.s8 %v199
        %v201 = vlaneseq
        %v202 = vshrl.u32 %v201, 7
        %v203 = vsub.s32 %v200, %v202
        %v204 = vrot.slane %v196, %v203
        %205 = vrot.lane.b32.xlu0 %v204, 32
        %v206 = vpop.permute.xlu0 %205
        %vm208 = vcmask 385280
        %209 = vst.msk [vmem:[%s177] sm:$0x1] %vm208, %v206
        %v210 = vld [vmem:[%s159 + $0x3] sm:$0x1]
        %v213 = vunpack.c.l.s4 1983009808
        %v214 = vunpack.c.0.s8 %v213
        %v215 = vlaneseq
        %v216 = vshrl.u32 %v215, 7
        %v217 = vsub.s32 %v214, %v216
        %v218 = vrot.slane %v210, %v217
        %219 = vrot.lane.b32.xlu0 %v218, 48
        %v220 = vpop.permute.xlu0 %219
        %vm222 = vcmask 516480
        %223 = vst.msk [vmem:[%s177] sm:$0x1] %vm222, %v220
        %v224 = vld [vmem:[%s159 + $0x4] sm:$0x1]
        %v227 = vunpack.c.l.s4 1983009808
        %v228 = vunpack.c.0.s8 %v227
        %v229 = vlaneseq
        %v230 = vshrl.u32 %v229, 7
        %v231 = vsub.s32 %v228, %v230
        %v232 = vrot.slane %v224, %v231
        %233 = vrot.lane.b32.xlu0 %v232, 64
        %v234 = vpop.permute.xlu0 %233
        %vm236 = vcmask 647680
        %237 = vst.msk [vmem:[%s177] sm:$0x1] %vm236, %v234
        %v238 = vld [vmem:[%s159 + $0x5] sm:$0x1]
        %v241 = vunpack.c.l.s4 1983009808
        %v242 = vunpack.c.0.s8 %v241
        %v243 = vlaneseq
        %v244 = vshrl.u32 %v243, 7
        %v245 = vsub.s32 %v242, %v244
        %v246 = vrot.slane %v238, %v245
        %247 = vrot.lane.b32.xlu0 %v246, 80
        %v248 = vpop.permute.xlu0 %247
        %vm250 = vcmask 778880
        %251 = vst.msk [vmem:[%s177] sm:$0x1] %vm250, %v248
        %v252 = vld [vmem:[%s159 + $0x6] sm:$0x1]
        %v255 = vunpack.c.l.s4 1983009808
        %v256 = vunpack.c.0.s8 %v255
        %v257 = vlaneseq
        %v258 = vshrl.u32 %v257, 7
        %v259 = vsub.s32 %v256, %v258
        %v260 = vrot.slane %v252, %v259
        %261 = vrot.lane.b32.xlu0 %v260, 96
        %v262 = vpop.permute.xlu0 %261
        %vm264 = vcmask 910080
        %265 = vst.msk [vmem:[%s177] sm:$0x1] %vm264, %v262
        %v266 = vld [vmem:[%s159 + $0x7] sm:$0x1]
        %v269 = vunpack.c.l.s4 1983009808
        %v270 = vunpack.c.0.s8 %v269
        %v271 = vlaneseq
        %v272 = vshrl.u32 %v271, 7
        %v273 = vsub.s32 %v270, %v272
        %v274 = vrot.slane %v266, %v273
        %275 = vrot.lane.b32.xlu0 %v274, 112
        %v276 = vpop.permute.xlu0 %275
        %vm278 = vcmask 1041280
        %279 = vst.msk [vmem:[%s177] sm:$0x1] %vm278, %v276
        %v280 = vld [vmem:[%s159 + $0x8] sm:$0x1]
        %281 = vst.msk [vmem:[%s177 + $0x2] sm:$0x1] %vm180, %v280
        %v282 = vld [vmem:[%s159 + $0x9] sm:$0x1]
        %v285 = vunpack.c.l.s4 1983009808
        %v286 = vunpack.c.0.s8 %v285
        %v287 = vlaneseq
        %v288 = vshrl.u32 %v287, 7
        %v289 = vsub.s32 %v286, %v288
        %v290 = vrot.slane %v282, %v289
        %291 = vrot.lane.b32.xlu0 %v290, 16
        %v292 = vpop.permute.xlu0 %291
        %294 = vst.msk [vmem:[%s177 + $0x2] sm:$0x1] %vm194, %v292
        %v295 = vld [vmem:[%s159 + $0xa] sm:$0x1]
        %v298 = vunpack.c.l.s4 1983009808
        %v299 = vunpack.c.0.s8 %v298
        %v300 = vlaneseq
        %v301 = vshrl.u32 %v300, 7
        %v302 = vsub.s32 %v299, %v301
        %v303 = vrot.slane %v295, %v302
        %304 = vrot.lane.b32.xlu0 %v303, 32
        %v305 = vpop.permute.xlu0 %304
        %307 = vst.msk [vmem:[%s177 + $0x2] sm:$0x1] %vm208, %v305
        %v308 = vld [vmem:[%s159 + $0xb] sm:$0x1]
        %v311 = vunpack.c.l.s4 1983009808
        %v312 = vunpack.c.0.s8 %v311
        %v313 = vlaneseq
        %v314 = vshrl.u32 %v313, 7
        %v315 = vsub.s32 %v312, %v314
        %v316 = vrot.slane %v308, %v315
        %317 = vrot.lane.b32.xlu0 %v316, 48
        %v318 = vpop.permute.xlu0 %317
        %320 = vst.msk [vmem:[%s177 + $0x2] sm:$0x1] %vm222, %v318
        %v321 = vld [vmem:[%s159 + $0xc] sm:$0x1]
        %v324 = vunpack.c.l.s4 1983009808
        %v325 = vunpack.c.0.s8 %v324
        %v326 = vlaneseq
        %v327 = vshrl.u32 %v326, 7
        %v328 = vsub.s32 %v325, %v327
        %v329 = vrot.slane %v321, %v328
        %330 = vrot.lane.b32.xlu0 %v329, 64
        %v331 = vpop.permute.xlu0 %330
        %333 = vst.msk [vmem:[%s177 + $0x2] sm:$0x1] %vm236, %v331
        %v334 = vld [vmem:[%s159 + $0xd] sm:$0x1]
        %v337 = vunpack.c.l.s4 1983009808
        %v338 = vunpack.c.0.s8 %v337
        %v339 = vlaneseq
        %v340 = vshrl.u32 %v339, 7
        %v341 = vsub.s32 %v338, %v340
        %v342 = vrot.slane %v334, %v341
        %343 = vrot.lane.b32.xlu0 %v342, 80
        %v344 = vpop.permute.xlu0 %343
        %346 = vst.msk [vmem:[%s177 + $0x2] sm:$0x1] %vm250, %v344
        %v347 = vld [vmem:[%s159 + $0xe] sm:$0x1]
        %v350 = vunpack.c.l.s4 1983009808
        %v351 = vunpack.c.0.s8 %v350
        %v352 = vlaneseq
        %v353 = vshrl.u32 %v352, 7
        %v354 = vsub.s32 %v351, %v353
        %v355 = vrot.slane %v347, %v354
        %356 = vrot.lane.b32.xlu0 %v355, 96
        %v357 = vpop.permute.xlu0 %356
        %359 = vst.msk [vmem:[%s177 + $0x2] sm:$0x1] %vm264, %v357
        %v360 = vld [vmem:[%s159 + $0xf] sm:$0x1]
        %v363 = vunpack.c.l.s4 1983009808
        %v364 = vunpack.c.0.s8 %v363
        %v365 = vlaneseq
        %v366 = vshrl.u32 %v365, 7
        %v367 = vsub.s32 %v364, %v366
        %v368 = vrot.slane %v360, %v367
        %369 = vrot.lane.b32.xlu0 %v368, 112
        %v370 = vpop.permute.xlu0 %369
        %372 = vst.msk [vmem:[%s177 + $0x2] sm:$0x1] %vm278, %v370
        %s373 = scalar_lea.vmem %s159, 16 [#allocation2]
        %v374 = vld [vmem:[%s373] sm:$0x1]
        %375 = vst.msk [vmem:[%s177 + $0x4] sm:$0x1] %vm180, %v374
        %v376 = vld [vmem:[%s373 + $0x1] sm:$0x1]
        %v379 = vunpack.c.l.s4 1983009808
        %v380 = vunpack.c.0.s8 %v379
        %v381 = vlaneseq
        %v382 = vshrl.u32 %v381, 7
        %v383 = vsub.s32 %v380, %v382
        %v384 = vrot.slane %v376, %v383
        %385 = vrot.lane.b32.xlu0 %v384, 16
        %v386 = vpop.permute.xlu0 %385
        %388 = vst.msk [vmem:[%s177 + $0x4] sm:$0x1] %vm194, %v386
        %v389 = vld [vmem:[%s373 + $0x2] sm:$0x1]
        %v392 = vunpack.c.l.s4 1983009808
        %v393 = vunpack.c.0.s8 %v392
        %v394 = vlaneseq
        %v395 = vshrl.u32 %v394, 7
        %v396 = vsub.s32 %v393, %v395
        %v397 = vrot.slane %v389, %v396
        %398 = vrot.lane.b32.xlu0 %v397, 32
        %v399 = vpop.permute.xlu0 %398
        %401 = vst.msk [vmem:[%s177 + $0x4] sm:$0x1] %vm208, %v399
        %v402 = vld [vmem:[%s373 + $0x3] sm:$0x1]
        %v405 = vunpack.c.l.s4 1983009808
        %v406 = vunpack.c.0.s8 %v405
        %v407 = vlaneseq
        %v408 = vshrl.u32 %v407, 7
        %v409 = vsub.s32 %v406, %v408
        %v410 = vrot.slane %v402, %v409
        %411 = vrot.lane.b32.xlu0 %v410, 48
        %v412 = vpop.permute.xlu0 %411
        %414 = vst.msk [vmem:[%s177 + $0x4] sm:$0x1] %vm222, %v412
        %v415 = vld [vmem:[%s373 + $0x4] sm:$0x1]
        %v418 = vunpack.c.l.s4 1983009808
        %v419 = vunpack.c.0.s8 %v418
        %v420 = vlaneseq
        %v421 = vshrl.u32 %v420, 7
        %v422 = vsub.s32 %v419, %v421
        %v423 = vrot.slane %v415, %v422
        %424 = vrot.lane.b32.xlu0 %v423, 64
        %v425 = vpop.permute.xlu0 %424
        %427 = vst.msk [vmem:[%s177 + $0x4] sm:$0x1] %vm236, %v425
        %v428 = vld [vmem:[%s373 + $0x5] sm:$0x1]
        %v431 = vunpack.c.l.s4 1983009808
        %v432 = vunpack.c.0.s8 %v431
        %v433 = vlaneseq
        %v434 = vshrl.u32 %v433, 7
        %v435 = vsub.s32 %v432, %v434
        %v436 = vrot.slane %v428, %v435
        %437 = vrot.lane.b32.xlu0 %v436, 80
        %v438 = vpop.permute.xlu0 %437
        %440 = vst.msk [vmem:[%s177 + $0x4] sm:$0x1] %vm250, %v438
        %v441 = vld [vmem:[%s373 + $0x6] sm:$0x1]
        %v444 = vunpack.c.l.s4 1983009808
        %v445 = vunpack.c.0.s8 %v444
        %v446 = vlaneseq
        %v447 = vshrl.u32 %v446, 7
        %v448 = vsub.s32 %v445, %v447
        %v449 = vrot.slane %v441, %v448
        %450 = vrot.lane.b32.xlu0 %v449, 96
        %v451 = vpop.permute.xlu0 %450
        %453 = vst.msk [vmem:[%s177 + $0x4] sm:$0x1] %vm264, %v451
        %v454 = vld [vmem:[%s373 + $0x7] sm:$0x1]
        %v457 = vunpack.c.l.s4 1983009808
        %v458 = vunpack.c.0.s8 %v457
        %v459 = vlaneseq
        %v460 = vshrl.u32 %v459, 7
        %v461 = vsub.s32 %v458, %v460
        %v462 = vrot.slane %v454, %v461
        %463 = vrot.lane.b32.xlu0 %v462, 112
        %v464 = vpop.permute.xlu0 %463
        %466 = vst.msk [vmem:[%s177 + $0x4] sm:$0x1] %vm278, %v464
        %v467 = vld [vmem:[%s373 + $0x8] sm:$0x1]
        %468 = vst.msk [vmem:[%s177 + $0x6] sm:$0x1] %vm180, %v467
        %v469 = vld [vmem:[%s373 + $0x9] sm:$0x1]
        %v472 = vunpack.c.l.s4 1983009808
        %v473 = vunpack.c.0.s8 %v472
        %v474 = vlaneseq
        %v475 = vshrl.u32 %v474, 7
        %v476 = vsub.s32 %v473, %v475
        %v477 = vrot.slane %v469, %v476
        %478 = vrot.lane.b32.xlu0 %v477, 16
        %v479 = vpop.permute.xlu0 %478
        %481 = vst.msk [vmem:[%s177 + $0x6] sm:$0x1] %vm194, %v479
        %v482 = vld [vmem:[%s373 + $0xa] sm:$0x1]
        %v485 = vunpack.c.l.s4 1983009808
        %v486 = vunpack.c.0.s8 %v485
        %v487 = vlaneseq
        %v488 = vshrl.u32 %v487, 7
        %v489 = vsub.s32 %v486, %v488
        %v490 = vrot.slane %v482, %v489
        %491 = vrot.lane.b32.xlu0 %v490, 32
        %v492 = vpop.permute.xlu0 %491
        %494 = vst.msk [vmem:[%s177 + $0x6] sm:$0x1] %vm208, %v492
        %v495 = vld [vmem:[%s373 + $0xb] sm:$0x1]
        %v498 = vunpack.c.l.s4 1983009808
        %v499 = vunpack.c.0.s8 %v498
        %v500 = vlaneseq
        %v501 = vshrl.u32 %v500, 7
        %v502 = vsub.s32 %v499, %v501
        %v503 = vrot.slane %v495, %v502
        %504 = vrot.lane.b32.xlu0 %v503, 48
        %v505 = vpop.permute.xlu0 %504
        %507 = vst.msk [vmem:[%s177 + $0x6] sm:$0x1] %vm222, %v505
        %v508 = vld [vmem:[%s373 + $0xc] sm:$0x1]
        %v511 = vunpack.c.l.s4 1983009808
        %v512 = vunpack.c.0.s8 %v511
        %v513 = vlaneseq
        %v514 = vshrl.u32 %v513, 7
        %v515 = vsub.s32 %v512, %v514
        %v516 = vrot.slane %v508, %v515
        %517 = vrot.lane.b32.xlu0 %v516, 64
        %v518 = vpop.permute.xlu0 %517
        %520 = vst.msk [vmem:[%s177 + $0x6] sm:$0x1] %vm236, %v518
        %v521 = vld [vmem:[%s373 + $0xd] sm:$0x1]
        %v524 = vunpack.c.l.s4 1983009808
        %v525 = vunpack.c.0.s8 %v524
        %v526 = vlaneseq
        %v527 = vshrl.u32 %v526, 7
        %v528 = vsub.s32 %v525, %v527
        %v529 = vrot.slane %v521, %v528
        %530 = vrot.lane.b32.xlu0 %v529, 80
        %v531 = vpop.permute.xlu0 %530
        %533 = vst.msk [vmem:[%s177 + $0x6] sm:$0x1] %vm250, %v531
        %v534 = vld [vmem:[%s373 + $0xe] sm:$0x1]
        %v537 = vunpack.c.l.s4 1983009808
        %v538 = vunpack.c.0.s8 %v537
        %v539 = vlaneseq
        %v540 = vshrl.u32 %v539, 7
        %v541 = vsub.s32 %v538, %v540
        %v542 = vrot.slane %v534, %v541
        %543 = vrot.lane.b32.xlu0 %v542, 96
        %v544 = vpop.permute.xlu0 %543
        %546 = vst.msk [vmem:[%s177 + $0x6] sm:$0x1] %vm264, %v544
        %v547 = vld [vmem:[%s373 + $0xf] sm:$0x1]
        %v550 = vunpack.c.l.s4 1983009808
        %v551 = vunpack.c.0.s8 %v550
        %v552 = vlaneseq
        %v553 = vshrl.u32 %v552, 7
        %v554 = vsub.s32 %v551, %v553
        %v555 = vrot.slane %v547, %v554
        %556 = vrot.lane.b32.xlu0 %v555, 112
        %v557 = vpop.permute.xlu0 %556
        %559 = vst.msk [vmem:[%s177 + $0x6] sm:$0x1] %vm278, %v557
        %s560 = scalar_lea.vmem %s159, 32 [#allocation2]
        %v561 = vld [vmem:[%s560] sm:$0x1]
        %562 = vst.msk [vmem:[%s177 + $0x8] sm:$0x1] %vm180, %v561
        %v563 = vld [vmem:[%s560 + $0x1] sm:$0x1]
        %v566 = vunpack.c.l.s4 1983009808
        %v567 = vunpack.c.0.s8 %v566
        %v568 = vlaneseq
        %v569 = vshrl.u32 %v568, 7
        %v570 = vsub.s32 %v567, %v569
        %v571 = vrot.slane %v563, %v570
        %572 = vrot.lane.b32.xlu0 %v571, 16
        %v573 = vpop.permute.xlu0 %572
        %575 = vst.msk [vmem:[%s177 + $0x8] sm:$0x1] %vm194, %v573
        %v576 = vld [vmem:[%s560 + $0x2] sm:$0x1]
        %v579 = vunpack.c.l.s4 1983009808
        %v580 = vunpack.c.0.s8 %v579
        %v581 = vlaneseq
        %v582 = vshrl.u32 %v581, 7
        %v583 = vsub.s32 %v580, %v582
        %v584 = vrot.slane %v576, %v583
        %585 = vrot.lane.b32.xlu0 %v584, 32
        %v586 = vpop.permute.xlu0 %585
        %588 = vst.msk [vmem:[%s177 + $0x8] sm:$0x1] %vm208, %v586
        %v589 = vld [vmem:[%s560 + $0x3] sm:$0x1]
        %v592 = vunpack.c.l.s4 1983009808
        %v593 = vunpack.c.0.s8 %v592
        %v594 = vlaneseq
        %v595 = vshrl.u32 %v594, 7
        %v596 = vsub.s32 %v593, %v595
        %v597 = vrot.slane %v589, %v596
        %598 = vrot.lane.b32.xlu0 %v597, 48
        %v599 = vpop.permute.xlu0 %598
        %601 = vst.msk [vmem:[%s177 + $0x8] sm:$0x1] %vm222, %v599
        %v602 = vld [vmem:[%s560 + $0x4] sm:$0x1]
        %v605 = vunpack.c.l.s4 1983009808
        %v606 = vunpack.c.0.s8 %v605
        %v607 = vlaneseq
        %v608 = vshrl.u32 %v607, 7
        %v609 = vsub.s32 %v606, %v608
        %v610 = vrot.slane %v602, %v609
        %611 = vrot.lane.b32.xlu0 %v610, 64
        %v612 = vpop.permute.xlu0 %611
        %614 = vst.msk [vmem:[%s177 + $0x8] sm:$0x1] %vm236, %v612
        %v615 = vld [vmem:[%s560 + $0x5] sm:$0x1]
        %v618 = vunpack.c.l.s4 1983009808
        %v619 = vunpack.c.0.s8 %v618
        %v620 = vlaneseq
        %v621 = vshrl.u32 %v620, 7
        %v622 = vsub.s32 %v619, %v621
        %v623 = vrot.slane %v615, %v622
        %624 = vrot.lane.b32.xlu0 %v623, 80
        %v625 = vpop.permute.xlu0 %624
        %627 = vst.msk [vmem:[%s177 + $0x8] sm:$0x1] %vm250, %v625
        %v628 = vld [vmem:[%s560 + $0x6] sm:$0x1]
        %v631 = vunpack.c.l.s4 1983009808
        %v632 = vunpack.c.0.s8 %v631
        %v633 = vlaneseq
        %v634 = vshrl.u32 %v633, 7
        %v635 = vsub.s32 %v632, %v634
        %v636 = vrot.slane %v628, %v635
        %637 = vrot.lane.b32.xlu0 %v636, 96
        %v638 = vpop.permute.xlu0 %637
        %640 = vst.msk [vmem:[%s177 + $0x8] sm:$0x1] %vm264, %v638
        %v641 = vld [vmem:[%s560 + $0x7] sm:$0x1]
        %v644 = vunpack.c.l.s4 1983009808
        %v645 = vunpack.c.0.s8 %v644
        %v646 = vlaneseq
        %v647 = vshrl.u32 %v646, 7
        %v648 = vsub.s32 %v645, %v647
        %v649 = vrot.slane %v641, %v648
        %650 = vrot.lane.b32.xlu0 %v649, 112
        %v651 = vpop.permute.xlu0 %650
        %653 = vst.msk [vmem:[%s177 + $0x8] sm:$0x1] %vm278, %v651
        %v654 = vld [vmem:[%s560 + $0x8] sm:$0x1]
        %655 = vst.msk [vmem:[%s177 + $0xa] sm:$0x1] %vm180, %v654
        %v656 = vld [vmem:[%s560 + $0x9] sm:$0x1]
        %v659 = vunpack.c.l.s4 1983009808
        %v660 = vunpack.c.0.s8 %v659
        %v661 = vlaneseq
        %v662 = vshrl.u32 %v661, 7
        %v663 = vsub.s32 %v660, %v662
        %v664 = vrot.slane %v656, %v663
        %665 = vrot.lane.b32.xlu0 %v664, 16
        %v666 = vpop.permute.xlu0 %665
        %668 = vst.msk [vmem:[%s177 + $0xa] sm:$0x1] %vm194, %v666
        %v669 = vld [vmem:[%s560 + $0xa] sm:$0x1]
        %v672 = vunpack.c.l.s4 1983009808
        %v673 = vunpack.c.0.s8 %v672
        %v674 = vlaneseq
        %v675 = vshrl.u32 %v674, 7
        %v676 = vsub.s32 %v673, %v675
        %v677 = vrot.slane %v669, %v676
        %678 = vrot.lane.b32.xlu0 %v677, 32
        %v679 = vpop.permute.xlu0 %678
        %681 = vst.msk [vmem:[%s177 + $0xa] sm:$0x1] %vm208, %v679
        %v682 = vld [vmem:[%s560 + $0xb] sm:$0x1]
        %v685 = vunpack.c.l.s4 1983009808
        %v686 = vunpack.c.0.s8 %v685
        %v687 = vlaneseq
        %v688 = vshrl.u32 %v687, 7
        %v689 = vsub.s32 %v686, %v688
        %v690 = vrot.slane %v682, %v689
        %691 = vrot.lane.b32.xlu0 %v690, 48
        %v692 = vpop.permute.xlu0 %691
        %694 = vst.msk [vmem:[%s177 + $0xa] sm:$0x1] %vm222, %v692
        %v695 = vld [vmem:[%s560 + $0xc] sm:$0x1]
        %v698 = vunpack.c.l.s4 1983009808
        %v699 = vunpack.c.0.s8 %v698
        %v700 = vlaneseq
        %v701 = vshrl.u32 %v700, 7
        %v702 = vsub.s32 %v699, %v701
        %v703 = vrot.slane %v695, %v702
        %704 = vrot.lane.b32.xlu0 %v703, 64
        %v705 = vpop.permute.xlu0 %704
        %707 = vst.msk [vmem:[%s177 + $0xa] sm:$0x1] %vm236, %v705
        %v708 = vld [vmem:[%s560 + $0xd] sm:$0x1]
        %v711 = vunpack.c.l.s4 1983009808
        %v712 = vunpack.c.0.s8 %v711
        %v713 = vlaneseq
        %v714 = vshrl.u32 %v713, 7
        %v715 = vsub.s32 %v712, %v714
        %v716 = vrot.slane %v708, %v715
        %717 = vrot.lane.b32.xlu0 %v716, 80
        %v718 = vpop.permute.xlu0 %717
        %720 = vst.msk [vmem:[%s177 + $0xa] sm:$0x1] %vm250, %v718
        %v721 = vld [vmem:[%s560 + $0xe] sm:$0x1]
        %v724 = vunpack.c.l.s4 1983009808
        %v725 = vunpack.c.0.s8 %v724
        %v726 = vlaneseq
        %v727 = vshrl.u32 %v726, 7
        %v728 = vsub.s32 %v725, %v727
        %v729 = vrot.slane %v721, %v728
        %730 = vrot.lane.b32.xlu0 %v729, 96
        %v731 = vpop.permute.xlu0 %730
        %733 = vst.msk [vmem:[%s177 + $0xa] sm:$0x1] %vm264, %v731
        %v734 = vld [vmem:[%s560 + $0xf] sm:$0x1]
        %v737 = vunpack.c.l.s4 1983009808
        %v738 = vunpack.c.0.s8 %v737
        %v739 = vlaneseq
        %v740 = vshrl.u32 %v739, 7
        %v741 = vsub.s32 %v738, %v740
        %v742 = vrot.slane %v734, %v741
        %743 = vrot.lane.b32.xlu0 %v742, 112
        %v744 = vpop.permute.xlu0 %743
        %746 = vst.msk [vmem:[%s177 + $0xa] sm:$0x1] %vm278, %v744
        %s747 = scalar_lea.vmem %s159, 48 [#allocation2]
        %v748 = vld [vmem:[%s747] sm:$0x1]
        %749 = vst.msk [vmem:[%s177 + $0xc] sm:$0x1] %vm180, %v748
        %v750 = vld [vmem:[%s747 + $0x1] sm:$0x1]
        %v753 = vunpack.c.l.s4 1983009808
        %v754 = vunpack.c.0.s8 %v753
        %v755 = vlaneseq
        %v756 = vshrl.u32 %v755, 7
        %v757 = vsub.s32 %v754, %v756
        %v758 = vrot.slane %v750, %v757
        %759 = vrot.lane.b32.xlu0 %v758, 16
        %v760 = vpop.permute.xlu0 %759
        %762 = vst.msk [vmem:[%s177 + $0xc] sm:$0x1] %vm194, %v760
        %v763 = vld [vmem:[%s747 + $0x2] sm:$0x1]
        %v766 = vunpack.c.l.s4 1983009808
        %v767 = vunpack.c.0.s8 %v766
        %v768 = vlaneseq
        %v769 = vshrl.u32 %v768, 7
        %v770 = vsub.s32 %v767, %v769
        %v771 = vrot.slane %v763, %v770
        %772 = vrot.lane.b32.xlu0 %v771, 32
        %v773 = vpop.permute.xlu0 %772
        %775 = vst.msk [vmem:[%s177 + $0xc] sm:$0x1] %vm208, %v773
        %v776 = vld [vmem:[%s747 + $0x3] sm:$0x1]
        %v779 = vunpack.c.l.s4 1983009808
        %v780 = vunpack.c.0.s8 %v779
        %v781 = vlaneseq
        %v782 = vshrl.u32 %v781, 7
        %v783 = vsub.s32 %v780, %v782
        %v784 = vrot.slane %v776, %v783
        %785 = vrot.lane.b32.xlu0 %v784, 48
        %v786 = vpop.permute.xlu0 %785
        %788 = vst.msk [vmem:[%s177 + $0xc] sm:$0x1] %vm222, %v786
        %v789 = vld [vmem:[%s747 + $0x4] sm:$0x1]
        %v792 = vunpack.c.l.s4 1983009808
        %v793 = vunpack.c.0.s8 %v792
        %v794 = vlaneseq
        %v795 = vshrl.u32 %v794, 7
        %v796 = vsub.s32 %v793, %v795
        %v797 = vrot.slane %v789, %v796
        %798 = vrot.lane.b32.xlu0 %v797, 64
        %v799 = vpop.permute.xlu0 %798
        %801 = vst.msk [vmem:[%s177 + $0xc] sm:$0x1] %vm236, %v799
        %v802 = vld [vmem:[%s747 + $0x5] sm:$0x1]
        %v805 = vunpack.c.l.s4 1983009808
        %v806 = vunpack.c.0.s8 %v805
        %v807 = vlaneseq
        %v808 = vshrl.u32 %v807, 7
        %v809 = vsub.s32 %v806, %v808
        %v810 = vrot.slane %v802, %v809
        %811 = vrot.lane.b32.xlu0 %v810, 80
        %v812 = vpop.permute.xlu0 %811
        %814 = vst.msk [vmem:[%s177 + $0xc] sm:$0x1] %vm250, %v812
        %v815 = vld [vmem:[%s747 + $0x6] sm:$0x1]
        %v818 = vunpack.c.l.s4 1983009808
        %v819 = vunpack.c.0.s8 %v818
        %v820 = vlaneseq
        %v821 = vshrl.u32 %v820, 7
        %v822 = vsub.s32 %v819, %v821
        %v823 = vrot.slane %v815, %v822
        %824 = vrot.lane.b32.xlu0 %v823, 96
        %v825 = vpop.permute.xlu0 %824
        %827 = vst.msk [vmem:[%s177 + $0xc] sm:$0x1] %vm264, %v825
        %v828 = vld [vmem:[%s747 + $0x7] sm:$0x1]
        %v831 = vunpack.c.l.s4 1983009808
        %v832 = vunpack.c.0.s8 %v831
        %v833 = vlaneseq
        %v834 = vshrl.u32 %v833, 7
        %v835 = vsub.s32 %v832, %v834
        %v836 = vrot.slane %v828, %v835
        %837 = vrot.lane.b32.xlu0 %v836, 112
        %v838 = vpop.permute.xlu0 %837
        %840 = vst.msk [vmem:[%s177 + $0xc] sm:$0x1] %vm278, %v838
        %v841 = vld [vmem:[%s747 + $0x8] sm:$0x1]
        %842 = vst.msk [vmem:[%s177 + $0xe] sm:$0x1] %vm180, %v841
        %v843 = vld [vmem:[%s747 + $0x9] sm:$0x1]
        %v846 = vunpack.c.l.s4 1983009808
        %v847 = vunpack.c.0.s8 %v846
        %v848 = vlaneseq
        %v849 = vshrl.u32 %v848, 7
        %v850 = vsub.s32 %v847, %v849
        %v851 = vrot.slane %v843, %v850
        %852 = vrot.lane.b32.xlu0 %v851, 16
        %v853 = vpop.permute.xlu0 %852
        %855 = vst.msk [vmem:[%s177 + $0xe] sm:$0x1] %vm194, %v853
        %v856 = vld [vmem:[%s747 + $0xa] sm:$0x1]
        %v859 = vunpack.c.l.s4 1983009808
        %v860 = vunpack.c.0.s8 %v859
        %v861 = vlaneseq
        %v862 = vshrl.u32 %v861, 7
        %v863 = vsub.s32 %v860, %v862
        %v864 = vrot.slane %v856, %v863
        %865 = vrot.lane.b32.xlu0 %v864, 32
        %v866 = vpop.permute.xlu0 %865
        %868 = vst.msk [vmem:[%s177 + $0xe] sm:$0x1] %vm208, %v866
        %v869 = vld [vmem:[%s747 + $0xb] sm:$0x1]
        %v872 = vunpack.c.l.s4 1983009808
        %v873 = vunpack.c.0.s8 %v872
        %v874 = vlaneseq
        %v875 = vshrl.u32 %v874, 7
        %v876 = vsub.s32 %v873, %v875
        %v877 = vrot.slane %v869, %v876
        %878 = vrot.lane.b32.xlu0 %v877, 48
        %v879 = vpop.permute.xlu0 %878
        %881 = vst.msk [vmem:[%s177 + $0xe] sm:$0x1] %vm222, %v879
        %v882 = vld [vmem:[%s747 + $0xc] sm:$0x1]
        %v885 = vunpack.c.l.s4 1983009808
        %v886 = vunpack.c.0.s8 %v885
        %v887 = vlaneseq
        %v888 = vshrl.u32 %v887, 7
        %v889 = vsub.s32 %v886, %v888
        %v890 = vrot.slane %v882, %v889
        %891 = vrot.lane.b32.xlu0 %v890, 64
        %v892 = vpop.permute.xlu0 %891
        %894 = vst.msk [vmem:[%s177 + $0xe] sm:$0x1] %vm236, %v892
        %v895 = vld [vmem:[%s747 + $0xd] sm:$0x1]
        %v898 = vunpack.c.l.s4 1983009808
        %v899 = vunpack.c.0.s8 %v898
        %v900 = vlaneseq
        %v901 = vshrl.u32 %v900, 7
        %v902 = vsub.s32 %v899, %v901
        %v903 = vrot.slane %v895, %v902
        %904 = vrot.lane.b32.xlu0 %v903, 80
        %v905 = vpop.permute.xlu0 %904
        %907 = vst.msk [vmem:[%s177 + $0xe] sm:$0x1] %vm250, %v905
        %v908 = vld [vmem:[%s747 + $0xe] sm:$0x1]
        %v911 = vunpack.c.l.s4 1983009808
        %v912 = vunpack.c.0.s8 %v911
        %v913 = vlaneseq
        %v914 = vshrl.u32 %v913, 7
        %v915 = vsub.s32 %v912, %v914
        %v916 = vrot.slane %v908, %v915
        %917 = vrot.lane.b32.xlu0 %v916, 96
        %v918 = vpop.permute.xlu0 %917
        %920 = vst.msk [vmem:[%s177 + $0xe] sm:$0x1] %vm264, %v918
        %v921 = vld [vmem:[%s747 + $0xf] sm:$0x1]
        %v924 = vunpack.c.l.s4 1983009808
        %v925 = vunpack.c.0.s8 %v924
        %v926 = vlaneseq
        %v927 = vshrl.u32 %v926, 7
        %v928 = vsub.s32 %v925, %v927
        %v929 = vrot.slane %v921, %v928
        %930 = vrot.lane.b32.xlu0 %v929, 112
        %v931 = vpop.permute.xlu0 %930
        %933 = vst.msk [vmem:[%s177 + $0xe] sm:$0x1] %vm278, %v931
        %v934 = vld [vmem:[%s159] sm:$0x1]
        %v937 = vunpack.c.l.s4 1983009808
        %v938 = vunpack.c.0.s8 %v937
        %v939 = vlaneseq
        %v940 = vshrl.u32 %v939, 7
        %v941 = vsub.s32 %v938, %v940
        %v942 = vrot.slane %v934, %v941
        %943 = vrot.lane.b32.xlu0 %v942, 112
        %v944 = vpop.permute.xlu0 %943
        %946 = vst.msk [vmem:[%s177 + $0x1] sm:$0x1] %vm180, %v944
        %v947 = vld [vmem:[%s159 + $0x1] sm:$0x1]
        %948 = vst.msk [vmem:[%s177 + $0x1] sm:$0x1] %vm194, %v947
        %v949 = vld [vmem:[%s159 + $0x2] sm:$0x1]
        %v952 = vunpack.c.l.s4 1983009808
        %v953 = vunpack.c.0.s8 %v952
        %v954 = vlaneseq
        %v955 = vshrl.u32 %v954, 7
        %v956 = vsub.s32 %v953, %v955
        %v957 = vrot.slane %v949, %v956
        %958 = vrot.lane.b32.xlu0 %v957, 16
        %v959 = vpop.permute.xlu0 %958
        %961 = vst.msk [vmem:[%s177 + $0x1] sm:$0x1] %vm208, %v959
        %v962 = vld [vmem:[%s159 + $0x3] sm:$0x1]
        %v965 = vunpack.c.l.s4 1983009808
        %v966 = vunpack.c.0.s8 %v965
        %v967 = vlaneseq
        %v968 = vshrl.u32 %v967, 7
        %v969 = vsub.s32 %v966, %v968
        %v970 = vrot.slane %v962, %v969
        %971 = vrot.lane.b32.xlu0 %v970, 32
        %v972 = vpop.permute.xlu0 %971
        %974 = vst.msk [vmem:[%s177 + $0x1] sm:$0x1] %vm222, %v972
        %v975 = vld [vmem:[%s159 + $0x4] sm:$0x1]
        %v978 = vunpack.c.l.s4 1983009808
        %v979 = vunpack.c.0.s8 %v978
        %v980 = vlaneseq
        %v981 = vshrl.u32 %v980, 7
        %v982 = vsub.s32 %v979, %v981
        %v983 = vrot.slane %v975, %v982
        %984 = vrot.lane.b32.xlu0 %v983, 48
        %v985 = vpop.permute.xlu0 %984
        %987 = vst.msk [vmem:[%s177 + $0x1] sm:$0x1] %vm236, %v985
        %v988 = vld [vmem:[%s159 + $0x5] sm:$0x1]
        %v991 = vunpack.c.l.s4 1983009808
        %v992 = vunpack.c.0.s8 %v991
        %v993 = vlaneseq
        %v994 = vshrl.u32 %v993, 7
        %v995 = vsub.s32 %v992, %v994
        %v996 = vrot.slane %v988, %v995
        %997 = vrot.lane.b32.xlu0 %v996, 64
        %v998 = vpop.permute.xlu0 %997
        %1000 = vst.msk [vmem:[%s177 + $0x1] sm:$0x1] %vm250, %v998
        %v1001 = vld [vmem:[%s159 + $0x6] sm:$0x1]
        %v1004 = vunpack.c.l.s4 1983009808
        %v1005 = vunpack.c.0.s8 %v1004
        %v1006 = vlaneseq
        %v1007 = vshrl.u32 %v1006, 7
        %v1008 = vsub.s32 %v1005, %v1007
        %v1009 = vrot.slane %v1001, %v1008
        %1010 = vrot.lane.b32.xlu0 %v1009, 80
        %v1011 = vpop.permute.xlu0 %1010
        %1013 = vst.msk [vmem:[%s177 + $0x1] sm:$0x1] %vm264, %v1011
        %v1014 = vld [vmem:[%s159 + $0x7] sm:$0x1]
        %v1017 = vunpack.c.l.s4 1983009808
        %v1018 = vunpack.c.0.s8 %v1017
        %v1019 = vlaneseq
        %v1020 = vshrl.u32 %v1019, 7
        %v1021 = vsub.s32 %v1018, %v1020
        %v1022 = vrot.slane %v1014, %v1021
        %1023 = vrot.lane.b32.xlu0 %v1022, 96
        %v1024 = vpop.permute.xlu0 %1023
        %1026 = vst.msk [vmem:[%s177 + $0x1] sm:$0x1] %vm278, %v1024
        %v1027 = vld [vmem:[%s159 + $0x8] sm:$0x1]
        %v1030 = vunpack.c.l.s4 1983009808
        %v1031 = vunpack.c.0.s8 %v1030
        %v1032 = vlaneseq
        %v1033 = vshrl.u32 %v1032, 7
        %v1034 = vsub.s32 %v1031, %v1033
        %v1035 = vrot.slane %v1027, %v1034
        %1036 = vrot.lane.b32.xlu0 %v1035, 112
        %v1037 = vpop.permute.xlu0 %1036
        %1039 = vst.msk [vmem:[%s177 + $0x3] sm:$0x1] %vm180, %v1037
        %v1040 = vld [vmem:[%s159 + $0x9] sm:$0x1]
        %1041 = vst.msk [vmem:[%s177 + $0x3] sm:$0x1] %vm194, %v1040
        %v1042 = vld [vmem:[%s159 + $0xa] sm:$0x1]
        %v1045 = vunpack.c.l.s4 1983009808
        %v1046 = vunpack.c.0.s8 %v1045
        %v1047 = vlaneseq
        %v1048 = vshrl.u32 %v1047, 7
        %v1049 = vsub.s32 %v1046, %v1048
        %v1050 = vrot.slane %v1042, %v1049
        %1051 = vrot.lane.b32.xlu0 %v1050, 16
        %v1052 = vpop.permute.xlu0 %1051
        %1054 = vst.msk [vmem:[%s177 + $0x3] sm:$0x1] %vm208, %v1052
        %v1055 = vld [vmem:[%s159 + $0xb] sm:$0x1]
        %v1058 = vunpack.c.l.s4 1983009808
        %v1059 = vunpack.c.0.s8 %v1058
        %v1060 = vlaneseq
        %v1061 = vshrl.u32 %v1060, 7
        %v1062 = vsub.s32 %v1059, %v1061
        %v1063 = vrot.slane %v1055, %v1062
        %1064 = vrot.lane.b32.xlu0 %v1063, 32
        %v1065 = vpop.permute.xlu0 %1064
        %1067 = vst.msk [vmem:[%s177 + $0x3] sm:$0x1] %vm222, %v1065
        %v1068 = vld [vmem:[%s159 + $0xc] sm:$0x1]
        %v1071 = vunpack.c.l.s4 1983009808
        %v1072 = vunpack.c.0.s8 %v1071
        %v1073 = vlaneseq
        %v1074 = vshrl.u32 %v1073, 7
        %v1075 = vsub.s32 %v1072, %v1074
        %v1076 = vrot.slane %v1068, %v1075
        %1077 = vrot.lane.b32.xlu0 %v1076, 48
        %v1078 = vpop.permute.xlu0 %1077
        %1080 = vst.msk [vmem:[%s177 + $0x3] sm:$0x1] %vm236, %v1078
        %v1081 = vld [vmem:[%s159 + $0xd] sm:$0x1]
        %v1084 = vunpack.c.l.s4 1983009808
        %v1085 = vunpack.c.0.s8 %v1084
        %v1086 = vlaneseq
        %v1087 = vshrl.u32 %v1086, 7
        %v1088 = vsub.s32 %v1085, %v1087
        %v1089 = vrot.slane %v1081, %v1088
        %1090 = vrot.lane.b32.xlu0 %v1089, 64
        %v1091 = vpop.permute.xlu0 %1090
        %1093 = vst.msk [vmem:[%s177 + $0x3] sm:$0x1] %vm250, %v1091
        %v1094 = vld [vmem:[%s159 + $0xe] sm:$0x1]
        %v1097 = vunpack.c.l.s4 1983009808
        %v1098 = vunpack.c.0.s8 %v1097
        %v1099 = vlaneseq
        %v1100 = vshrl.u32 %v1099, 7
        %v1101 = vsub.s32 %v1098, %v1100
        %v1102 = vrot.slane %v1094, %v1101
        %1103 = vrot.lane.b32.xlu0 %v1102, 80
        %v1104 = vpop.permute.xlu0 %1103
        %1106 = vst.msk [vmem:[%s177 + $0x3] sm:$0x1] %vm264, %v1104
        %v1107 = vld [vmem:[%s159 + $0xf] sm:$0x1]
        %v1110 = vunpack.c.l.s4 1983009808
        %v1111 = vunpack.c.0.s8 %v1110
        %v1112 = vlaneseq
        %v1113 = vshrl.u32 %v1112, 7
        %v1114 = vsub.s32 %v1111, %v1113
        %v1115 = vrot.slane %v1107, %v1114
        %1116 = vrot.lane.b32.xlu0 %v1115, 96
        %v1117 = vpop.permute.xlu0 %1116
        %1119 = vst.msk [vmem:[%s177 + $0x3] sm:$0x1] %vm278, %v1117
        %v1120 = vld [vmem:[%s373] sm:$0x1]
        %v1123 = vunpack.c.l.s4 1983009808
        %v1124 = vunpack.c.0.s8 %v1123
        %v1125 = vlaneseq
        %v1126 = vshrl.u32 %v1125, 7
        %v1127 = vsub.s32 %v1124, %v1126
        %v1128 = vrot.slane %v1120, %v1127
        %1129 = vrot.lane.b32.xlu0 %v1128, 112
        %v1130 = vpop.permute.xlu0 %1129
        %1132 = vst.msk [vmem:[%s177 + $0x5] sm:$0x1] %vm180, %v1130
        %v1133 = vld [vmem:[%s373 + $0x1] sm:$0x1]
        %1134 = vst.msk [vmem:[%s177 + $0x5] sm:$0x1] %vm194, %v1133
        %v1135 = vld [vmem:[%s373 + $0x2] sm:$0x1]
        %v1138 = vunpack.c.l.s4 1983009808
        %v1139 = vunpack.c.0.s8 %v1138
        %v1140 = vlaneseq
        %v1141 = vshrl.u32 %v1140, 7
        %v1142 = vsub.s32 %v1139, %v1141
        %v1143 = vrot.slane %v1135, %v1142
        %1144 = vrot.lane.b32.xlu0 %v1143, 16
        %v1145 = vpop.permute.xlu0 %1144
        %1147 = vst.msk [vmem:[%s177 + $0x5] sm:$0x1] %vm208, %v1145
        %v1148 = vld [vmem:[%s373 + $0x3] sm:$0x1]
        %v1151 = vunpack.c.l.s4 1983009808
        %v1152 = vunpack.c.0.s8 %v1151
        %v1153 = vlaneseq
        %v1154 = vshrl.u32 %v1153, 7
        %v1155 = vsub.s32 %v1152, %v1154
        %v1156 = vrot.slane %v1148, %v1155
        %1157 = vrot.lane.b32.xlu0 %v1156, 32
        %v1158 = vpop.permute.xlu0 %1157
        %1160 = vst.msk [vmem:[%s177 + $0x5] sm:$0x1] %vm222, %v1158
        %v1161 = vld [vmem:[%s373 + $0x4] sm:$0x1]
        %v1164 = vunpack.c.l.s4 1983009808
        %v1165 = vunpack.c.0.s8 %v1164
        %v1166 = vlaneseq
        %v1167 = vshrl.u32 %v1166, 7
        %v1168 = vsub.s32 %v1165, %v1167
        %v1169 = vrot.slane %v1161, %v1168
        %1170 = vrot.lane.b32.xlu0 %v1169, 48
        %v1171 = vpop.permute.xlu0 %1170
        %1173 = vst.msk [vmem:[%s177 + $0x5] sm:$0x1] %vm236, %v1171
        %v1174 = vld [vmem:[%s373 + $0x5] sm:$0x1]
        %v1177 = vunpack.c.l.s4 1983009808
        %v1178 = vunpack.c.0.s8 %v1177
        %v1179 = vlaneseq
        %v1180 = vshrl.u32 %v1179, 7
        %v1181 = vsub.s32 %v1178, %v1180
        %v1182 = vrot.slane %v1174, %v1181
        %1183 = vrot.lane.b32.xlu0 %v1182, 64
        %v1184 = vpop.permute.xlu0 %1183
        %1186 = vst.msk [vmem:[%s177 + $0x5] sm:$0x1] %vm250, %v1184
        %v1187 = vld [vmem:[%s373 + $0x6] sm:$0x1]
        %v1190 = vunpack.c.l.s4 1983009808
        %v1191 = vunpack.c.0.s8 %v1190
        %v1192 = vlaneseq
        %v1193 = vshrl.u32 %v1192, 7
        %v1194 = vsub.s32 %v1191, %v1193
        %v1195 = vrot.slane %v1187, %v1194
        %1196 = vrot.lane.b32.xlu0 %v1195, 80
        %v1197 = vpop.permute.xlu0 %1196
        %1199 = vst.msk [vmem:[%s177 + $0x5] sm:$0x1] %vm264, %v1197
        %v1200 = vld [vmem:[%s373 + $0x7] sm:$0x1]
        %v1203 = vunpack.c.l.s4 1983009808
        %v1204 = vunpack.c.0.s8 %v1203
        %v1205 = vlaneseq
        %v1206 = vshrl.u32 %v1205, 7
        %v1207 = vsub.s32 %v1204, %v1206
        %v1208 = vrot.slane %v1200, %v1207
        %1209 = vrot.lane.b32.xlu0 %v1208, 96
        %v1210 = vpop.permute.xlu0 %1209
        %1212 = vst.msk [vmem:[%s177 + $0x5] sm:$0x1] %vm278, %v1210
        %v1213 = vld [vmem:[%s373 + $0x8] sm:$0x1]
        %v1216 = vunpack.c.l.s4 1983009808
        %v1217 = vunpack.c.0.s8 %v1216
        %v1218 = vlaneseq
        %v1219 = vshrl.u32 %v1218, 7
        %v1220 = vsub.s32 %v1217, %v1219
        %v1221 = vrot.slane %v1213, %v1220
        %1222 = vrot.lane.b32.xlu0 %v1221, 112
        %v1223 = vpop.permute.xlu0 %1222
        %1225 = vst.msk [vmem:[%s177 + $0x7] sm:$0x1] %vm180, %v1223
        %v1226 = vld [vmem:[%s373 + $0x9] sm:$0x1]
        %1227 = vst.msk [vmem:[%s177 + $0x7] sm:$0x1] %vm194, %v1226
        %v1228 = vld [vmem:[%s373 + $0xa] sm:$0x1]
        %v1231 = vunpack.c.l.s4 1983009808
        %v1232 = vunpack.c.0.s8 %v1231
        %v1233 = vlaneseq
        %v1234 = vshrl.u32 %v1233, 7
        %v1235 = vsub.s32 %v1232, %v1234
        %v1236 = vrot.slane %v1228, %v1235
        %1237 = vrot.lane.b32.xlu0 %v1236, 16
        %v1238 = vpop.permute.xlu0 %1237
        %1240 = vst.msk [vmem:[%s177 + $0x7] sm:$0x1] %vm208, %v1238
        %v1241 = vld [vmem:[%s373 + $0xb] sm:$0x1]
        %v1244 = vunpack.c.l.s4 1983009808
        %v1245 = vunpack.c.0.s8 %v1244
        %v1246 = vlaneseq
        %v1247 = vshrl.u32 %v1246, 7
        %v1248 = vsub.s32 %v1245, %v1247
        %v1249 = vrot.slane %v1241, %v1248
        %1250 = vrot.lane.b32.xlu0 %v1249, 32
        %v1251 = vpop.permute.xlu0 %1250
        %1253 = vst.msk [vmem:[%s177 + $0x7] sm:$0x1] %vm222, %v1251
        %v1254 = vld [vmem:[%s373 + $0xc] sm:$0x1]
        %v1257 = vunpack.c.l.s4 1983009808
        %v1258 = vunpack.c.0.s8 %v1257
        %v1259 = vlaneseq
        %v1260 = vshrl.u32 %v1259, 7
        %v1261 = vsub.s32 %v1258, %v1260
        %v1262 = vrot.slane %v1254, %v1261
        %1263 = vrot.lane.b32.xlu0 %v1262, 48
        %v1264 = vpop.permute.xlu0 %1263
        %1266 = vst.msk [vmem:[%s177 + $0x7] sm:$0x1] %vm236, %v1264
        %v1267 = vld [vmem:[%s373 + $0xd] sm:$0x1]
        %v1270 = vunpack.c.l.s4 1983009808
        %v1271 = vunpack.c.0.s8 %v1270
        %v1272 = vlaneseq
        %v1273 = vshrl.u32 %v1272, 7
        %v1274 = vsub.s32 %v1271, %v1273
        %v1275 = vrot.slane %v1267, %v1274
        %1276 = vrot.lane.b32.xlu0 %v1275, 64
        %v1277 = vpop.permute.xlu0 %1276
        %1279 = vst.msk [vmem:[%s177 + $0x7] sm:$0x1] %vm250, %v1277
        %v1280 = vld [vmem:[%s373 + $0xe] sm:$0x1]
        %v1283 = vunpack.c.l.s4 1983009808
        %v1284 = vunpack.c.0.s8 %v1283
        %v1285 = vlaneseq
        %v1286 = vshrl.u32 %v1285, 7
        %v1287 = vsub.s32 %v1284, %v1286
        %v1288 = vrot.slane %v1280, %v1287
        %1289 = vrot.lane.b32.xlu0 %v1288, 80
        %v1290 = vpop.permute.xlu0 %1289
        %1292 = vst.msk [vmem:[%s177 + $0x7] sm:$0x1] %vm264, %v1290
        %v1293 = vld [vmem:[%s373 + $0xf] sm:$0x1]
        %v1296 = vunpack.c.l.s4 1983009808
        %v1297 = vunpack.c.0.s8 %v1296
        %v1298 = vlaneseq
        %v1299 = vshrl.u32 %v1298, 7
        %v1300 = vsub.s32 %v1297, %v1299
        %v1301 = vrot.slane %v1293, %v1300
        %1302 = vrot.lane.b32.xlu0 %v1301, 96
        %v1303 = vpop.permute.xlu0 %1302
        %1305 = vst.msk [vmem:[%s177 + $0x7] sm:$0x1] %vm278, %v1303
        %v1306 = vld [vmem:[%s560] sm:$0x1]
        %v1309 = vunpack.c.l.s4 1983009808
        %v1310 = vunpack.c.0.s8 %v1309
        %v1311 = vlaneseq
        %v1312 = vshrl.u32 %v1311, 7
        %v1313 = vsub.s32 %v1310, %v1312
        %v1314 = vrot.slane %v1306, %v1313
        %1315 = vrot.lane.b32.xlu0 %v1314, 112
        %v1316 = vpop.permute.xlu0 %1315
        %1318 = vst.msk [vmem:[%s177 + $0x9] sm:$0x1] %vm180, %v1316
        %v1319 = vld [vmem:[%s560 + $0x1] sm:$0x1]
        %1320 = vst.msk [vmem:[%s177 + $0x9] sm:$0x1] %vm194, %v1319
        %v1321 = vld [vmem:[%s560 + $0x2] sm:$0x1]
        %v1324 = vunpack.c.l.s4 1983009808
        %v1325 = vunpack.c.0.s8 %v1324
        %v1326 = vlaneseq
        %v1327 = vshrl.u32 %v1326, 7
        %v1328 = vsub.s32 %v1325, %v1327
        %v1329 = vrot.slane %v1321, %v1328
        %1330 = vrot.lane.b32.xlu0 %v1329, 16
        %v1331 = vpop.permute.xlu0 %1330
        %1333 = vst.msk [vmem:[%s177 + $0x9] sm:$0x1] %vm208, %v1331
        %v1334 = vld [vmem:[%s560 + $0x3] sm:$0x1]
        %v1337 = vunpack.c.l.s4 1983009808
        %v1338 = vunpack.c.0.s8 %v1337
        %v1339 = vlaneseq
        %v1340 = vshrl.u32 %v1339, 7
        %v1341 = vsub.s32 %v1338, %v1340
        %v1342 = vrot.slane %v1334, %v1341
        %1343 = vrot.lane.b32.xlu0 %v1342, 32
        %v1344 = vpop.permute.xlu0 %1343
        %1346 = vst.msk [vmem:[%s177 + $0x9] sm:$0x1] %vm222, %v1344
        %v1347 = vld [vmem:[%s560 + $0x4] sm:$0x1]
        %v1350 = vunpack.c.l.s4 1983009808
        %v1351 = vunpack.c.0.s8 %v1350
        %v1352 = vlaneseq
        %v1353 = vshrl.u32 %v1352, 7
        %v1354 = vsub.s32 %v1351, %v1353
        %v1355 = vrot.slane %v1347, %v1354
        %1356 = vrot.lane.b32.xlu0 %v1355, 48
        %v1357 = vpop.permute.xlu0 %1356
        %1359 = vst.msk [vmem:[%s177 + $0x9] sm:$0x1] %vm236, %v1357
        %v1360 = vld [vmem:[%s560 + $0x5] sm:$0x1]
        %v1363 = vunpack.c.l.s4 1983009808
        %v1364 = vunpack.c.0.s8 %v1363
        %v1365 = vlaneseq
        %v1366 = vshrl.u32 %v1365, 7
        %v1367 = vsub.s32 %v1364, %v1366
        %v1368 = vrot.slane %v1360, %v1367
        %1369 = vrot.lane.b32.xlu0 %v1368, 64
        %v1370 = vpop.permute.xlu0 %1369
        %1372 = vst.msk [vmem:[%s177 + $0x9] sm:$0x1] %vm250, %v1370
        %v1373 = vld [vmem:[%s560 + $0x6] sm:$0x1]
        %v1376 = vunpack.c.l.s4 1983009808
        %v1377 = vunpack.c.0.s8 %v1376
        %v1378 = vlaneseq
        %v1379 = vshrl.u32 %v1378, 7
        %v1380 = vsub.s32 %v1377, %v1379
        %v1381 = vrot.slane %v1373, %v1380
        %1382 = vrot.lane.b32.xlu0 %v1381, 80
        %v1383 = vpop.permute.xlu0 %1382
        %1385 = vst.msk [vmem:[%s177 + $0x9] sm:$0x1] %vm264, %v1383
        %v1386 = vld [vmem:[%s560 + $0x7] sm:$0x1]
        %v1389 = vunpack.c.l.s4 1983009808
        %v1390 = vunpack.c.0.s8 %v1389
        %v1391 = vlaneseq
        %v1392 = vshrl.u32 %v1391, 7
        %v1393 = vsub.s32 %v1390, %v1392
        %v1394 = vrot.slane %v1386, %v1393
        %1395 = vrot.lane.b32.xlu0 %v1394, 96
        %v1396 = vpop.permute.xlu0 %1395
        %1398 = vst.msk [vmem:[%s177 + $0x9] sm:$0x1] %vm278, %v1396
        %v1399 = vld [vmem:[%s560 + $0x8] sm:$0x1]
        %v1402 = vunpack.c.l.s4 1983009808
        %v1403 = vunpack.c.0.s8 %v1402
        %v1404 = vlaneseq
        %v1405 = vshrl.u32 %v1404, 7
        %v1406 = vsub.s32 %v1403, %v1405
        %v1407 = vrot.slane %v1399, %v1406
        %1408 = vrot.lane.b32.xlu0 %v1407, 112
        %v1409 = vpop.permute.xlu0 %1408
        %1411 = vst.msk [vmem:[%s177 + $0xb] sm:$0x1] %vm180, %v1409
        %v1412 = vld [vmem:[%s560 + $0x9] sm:$0x1]
        %1413 = vst.msk [vmem:[%s177 + $0xb] sm:$0x1] %vm194, %v1412
        %v1414 = vld [vmem:[%s560 + $0xa] sm:$0x1]
        %v1417 = vunpack.c.l.s4 1983009808
        %v1418 = vunpack.c.0.s8 %v1417
        %v1419 = vlaneseq
        %v1420 = vshrl.u32 %v1419, 7
        %v1421 = vsub.s32 %v1418, %v1420
        %v1422 = vrot.slane %v1414, %v1421
        %1423 = vrot.lane.b32.xlu0 %v1422, 16
        %v1424 = vpop.permute.xlu0 %1423
        %1426 = vst.msk [vmem:[%s177 + $0xb] sm:$0x1] %vm208, %v1424
        %v1427 = vld [vmem:[%s560 + $0xb] sm:$0x1]
        %v1430 = vunpack.c.l.s4 1983009808
        %v1431 = vunpack.c.0.s8 %v1430
        %v1432 = vlaneseq
        %v1433 = vshrl.u32 %v1432, 7
        %v1434 = vsub.s32 %v1431, %v1433
        %v1435 = vrot.slane %v1427, %v1434
        %1436 = vrot.lane.b32.xlu0 %v1435, 32
        %v1437 = vpop.permute.xlu0 %1436
        %1439 = vst.msk [vmem:[%s177 + $0xb] sm:$0x1] %vm222, %v1437
        %v1440 = vld [vmem:[%s560 + $0xc] sm:$0x1]
        %v1443 = vunpack.c.l.s4 1983009808
        %v1444 = vunpack.c.0.s8 %v1443
        %v1445 = vlaneseq
        %v1446 = vshrl.u32 %v1445, 7
        %v1447 = vsub.s32 %v1444, %v1446
        %v1448 = vrot.slane %v1440, %v1447
        %1449 = vrot.lane.b32.xlu0 %v1448, 48
        %v1450 = vpop.permute.xlu0 %1449
        %1452 = vst.msk [vmem:[%s177 + $0xb] sm:$0x1] %vm236, %v1450
        %v1453 = vld [vmem:[%s560 + $0xd] sm:$0x1]
        %v1456 = vunpack.c.l.s4 1983009808
        %v1457 = vunpack.c.0.s8 %v1456
        %v1458 = vlaneseq
        %v1459 = vshrl.u32 %v1458, 7
        %v1460 = vsub.s32 %v1457, %v1459
        %v1461 = vrot.slane %v1453, %v1460
        %1462 = vrot.lane.b32.xlu0 %v1461, 64
        %v1463 = vpop.permute.xlu0 %1462
        %1465 = vst.msk [vmem:[%s177 + $0xb] sm:$0x1] %vm250, %v1463
        %v1466 = vld [vmem:[%s560 + $0xe] sm:$0x1]
        %v1469 = vunpack.c.l.s4 1983009808
        %v1470 = vunpack.c.0.s8 %v1469
        %v1471 = vlaneseq
        %v1472 = vshrl.u32 %v1471, 7
        %v1473 = vsub.s32 %v1470, %v1472
        %v1474 = vrot.slane %v1466, %v1473
        %1475 = vrot.lane.b32.xlu0 %v1474, 80
        %v1476 = vpop.permute.xlu0 %1475
        %1478 = vst.msk [vmem:[%s177 + $0xb] sm:$0x1] %vm264, %v1476
        %v1479 = vld [vmem:[%s560 + $0xf] sm:$0x1]
        %v1482 = vunpack.c.l.s4 1983009808
        %v1483 = vunpack.c.0.s8 %v1482
        %v1484 = vlaneseq
        %v1485 = vshrl.u32 %v1484, 7
        %v1486 = vsub.s32 %v1483, %v1485
        %v1487 = vrot.slane %v1479, %v1486
        %1488 = vrot.lane.b32.xlu0 %v1487, 96
        %v1489 = vpop.permute.xlu0 %1488
        %1491 = vst.msk [vmem:[%s177 + $0xb] sm:$0x1] %vm278, %v1489
        %v1492 = vld [vmem:[%s747] sm:$0x1]
        %v1495 = vunpack.c.l.s4 1983009808
        %v1496 = vunpack.c.0.s8 %v1495
        %v1497 = vlaneseq
        %v1498 = vshrl.u32 %v1497, 7
        %v1499 = vsub.s32 %v1496, %v1498
        %v1500 = vrot.slane %v1492, %v1499
        %1501 = vrot.lane.b32.xlu0 %v1500, 112
        %v1502 = vpop.permute.xlu0 %1501
        %1504 = vst.msk [vmem:[%s177 + $0xd] sm:$0x1] %vm180, %v1502
        %v1505 = vld [vmem:[%s747 + $0x1] sm:$0x1]
        %1506 = vst.msk [vmem:[%s177 + $0xd] sm:$0x1] %vm194, %v1505
        %v1507 = vld [vmem:[%s747 + $0x2] sm:$0x1]
        %v1510 = vunpack.c.l.s4 1983009808
        %v1511 = vunpack.c.0.s8 %v1510
        %v1512 = vlaneseq
        %v1513 = vshrl.u32 %v1512, 7
        %v1514 = vsub.s32 %v1511, %v1513
        %v1515 = vrot.slane %v1507, %v1514
        %1516 = vrot.lane.b32.xlu0 %v1515, 16
        %v1517 = vpop.permute.xlu0 %1516
        %1519 = vst.msk [vmem:[%s177 + $0xd] sm:$0x1] %vm208, %v1517
        %v1520 = vld [vmem:[%s747 + $0x3] sm:$0x1]
        %v1523 = vunpack.c.l.s4 1983009808
        %v1524 = vunpack.c.0.s8 %v1523
        %v1525 = vlaneseq
        %v1526 = vshrl.u32 %v1525, 7
        %v1527 = vsub.s32 %v1524, %v1526
        %v1528 = vrot.slane %v1520, %v1527
        %1529 = vrot.lane.b32.xlu0 %v1528, 32
        %v1530 = vpop.permute.xlu0 %1529
        %1532 = vst.msk [vmem:[%s177 + $0xd] sm:$0x1] %vm222, %v1530
        %v1533 = vld [vmem:[%s747 + $0x4] sm:$0x1]
        %v1536 = vunpack.c.l.s4 1983009808
        %v1537 = vunpack.c.0.s8 %v1536
        %v1538 = vlaneseq
        %v1539 = vshrl.u32 %v1538, 7
        %v1540 = vsub.s32 %v1537, %v1539
        %v1541 = vrot.slane %v1533, %v1540
        %1542 = vrot.lane.b32.xlu0 %v1541, 48
        %v1543 = vpop.permute.xlu0 %1542
        %1545 = vst.msk [vmem:[%s177 + $0xd] sm:$0x1] %vm236, %v1543
        %v1546 = vld [vmem:[%s747 + $0x5] sm:$0x1]
        %v1549 = vunpack.c.l.s4 1983009808
        %v1550 = vunpack.c.0.s8 %v1549
        %v1551 = vlaneseq
        %v1552 = vshrl.u32 %v1551, 7
        %v1553 = vsub.s32 %v1550, %v1552
        %v1554 = vrot.slane %v1546, %v1553
        %1555 = vrot.lane.b32.xlu0 %v1554, 64
        %v1556 = vpop.permute.xlu0 %1555
        %1558 = vst.msk [vmem:[%s177 + $0xd] sm:$0x1] %vm250, %v1556
        %v1559 = vld [vmem:[%s747 + $0x6] sm:$0x1]
        %v1562 = vunpack.c.l.s4 1983009808
        %v1563 = vunpack.c.0.s8 %v1562
        %v1564 = vlaneseq
        %v1565 = vshrl.u32 %v1564, 7
        %v1566 = vsub.s32 %v1563, %v1565
        %v1567 = vrot.slane %v1559, %v1566
        %1568 = vrot.lane.b32.xlu0 %v1567, 80
        %v1569 = vpop.permute.xlu0 %1568
        %1571 = vst.msk [vmem:[%s177 + $0xd] sm:$0x1] %vm264, %v1569
        %v1572 = vld [vmem:[%s747 + $0x7] sm:$0x1]
        %v1575 = vunpack.c.l.s4 1983009808
        %v1576 = vunpack.c.0.s8 %v1575
        %v1577 = vlaneseq
        %v1578 = vshrl.u32 %v1577, 7
        %v1579 = vsub.s32 %v1576, %v1578
        %v1580 = vrot.slane %v1572, %v1579
        %1581 = vrot.lane.b32.xlu0 %v1580, 96
        %v1582 = vpop.permute.xlu0 %1581
        %1584 = vst.msk [vmem:[%s177 + $0xd] sm:$0x1] %vm278, %v1582
        %v1585 = vld [vmem:[%s747 + $0x8] sm:$0x1]
        %v1588 = vunpack.c.l.s4 1983009808
        %v1589 = vunpack.c.0.s8 %v1588
        %v1590 = vlaneseq
        %v1591 = vshrl.u32 %v1590, 7
        %v1592 = vsub.s32 %v1589, %v1591
        %v1593 = vrot.slane %v1585, %v1592
        %1594 = vrot.lane.b32.xlu0 %v1593, 112
        %v1595 = vpop.permute.xlu0 %1594
        %1597 = vst.msk [vmem:[%s177 + $0xf] sm:$0x1] %vm180, %v1595
        %v1598 = vld [vmem:[%s747 + $0x9] sm:$0x1]
        %1599 = vst.msk [vmem:[%s177 + $0xf] sm:$0x1] %vm194, %v1598
        %v1600 = vld [vmem:[%s747 + $0xa] sm:$0x1]
        %v1603 = vunpack.c.l.s4 1983009808
        %v1604 = vunpack.c.0.s8 %v1603
        %v1605 = vlaneseq
        %v1606 = vshrl.u32 %v1605, 7
        %v1607 = vsub.s32 %v1604, %v1606
        %v1608 = vrot.slane %v1600, %v1607
        %1609 = vrot.lane.b32.xlu0 %v1608, 16
        %v1610 = vpop.permute.xlu0 %1609
        %1612 = vst.msk [vmem:[%s177 + $0xf] sm:$0x1] %vm208, %v1610
        %v1613 = vld [vmem:[%s747 + $0xb] sm:$0x1]
        %v1616 = vunpack.c.l.s4 1983009808
        %v1617 = vunpack.c.0.s8 %v1616
        %v1618 = vlaneseq
        %v1619 = vshrl.u32 %v1618, 7
        %v1620 = vsub.s32 %v1617, %v1619
        %v1621 = vrot.slane %v1613, %v1620
        %1622 = vrot.lane.b32.xlu0 %v1621, 32
        %v1623 = vpop.permute.xlu0 %1622
        %1625 = vst.msk [vmem:[%s177 + $0xf] sm:$0x1] %vm222, %v1623
        %v1626 = vld [vmem:[%s747 + $0xc] sm:$0x1]
        %v1629 = vunpack.c.l.s4 1983009808
        %v1630 = vunpack.c.0.s8 %v1629
        %v1631 = vlaneseq
        %v1632 = vshrl.u32 %v1631, 7
        %v1633 = vsub.s32 %v1630, %v1632
        %v1634 = vrot.slane %v1626, %v1633
        %1635 = vrot.lane.b32.xlu0 %v1634, 48
        %v1636 = vpop.permute.xlu0 %1635
        %1638 = vst.msk [vmem:[%s177 + $0xf] sm:$0x1] %vm236, %v1636
        %v1639 = vld [vmem:[%s747 + $0xd] sm:$0x1]
        %v1642 = vunpack.c.l.s4 1983009808
        %v1643 = vunpack.c.0.s8 %v1642
        %v1644 = vlaneseq
        %v1645 = vshrl.u32 %v1644, 7
        %v1646 = vsub.s32 %v1643, %v1645
        %v1647 = vrot.slane %v1639, %v1646
        %1648 = vrot.lane.b32.xlu0 %v1647, 64
        %v1649 = vpop.permute.xlu0 %1648
        %1651 = vst.msk [vmem:[%s177 + $0xf] sm:$0x1] %vm250, %v1649
        %v1652 = vld [vmem:[%s747 + $0xe] sm:$0x1]
        %v1655 = vunpack.c.l.s4 1983009808
        %v1656 = vunpack.c.0.s8 %v1655
        %v1657 = vlaneseq
        %v1658 = vshrl.u32 %v1657, 7
        %v1659 = vsub.s32 %v1656, %v1658
        %v1660 = vrot.slane %v1652, %v1659
        %1661 = vrot.lane.b32.xlu0 %v1660, 80
        %v1662 = vpop.permute.xlu0 %1661
        %1664 = vst.msk [vmem:[%s177 + $0xf] sm:$0x1] %vm264, %v1662
        %v1665 = vld [vmem:[%s747 + $0xf] sm:$0x1]
        %v1668 = vunpack.c.l.s4 1983009808
        %v1669 = vunpack.c.0.s8 %v1668
        %v1670 = vlaneseq
        %v1671 = vshrl.u32 %v1670, 7
        %v1672 = vsub.s32 %v1669, %v1671
        %v1673 = vrot.slane %v1665, %v1672
        %1674 = vrot.lane.b32.xlu0 %v1673, 96
        %v1675 = vpop.permute.xlu0 %1674
        %1677 = vst.msk [vmem:[%s177 + $0xf] sm:$0x1] %vm278, %v1675
        %s1678 = sand.u32 %s68, 1
        %s1679 = scalar_lea.sflag [#allocation4], %s1678
        %s1680 = sand.u32 %s68, 1
        %s1681 = smul.addr %s1680, 16
        %s1682 = scalar_lea.vmem [#allocation5], %s1681
        // Predicated region
        $region29: #{tpu_custom_call.1} parent=23 // pred_check
          %p1683 = pneg %p78
        $region30: #{tpu_custom_call.1} parent=23 // pred_check_branch
          %1685 = sbr.rel (%p1683) target = $region32
        $region31: #{tpu_custom_call.1} parent=23 // pred_region
          %s1687 = ssub.s32 256, 256
          %1688 = vsyncadd %s1679, %s1687
          %s1689 = smul.addr %s23, 8
          %s1690 = smul.addr %s22, 16
          %s1691 = sadd.s32 %s1689, %s1690
          %s1692 = smul.addr %s1691, 32
          %s1693 = scalar_lea.hbm %s1, %s1692
          %s1695 = sshll.u32 %s1682, 4
          %s1696 = int_to_ptr.vmem [resolvable:$true] %s1695
          %1698 = dma.vmem_to_hbm [thread:$0]  %s1696, 256, %s1693, %s1679
        $region32: #{tpu_custom_call.1} parent=23 // pred_fallthru
          _
      $region24: #{tpu_custom_call.1} parent=5 // pred_fallthru
        _
      %p1699 = scmp.le.s32.totalorder 2, %s13
      // Predicated region
      $region33: #{tpu_custom_call.1} parent=5 // pred_check
        %p1700 = pneg %p1699
      $region34: #{tpu_custom_call.1} parent=5 // pred_check_branch
        %1702 = sbr.rel (%p1700) target = $region36
      $region35: #{tpu_custom_call.1} parent=5 // pred_region
        %s1703 = ssub.s32 %s13, 2
        // Predicated region
        $region37: #{tpu_custom_call.1} parent=35 // pred_check
          %p1704 = pneg %p84
        $region38: #{tpu_custom_call.1} parent=35 // pred_check_branch
          %1706 = sbr.rel (%p1704) target = $region40
        $region39: #{tpu_custom_call.1} parent=35 // pred_region
          %s1707 = sand.u32 %s69, 1
          %s1708 = scalar_lea.sflag [#allocation4], %s1707
          %s1709 = sand.u32 %s69, 1
          %s1710 = smul.addr %s1709, 16
          %s1711 = scalar_lea.vmem [#allocation5], %s1710
          %1712 = dma.done %s1708, 256
        $region40: #{tpu_custom_call.1} parent=35 // pred_fallthru
          _
      $region36: #{tpu_custom_call.1} parent=5 // pred_fallthru
        _
    $region6: #{tpu_custom_call.1} parent=1 // loop_footer
      %s17 = sadd.s32 1, %s13
    $region7: #{tpu_custom_call.1} parent=1 // loop_footer_branch
      %12 = sbr.rel target = $region3
    $region8: #{tpu_custom_call.1} parent=1 // loop_exit
      _
    %1713 = vsyncpa [#allocation3], 1
    %s1714 = scalar_lea.sflag [#allocation3], 1
    %1715 = vsyncpa %s1714, 1
    %1716 = vsyncpa [#allocation4], 1
    %s1717 = scalar_lea.sflag [#allocation4], 1
    %1718 = vsyncpa %s1717, 1

</llo_original>
